<compile_context>
chip_gen: v6e
topology: v6e:2x2x1
jax: 0.10.0
libtpu: 0.0.40
codegen_flags: <defaults>
</compile_context>

<pallas_src>
import functools

import jax
import jax.numpy as jnp
from jax.experimental import pallas as pl
from jax.experimental.pallas import tpu as pltpu


def _round_up(x, m):
    return ((x + m - 1) // m) * m


def _vmem_limit_bytes():
    """~70% of physical VMEM; device_kind-keyed fallback (only clamp hard for v7x)."""
    try:
        info = pltpu.get_tpu_info()
        cap = int(getattr(info, "vmem_capacity_bytes", 0) or 0)
        if cap > 0:
            return int(cap * 0.7)
    except Exception:
        pass
    try:
        kind = jax.devices()[0].device_kind.lower()
    except Exception:
        kind = ""
    if "v7" in kind:
        return 45 << 20            # v7x: 64 MiB physical per core
    return 90 << 20                # v5e / v6e: 128 MiB physical


def _resident(block_shape, index_map):
    """Constant-index (VMEM-resident) operand: fetched once, single-buffered."""
    try:
        return pl.BlockSpec(block_shape, index_map, pipeline_mode=pl.Buffered(1))
    except Exception:  # older jax without pipeline_mode: fall back to default buffering
        return pl.BlockSpec(block_shape, index_map)


# ---------------------------------------------------------------------------
# Kernel 1:  T1 = (X @ Wfc^T + bfc) @ W1^T          (dropout = eval identity)
#   grid = (row tiles,) ; Wfc^T / W1^T / bfc VMEM-resident ; bf16 MXU, f32 math.
# ---------------------------------------------------------------------------
def _fc_transform_kernel(x_ref, wfc_ref, bfc_ref, w1_ref, out_ref):
    h0 = jnp.dot(x_ref[...], wfc_ref[...], preferred_element_type=jnp.float32)
    h0 = h0 + bfc_ref[...]
    t1 = jnp.dot(h0.astype(jnp.bfloat16), w1_ref[...],
                 preferred_element_type=jnp.float32)
    out_ref[...] = t1.astype(out_ref.dtype)


# ---------------------------------------------------------------------------
# Shared aggregation body: acc += A_norm[i, k-tile] @ T[k-tile]   (bf16 MXU, f32 acc)
# A_norm already carries the full D^-1/2 (A+I) D^-1/2 normalization.
# ---------------------------------------------------------------------------
def _agg_accumulate(adj_ref, t_ref, acc_ref, *, tk, resident_t):
    k = pl.program_id(1)

    @pl.when(k == 0)
    def _():
        acc_ref[...] = jnp.zeros_like(acc_ref)

    if resident_t:
        start = pl.multiple_of(k * tk, tk)
        t_blk = t_ref[pl.ds(start, tk), :]      # VMEM-resident T, sliced per k tile
    else:
        t_blk = t_ref[...]                      # streamed (tk, h_pad) tile
    acc_ref[...] += jnp.dot(adj_ref[...], t_blk, preferred_element_type=jnp.float32)


# Kernel 2 (conv1 aggregation + fused conv2 feature transform):
#   H1 = relu(A_norm @ T1 + b1) ;  T2 = H1 @ W2^T            -> bf16 output
def _agg_transform_kernel(adj_ref, t_ref, b_ref, w_ref, out_ref, acc_ref,
                          *, tk, resident_t):
    _agg_accumulate(adj_ref, t_ref, acc_ref, tk=tk, resident_t=resident_t)

    @pl.when(pl.program_id(1) == pl.num_programs(1) - 1)
    def _():
        h = jnp.maximum(acc_ref[...] + b_ref[...], 0.0)        # bias + ReLU in f32
        t_next = jnp.dot(h.astype(jnp.bfloat16), w_ref[...],
                         preferred_element_type=jnp.float32)
        out_ref[...] = t_next.astype(out_ref.dtype)


# Kernel 3 (conv2 aggregation + fused global_mean_pool partials):
#   H2 = relu(A_norm @ T2 + b2) ;  partial[i] = POOL[:, i-tile] @ H2[i-tile]
#   Per-row-tile partials keep the row axis "parallel"; reduced host-side.
def _agg_pool_kernel(adj_ref, t_ref, b_ref, pool_ref, out_ref, acc_ref,
                     *, tk, resident_t):
    _agg_accumulate(adj_ref, t_ref, acc_ref, tk=tk, resident_t=resident_t)

    @pl.when(pl.program_id(1) == pl.num_programs(1) - 1)
    def _():
        h2 = jnp.maximum(acc_ref[...] + b_ref[...], 0.0)
        out_ref[...] = jnp.dot(pool_ref[...], h2, preferred_element_type=jnp.float32)


# ---------------------------------------------------------------------------
# Host-side glue
# ---------------------------------------------------------------------------
def _build_dense_adj(edge_index, n):
    """Dense A + I, PyG-style add_remaining_self_loops for the unweighted case."""
    src, dst = edge_index[0], edge_index[1]
    w = jnp.where(src == dst, 0.0, 1.0).astype(jnp.float32)    # drop existing self loops
    adj = jnp.zeros((n, n), jnp.float32).at[dst, src].add(w)   # out[i] = sum over j->i
    return adj + jnp.eye(n, dtype=jnp.float32)                 # add self loops


@functools.partial(jax.jit, static_argnames=("num_graphs",))
def gcn_net_forward(x, edge_index, batch, params, num_graphs):
    """Pallas implementation of GCNNet.forward (eval mode, node/edge mask = None)."""
    n, d_in = x.shape
    hidden = params["fc_w"].shape[0]

    # ---- lane-dense padded / tiled sizes --------------------------------------------
    h_pad = _round_up(hidden, 128)
    d_pad = _round_up(d_in, 128)
    g_pad = _round_up(num_graphs, 8)
    if n <= 1024:
        n_pad = _round_up(n, 256)          # >= 2 row tiles even at small N
        tk = n_pad
        tm = 128 if n_pad <= 512 else 256
    else:
        n_pad = _round_up(n, 1024)
        tm, tk = 512, 1024                 # streamed adjacency tiles

    vmem = _vmem_limit_bytes()

    def _agg_vmem(tm_, resident):
        t_bytes = n_pad * h_pad * 2 if resident else 2 * tk * h_pad * 2
        return (2 * tm_ * tk * 2           # adj tiles (bf16, double-buffered)
                + t_bytes                  # T operand
                + h_pad * h_pad * 2        # resident W2^T (bf16)
                + 2 * tm_ * h_pad * 2      # bf16 output tiles (double-buffered)
                + tm_ * h_pad * 4          # f32 accumulator scratch
                + 2 * g_pad * tm_ * 4      # pool tiles (double-buffered)
                + 2 * g_pad * h_pad * 4)   # pooled partial output tiles

    budget = int(0.6 * vmem)
    resident_t = _agg_vmem(tm, True) <= budget
    if (not resident_t) and tm > 256 and _agg_vmem(tm, False) > budget:
        tm = 256
    n_tiles = n_pad // tm
    k_tiles = n_pad // tk

    # ---- normalized adjacency, padded inputs, pooling matrix (plain JAX) -------------
    adj = _build_dense_adj(edge_index, n)
    deg = jnp.sum(adj, axis=1)
    dis = jnp.where(deg > 0, jax.lax.rsqrt(deg), 0.0)
    adj_norm = (dis[:, None] * adj * dis[None, :]).astype(jnp.bfloat16)
    adj_p = jnp.zeros((n_pad, n_pad), jnp.bfloat16).at[:n, :n].set(adj_norm)

    x_p = jnp.zeros((n_pad, d_pad), jnp.bfloat16).at[:n, :d_in].set(
        x.astype(jnp.bfloat16))

    batch_p = jnp.full((n_pad,), num_graphs, jnp.int32).at[:n].set(batch.astype(jnp.int32))
    onehot = (batch_p[None, :] ==
              jnp.arange(g_pad, dtype=jnp.int32)[:, None]).astype(jnp.float32)
    counts = jnp.maximum(jnp.sum(onehot, axis=1, keepdims=True), 1.0)
    pool = onehot / counts                                      # [g_pad, n_pad]

    def pad_w(a, r, c):
        a = jnp.asarray(a, jnp.float32)
        out = jnp.zeros((r, c), jnp.float32).at[:a.shape[0], :a.shape[1]].set(a)
        return out.astype(jnp.bfloat16)

    def pad_b(a, c):
        a = jnp.asarray(a, jnp.float32).reshape(1, -1)
        return jnp.zeros((1, c), jnp.float32).at[:, :a.shape[1]].set(a)

    wfc = pad_w(params["fc_w"].T, d_pad, h_pad)
    w1 = pad_w(params["conv1_w"].T, h_pad, h_pad)
    w2 = pad_w(params["conv2_w"].T, h_pad, h_pad)
    bfc = pad_b(params["fc_b"], h_pad)
    b1 = pad_b(params["conv1_b"], h_pad)
    b2 = pad_b(params["conv2_b"], h_pad)

    cp1 = pltpu.CompilerParams(dimension_semantics=("parallel",),
                               vmem_limit_bytes=vmem)
    cp2 = pltpu.CompilerParams(dimension_semantics=("parallel", "arbitrary"),
                               vmem_limit_bytes=vmem)

    # ---- 1) fc + conv1 feature transform:  T1 = (X Wfc^T + bfc) W1^T -----------------
    t1 = pl.pallas_call(
        _fc_transform_kernel,
        out_shape=jax.ShapeDtypeStruct((n_pad, h_pad), jnp.bfloat16),
        grid=(n_tiles,),
        in_specs=[
            pl.BlockSpec((tm, d_pad), lambda i: (i, 0)),           # X rows (streamed)
            _resident((d_pad, h_pad), lambda i: (0, 0)),           # Wfc^T
            _resident((1, h_pad), lambda i: (0, 0)),               # bfc
            _resident((h_pad, h_pad), lambda i: (0, 0)),           # W1^T
        ],
        out_specs=pl.BlockSpec((tm, h_pad), lambda i: (i, 0)),
        compiler_params=cp1,
    )(x_p, wfc, bfc, w1)

    if resident_t:
        t_spec = _resident((n_pad, h_pad), lambda i, k: (0, 0))    # whole T in VMEM
    else:
        t_spec = pl.BlockSpec((tk, h_pad), lambda i, k: (k, 0))    # streamed T tiles

    # ---- 2) conv1 aggregation + fused conv2 feature transform:  T2 -------------------
    t2 = pl.pallas_call(
        functools.partial(_agg_transform_kernel, tk=tk, resident_t=resident_t),
        out_shape=jax.ShapeDtypeStruct((n_pad, h_pad), jnp.bfloat16),
        grid=(n_tiles, k_tiles),
        in_specs=[
            pl.BlockSpec((tm, tk), lambda i, k: (i, k)),           # A_norm tile (bf16)
            t_spec,                                                # T1
            _resident((1, h_pad), lambda i, k: (0, 0)),            # b1
            _resident((h_pad, h_pad), lambda i, k: (0, 0)),        # W2^T
        ],
        out_specs=pl.BlockSpec((tm, h_pad), lambda i, k: (i, 0)),
        scratch_shapes=[pltpu.VMEM((tm, h_pad), jnp.float32)],
        compiler_params=cp2,
    )(adj_p, t1, b1, w2)

    # ---- 3) conv2 aggregation + fused global_mean_pool (per-row-tile partials) -------
    pool_parts = pl.pallas_call(
        functools.partial(_agg_pool_kernel, tk=tk, resident_t=resident_t),
        out_shape=jax.ShapeDtypeStruct((n_tiles * g_pad, h_pad), jnp.float32),
        grid=(n_tiles, k_tiles),
        in_specs=[
            pl.BlockSpec((tm, tk), lambda i, k: (i, k)),           # A_norm tile (bf16)
            t_spec,                                                # T2
            _resident((1, h_pad), lambda i, k: (0, 0)),            # b2
            pl.BlockSpec((g_pad, tm), lambda i, k: (0, i)),        # pool columns
        ],
        out_specs=pl.BlockSpec((g_pad, h_pad), lambda i, k: (i, 0)),
        scratch_shapes=[pltpu.VMEM((tm, h_pad), jnp.float32)],
        compiler_params=cp2,
    )(adj_p, t2, b2, pool)

    out = jnp.sum(pool_parts.reshape(n_tiles, g_pad, h_pad), axis=0)
    return out[:num_graphs, :hidden]


# ---------------------------------------------------------------------------
# Pure-JAX f32 reference (same GCNConv semantics), parameters, demo
# ---------------------------------------------------------------------------
def gcn_net_reference(x, edge_index, batch, params, num_graphs):
    adj = _build_dense_adj(edge_index, x.shape[0])
    deg = jnp.sum(adj, axis=1)
    dis = jnp.where(deg > 0, jax.lax.rsqrt(deg), 0.0)
    adj_n = dis[:, None] * adj * dis[None, :]
    h = x @ params["fc_w"].T + params["fc_b"]
    h = jnp.maximum(adj_n @ (h @ params["conv1_w"].T) + params["conv1_b"], 0.0)
    h = jnp.maximum(adj_n @ (h @ params["conv2_w"].T) + params["conv2_b"], 0.0)
    onehot = (batch[None, :] == jnp.arange(num_graphs)[:, None]).astype(jnp.float32)
    counts = jnp.maximum(onehot.sum(1, keepdims=True), 1.0)
    return (onehot / counts) @ h


def init_params(key, in_dim, hidden_dim):
    ks = jax.random.split(key, 4)
    s_fc = 1.0 / jnp.sqrt(jnp.float32(in_dim))
    s_h = 1.0 / jnp.sqrt(jnp.float32(hidden_dim))
    return {
        "fc_w": jax.random.uniform(ks[0], (hidden_dim, in_dim), jnp.float32, -s_fc, s_fc),
        "fc_b": jax.random.uniform(ks[1], (hidden_dim,), jnp.float32, -s_fc, s_fc),
        "conv1_w": jax.random.uniform(ks[2], (hidden_dim, hidden_dim), jnp.float32, -s_h, s_h),
        "conv1_b": jnp.zeros((hidden_dim,), jnp.float32),
        "conv2_w": jax.random.uniform(ks[3], (hidden_dim, hidden_dim), jnp.float32, -s_h, s_h),
        "conv2_b": jnp.zeros((hidden_dim,), jnp.float32),
    }


if __name__ == "__main__":
    key = jax.random.PRNGKey(0)
    k_x, k_e1, k_e2, k_p, k_b = jax.random.split(key, 5)

    # MyModel defaults: in_dim=1024, hidden_dim=256; small node/edge counts for the demo.
    N, IN_DIM, HIDDEN, NUM_GRAPHS, E = 256, 1024, 256, 4, 1024

    x = jax.random.normal(k_x, (N, IN_DIM), jnp.float32)
    src = jax.random.randint(k_e1, (E,), 0, N, jnp.int32)
    dst = jax.random.randint(k_e2, (E,), 0, N, jnp.int32)
    edge_index = jnp.stack([jnp.concatenate([src, dst]),
                            jnp.concatenate([dst, src])], axis=0)      # symmetric edges
    batch = jnp.sort(jax.random.randint(k_b, (N,), 0, NUM_GRAPHS, jnp.int32))

    params = init_params(k_p, IN_DIM, HIDDEN)

    out = gcn_net_forward(x, edge_index, batch, params, num_graphs=NUM_GRAPHS)
    out = jax.block_until_ready(out)

    ref = gcn_net_reference(x, edge_index, batch, params, NUM_GRAPHS)

    assert out.shape == (NUM_GRAPHS, HIDDEN)
    assert bool(jnp.all(jnp.isfinite(out)))
    max_err = float(jnp.max(jnp.abs(out - ref)))
    assert bool(jnp.allclose(out, ref, rtol=5e-2, atol=5e-2)), f"max_err={max_err}"
    print("KERNEL_OK")
</pallas_src>

<mosaic_0001>
module attributes {stable_mosaic.version = 11 : i64} {
  func.func private @main(%arg0: i32) attributes {dimension_semantics = [#tpu.dimension_semantics<core_parallel>], iteration_bounds = array<i64: 2>, tpu.core_type = #tpu.core_type<sc_scalar_subcore>, window_params = []} {
    return
  }
}

module attributes {stable_mosaic.version = 11 : i64} {
  func.func private @main(%arg0: i32) attributes {dimension_semantics = [#tpu.dimension_semantics<core_parallel>], iteration_bounds = array<i64: 2>, tpu.core_type = #tpu.core_type<sc_scalar_subcore>, window_params = []} {
    return
  }
}

module attributes {stable_mosaic.version = 11 : i64} {
  func.func @_fc_transform_kernel(%arg0: i32, %arg1: memref<128x1024xbf16, #tpu.memory_space<vmem>>, %arg2: memref<1024x256xbf16, #tpu.memory_space<vmem>>, %arg3: memref<1x256xf32, #tpu.memory_space<vmem>>, %arg4: memref<256x256xbf16, #tpu.memory_space<vmem>>, %arg5: memref<128x256xbf16, #tpu.memory_space<vmem>>) attributes {dimension_semantics = [#tpu.dimension_semantics<parallel>], iteration_bounds = array<i64: 2>, scalar_prefetch = 0 : i64, scratch_operands = 0 : i64, tpu.core_type = #tpu.core_type<tc>, window_params = [{transform_indices = @transform_0, window_bounds = array<i64: 128, 1024>}, {pipeline_mode = #tpu.pipeline_mode<synchronous>, transform_indices = @transform_1, window_bounds = array<i64: 1024, 256>}, {pipeline_mode = #tpu.pipeline_mode<synchronous>, transform_indices = @transform_2, window_bounds = array<i64: 1, 256>}, {pipeline_mode = #tpu.pipeline_mode<synchronous>, transform_indices = @transform_3, window_bounds = array<i64: 256, 256>}, {transform_indices = @transform_4, window_bounds = array<i64: 128, 256>}]} {
    %c0 = arith.constant 0 : index
    %c0_0 = arith.constant 0 : index
    %0 = vector.load %arg1[%c0, %c0_0] : memref<128x1024xbf16, #tpu.memory_space<vmem>>, vector<128x1024xbf16>
    %c0_1 = arith.constant 0 : index
    %c0_2 = arith.constant 0 : index
    %1 = vector.load %arg2[%c0_1, %c0_2] : memref<1024x256xbf16, #tpu.memory_space<vmem>>, vector<1024x256xbf16>
    %cst = arith.constant dense<0.000000e+00> : vector<128x256xf32>
    %2 = tpu.matmul %0, %1, %cst {dimension_numbers = #tpu.dot_dimension_numbers<[1], [0], [0], [1], [0, 0, 1, 1], [], []>} : vector<128x1024xbf16>, vector<1024x256xbf16>, vector<128x256xf32> -> vector<128x256xf32>
    %c0_3 = arith.constant 0 : index
    %c0_4 = arith.constant 0 : index
    %3 = vector.load %arg3[%c0_3, %c0_4] : memref<1x256xf32, #tpu.memory_space<vmem>>, vector<1x256xf32>
    %4 = vector.broadcast %3 : vector<1x256xf32> to vector<128x256xf32>
    %5 = arith.addf %2, %4 : vector<128x256xf32>
    %6 = arith.truncf %5 : vector<128x256xf32> to vector<128x256xbf16>
    %c0_5 = arith.constant 0 : index
    %c0_6 = arith.constant 0 : index
    %7 = vector.load %arg4[%c0_5, %c0_6] : memref<256x256xbf16, #tpu.memory_space<vmem>>, vector<256x256xbf16>
    %cst_7 = arith.constant dense<0.000000e+00> : vector<128x256xf32>
    %8 = tpu.matmul %6, %7, %cst_7 {dimension_numbers = #tpu.dot_dimension_numbers<[1], [0], [0], [1], [0, 0, 1, 1], [], []>} : vector<128x256xbf16>, vector<256x256xbf16>, vector<128x256xf32> -> vector<128x256xf32>
    %9 = arith.truncf %8 : vector<128x256xf32> to vector<128x256xbf16>
    %c0_8 = arith.constant 0 : index
    %c0_9 = arith.constant 0 : index
    %10 = vector.load %arg5[%c0_8, %c0_9] : memref<128x256xbf16, #tpu.memory_space<vmem>>, vector<128x256xbf16>
    tpu.vector_store %arg5[%c0_8, %c0_9], %9 {strides = array<i32>} : memref<128x256xbf16, #tpu.memory_space<vmem>>, vector<128x256xbf16>,
    return
  }
  func.func @transform_0(%arg0: i32) -> (i32, i32) {
    %c0_i32 = arith.constant 0 : i32
    %c0_i32_0 = arith.constant 0 : i32
    return %arg0, %c0_i32 : i32, i32
  }
  func.func @transform_1(%arg0: i32) -> (i32, i32) {
    %c0_i32 = arith.constant 0 : i32
    %c0_i32_0 = arith.constant 0 : i32
    %c0_i32_1 = arith.constant 0 : i32
    return %c0_i32, %c0_i32_0 : i32, i32
  }
  func.func @transform_2(%arg0: i32) -> (i32, i32) {
    %c0_i32 = arith.constant 0 : i32
    %c0_i32_0 = arith.constant 0 : i32
    %c0_i32_1 = arith.constant 0 : i32
    return %c0_i32, %c0_i32_0 : i32, i32
  }
  func.func @transform_3(%arg0: i32) -> (i32, i32) {
    %c0_i32 = arith.constant 0 : i32
    %c0_i32_0 = arith.constant 0 : i32
    %c0_i32_1 = arith.constant 0 : i32
    return %c0_i32, %c0_i32_0 : i32, i32
  }
  func.func @transform_4(%arg0: i32) -> (i32, i32) {
    %c0_i32 = arith.constant 0 : i32
    %c0_i32_0 = arith.constant 0 : i32
    return %arg0, %c0_i32 : i32, i32
  }
}

module attributes {stable_mosaic.version = 11 : i64} {
  func.func @_agg_transform_kernel(%arg0: i32, %arg1: i32, %arg2: memref<128x256xbf16, #tpu.memory_space<vmem>>, %arg3: memref<256x256xbf16, #tpu.memory_space<vmem>>, %arg4: memref<1x256xf32, #tpu.memory_space<vmem>>, %arg5: memref<256x256xbf16, #tpu.memory_space<vmem>>, %arg6: memref<128x256xbf16, #tpu.memory_space<vmem>>, %arg7: memref<128x256xf32, #tpu.memory_space<vmem>>) attributes {dimension_semantics = [#tpu.dimension_semantics<parallel>, #tpu.dimension_semantics<arbitrary>], iteration_bounds = array<i64: 2, 1>, scalar_prefetch = 0 : i64, scratch_operands = 1 : i64, tpu.core_type = #tpu.core_type<tc>, window_params = [{transform_indices = @transform_0, window_bounds = array<i64: 128, 256>}, {pipeline_mode = #tpu.pipeline_mode<synchronous>, transform_indices = @transform_1, window_bounds = array<i64: 256, 256>}, {pipeline_mode = #tpu.pipeline_mode<synchronous>, transform_indices = @transform_2, window_bounds = array<i64: 1, 256>}, {pipeline_mode = #tpu.pipeline_mode<synchronous>, transform_indices = @transform_3, window_bounds = array<i64: 256, 256>}, {transform_indices = @transform_4, window_bounds = array<i64: 128, 256>}]} {
    %c0_i32 = arith.constant 0 : i32
    %0 = arith.cmpi eq, %arg1, %c0_i32 : i32
    %1 = arith.extui %0 : i1 to i32
    %c0_i32_0 = arith.constant 0 : i32
    %2 = arith.cmpi ne, %1, %c0_i32_0 : i32
    scf.if %2 {
      %cst_9 = arith.constant 0.000000e+00 : f32
      %15 = vector.broadcast %cst_9 : f32 to vector<128x256xf32>
      %c0_10 = arith.constant 0 : index
      %c0_11 = arith.constant 0 : index
      %16 = vector.load %arg7[%c0_10, %c0_11] : memref<128x256xf32, #tpu.memory_space<vmem>>, vector<128x256xf32>
      tpu.vector_store %arg7[%c0_10, %c0_11], %15 {strides = array<i32>} : memref<128x256xf32, #tpu.memory_space<vmem>>, vector<128x256xf32>,
    } else {
    }
    %c256_i32 = arith.constant 256 : i32
    %3 = arith.muli %arg1, %c256_i32 : i32
    %4 = tpu.assume_multiple %3, 256 : i32
    %5 = arith.index_cast %4 : i32 to index
    %c0 = arith.constant 0 : index
    %6 = vector.load %arg3[%5, %c0] : memref<256x256xbf16, #tpu.memory_space<vmem>>, vector<256x256xbf16>
    %c0_1 = arith.constant 0 : index
    %c0_2 = arith.constant 0 : index
    %7 = vector.load %arg7[%c0_1, %c0_2] : memref<128x256xf32, #tpu.memory_space<vmem>>, vector<128x256xf32>
    %c0_3 = arith.constant 0 : index
    %c0_4 = arith.constant 0 : index
    %8 = vector.load %arg2[%c0_3, %c0_4] : memref<128x256xbf16, #tpu.memory_space<vmem>>, vector<128x256xbf16>
    %cst = arith.constant dense<0.000000e+00> : vector<128x256xf32>
    %9 = tpu.matmul %8, %6, %cst {dimension_numbers = #tpu.dot_dimension_numbers<[1], [0], [0], [1], [0, 0, 1, 1], [], []>} : vector<128x256xbf16>, vector<256x256xbf16>, vector<128x256xf32> -> vector<128x256xf32>
    %10 = arith.addf %7, %9 : vector<128x256xf32>
    %c0_5 = arith.constant 0 : index
    %c0_6 = arith.constant 0 : index
    %11 = vector.load %arg7[%c0_5, %c0_6] : memref<128x256xf32, #tpu.memory_space<vmem>>, vector<128x256xf32>
    tpu.vector_store %arg7[%c0_5, %c0_6], %10 {strides = array<i32>} : memref<128x256xf32, #tpu.memory_space<vmem>>, vector<128x256xf32>,
    %c0_i32_7 = arith.constant 0 : i32
    %12 = arith.cmpi eq, %arg1, %c0_i32_7 : i32
    %13 = arith.extui %12 : i1 to i32
    %c0_i32_8 = arith.constant 0 : i32
    %14 = arith.cmpi ne, %13, %c0_i32_8 : i32
    scf.if %14 {
      %c0_9 = arith.constant 0 : index
      %c0_10 = arith.constant 0 : index
      %15 = vector.load %arg7[%c0_9, %c0_10] : memref<128x256xf32, #tpu.memory_space<vmem>>, vector<128x256xf32>
      %c0_11 = arith.constant 0 : index
      %c0_12 = arith.constant 0 : index
      %16 = vector.load %arg4[%c0_11, %c0_12] : memref<1x256xf32, #tpu.memory_space<vmem>>, vector<1x256xf32>
      %17 = vector.broadcast %16 : vector<1x256xf32> to vector<128x256xf32>
      %18 = arith.addf %15, %17 : vector<128x256xf32>
      %cst_13 = arith.constant 0.000000e+00 : f32
      %19 = vector.broadcast %cst_13 : f32 to vector<128x256xf32>
      %20 = arith.maximumf %18, %19 : vector<128x256xf32>
      %21 = arith.truncf %20 : vector<128x256xf32> to vector<128x256xbf16>
      %c0_14 = arith.constant 0 : index
      %c0_15 = arith.constant 0 : index
      %22 = vector.load %arg5[%c0_14, %c0_15] : memref<256x256xbf16, #tpu.memory_space<vmem>>, vector<256x256xbf16>
      %cst_16 = arith.constant dense<0.000000e+00> : vector<128x256xf32>
      %23 = tpu.matmul %21, %22, %cst_16 {dimension_numbers = #tpu.dot_dimension_numbers<[1], [0], [0], [1], [0, 0, 1, 1], [], []>} : vector<128x256xbf16>, vector<256x256xbf16>, vector<128x256xf32> -> vector<128x256xf32>
      %24 = arith.truncf %23 : vector<128x256xf32> to vector<128x256xbf16>
      %c0_17 = arith.constant 0 : index
      %c0_18 = arith.constant 0 : index
      %25 = vector.load %arg6[%c0_17, %c0_18] : memref<128x256xbf16, #tpu.memory_space<vmem>>, vector<128x256xbf16>
      tpu.vector_store %arg6[%c0_17, %c0_18], %24 {strides = array<i32>} : memref<128x256xbf16, #tpu.memory_space<vmem>>, vector<128x256xbf16>,
    } else {
    }
    return
  }
  func.func @transform_0(%arg0: i32, %arg1: i32) -> (i32, i32) {
    %c0_i32 = arith.constant 0 : i32
    return %arg0, %arg1 : i32, i32
  }
  func.func @transform_1(%arg0: i32, %arg1: i32) -> (i32, i32) {
    %c0_i32 = arith.constant 0 : i32
    %c0_i32_0 = arith.constant 0 : i32
    %c0_i32_1 = arith.constant 0 : i32
    return %c0_i32, %c0_i32_0 : i32, i32
  }
  func.func @transform_2(%arg0: i32, %arg1: i32) -> (i32, i32) {
    %c0_i32 = arith.constant 0 : i32
    %c0_i32_0 = arith.constant 0 : i32
    %c0_i32_1 = arith.constant 0 : i32
    return %c0_i32, %c0_i32_0 : i32, i32
  }
  func.func @transform_3(%arg0: i32, %arg1: i32) -> (i32, i32) {
    %c0_i32 = arith.constant 0 : i32
    %c0_i32_0 = arith.constant 0 : i32
    %c0_i32_1 = arith.constant 0 : i32
    return %c0_i32, %c0_i32_0 : i32, i32
  }
  func.func @transform_4(%arg0: i32, %arg1: i32) -> (i32, i32) {
    %c0_i32 = arith.constant 0 : i32
    %c0_i32_0 = arith.constant 0 : i32
    return %arg0, %c0_i32 : i32, i32
  }
}

module attributes {stable_mosaic.version = 11 : i64} {
  func.func @_agg_pool_kernel(%arg0: i32, %arg1: i32, %arg2: memref<128x256xbf16, #tpu.memory_space<vmem>>, %arg3: memref<256x256xbf16, #tpu.memory_space<vmem>>, %arg4: memref<1x256xf32, #tpu.memory_space<vmem>>, %arg5: memref<8x128xf32, #tpu.memory_space<vmem>>, %arg6: memref<8x256xf32, #tpu.memory_space<vmem>>, %arg7: memref<128x256xf32, #tpu.memory_space<vmem>>) attributes {dimension_semantics = [#tpu.dimension_semantics<parallel>, #tpu.dimension_semantics<arbitrary>], iteration_bounds = array<i64: 2, 1>, scalar_prefetch = 0 : i64, scratch_operands = 1 : i64, tpu.core_type = #tpu.core_type<tc>, window_params = [{transform_indices = @transform_0, window_bounds = array<i64: 128, 256>}, {pipeline_mode = #tpu.pipeline_mode<synchronous>, transform_indices = @transform_1, window_bounds = array<i64: 256, 256>}, {pipeline_mode = #tpu.pipeline_mode<synchronous>, transform_indices = @transform_2, window_bounds = array<i64: 1, 256>}, {transform_indices = @transform_3, window_bounds = array<i64: 8, 128>}, {transform_indices = @transform_4, window_bounds = array<i64: 8, 256>}]} {
    %c0_i32 = arith.constant 0 : i32
    %0 = arith.cmpi eq, %arg1, %c0_i32 : i32
    %1 = arith.extui %0 : i1 to i32
    %c0_i32_0 = arith.constant 0 : i32
    %2 = arith.cmpi ne, %1, %c0_i32_0 : i32
    scf.if %2 {
      %cst_9 = arith.constant 0.000000e+00 : f32
      %15 = vector.broadcast %cst_9 : f32 to vector<128x256xf32>
      %c0_10 = arith.constant 0 : index
      %c0_11 = arith.constant 0 : index
      %16 = vector.load %arg7[%c0_10, %c0_11] : memref<128x256xf32, #tpu.memory_space<vmem>>, vector<128x256xf32>
      tpu.vector_store %arg7[%c0_10, %c0_11], %15 {strides = array<i32>} : memref<128x256xf32, #tpu.memory_space<vmem>>, vector<128x256xf32>,
    } else {
    }
    %c256_i32 = arith.constant 256 : i32
    %3 = arith.muli %arg1, %c256_i32 : i32
    %4 = tpu.assume_multiple %3, 256 : i32
    %5 = arith.index_cast %4 : i32 to index
    %c0 = arith.constant 0 : index
    %6 = vector.load %arg3[%5, %c0] : memref<256x256xbf16, #tpu.memory_space<vmem>>, vector<256x256xbf16>
    %c0_1 = arith.constant 0 : index
    %c0_2 = arith.constant 0 : index
    %7 = vector.load %arg7[%c0_1, %c0_2] : memref<128x256xf32, #tpu.memory_space<vmem>>, vector<128x256xf32>
    %c0_3 = arith.constant 0 : index
    %c0_4 = arith.constant 0 : index
    %8 = vector.load %arg2[%c0_3, %c0_4] : memref<128x256xbf16, #tpu.memory_space<vmem>>, vector<128x256xbf16>
    %cst = arith.constant dense<0.000000e+00> : vector<128x256xf32>
    %9 = tpu.matmul %8, %6, %cst {dimension_numbers = #tpu.dot_dimension_numbers<[1], [0], [0], [1], [0, 0, 1, 1], [], []>} : vector<128x256xbf16>, vector<256x256xbf16>, vector<128x256xf32> -> vector<128x256xf32>
    %10 = arith.addf %7, %9 : vector<128x256xf32>
    %c0_5 = arith.constant 0 : index
    %c0_6 = arith.constant 0 : index
    %11 = vector.load %arg7[%c0_5, %c0_6] : memref<128x256xf32, #tpu.memory_space<vmem>>, vector<128x256xf32>
    tpu.vector_store %arg7[%c0_5, %c0_6], %10 {strides = array<i32>} : memref<128x256xf32, #tpu.memory_space<vmem>>, vector<128x256xf32>,
    %c0_i32_7 = arith.constant 0 : i32
    %12 = arith.cmpi eq, %arg1, %c0_i32_7 : i32
    %13 = arith.extui %12 : i1 to i32
    %c0_i32_8 = arith.constant 0 : i32
    %14 = arith.cmpi ne, %13, %c0_i32_8 : i32
    scf.if %14 {
      %c0_9 = arith.constant 0 : index
      %c0_10 = arith.constant 0 : index
      %15 = vector.load %arg7[%c0_9, %c0_10] : memref<128x256xf32, #tpu.memory_space<vmem>>, vector<128x256xf32>
      %c0_11 = arith.constant 0 : index
      %c0_12 = arith.constant 0 : index
      %16 = vector.load %arg4[%c0_11, %c0_12] : memref<1x256xf32, #tpu.memory_space<vmem>>, vector<1x256xf32>
      %17 = vector.broadcast %16 : vector<1x256xf32> to vector<128x256xf32>
      %18 = arith.addf %15, %17 : vector<128x256xf32>
      %cst_13 = arith.constant 0.000000e+00 : f32
      %19 = vector.broadcast %cst_13 : f32 to vector<128x256xf32>
      %20 = arith.maximumf %18, %19 : vector<128x256xf32>
      %c0_14 = arith.constant 0 : index
      %c0_15 = arith.constant 0 : index
      %21 = vector.load %arg5[%c0_14, %c0_15] : memref<8x128xf32, #tpu.memory_space<vmem>>, vector<8x128xf32>
      %cst_16 = arith.constant dense<0.000000e+00> : vector<8x256xf32>
      %22 = tpu.matmul %21, %20, %cst_16 {dimension_numbers = #tpu.dot_dimension_numbers<[1], [0], [0], [1], [0, 0, 1, 1], [], []>} : vector<8x128xf32>, vector<128x256xf32>, vector<8x256xf32> -> vector<8x256xf32>
      %c0_17 = arith.constant 0 : index
      %c0_18 = arith.constant 0 : index
      %23 = vector.load %arg6[%c0_17, %c0_18] : memref<8x256xf32, #tpu.memory_space<vmem>>, vector<8x256xf32>
      tpu.vector_store %arg6[%c0_17, %c0_18], %22 {strides = array<i32>} : memref<8x256xf32, #tpu.memory_space<vmem>>, vector<8x256xf32>,
    } else {
    }
    return
  }
  func.func @transform_0(%arg0: i32, %arg1: i32) -> (i32, i32) {
    %c0_i32 = arith.constant 0 : i32
    return %arg0, %arg1 : i32, i32
  }
  func.func @transform_1(%arg0: i32, %arg1: i32) -> (i32, i32) {
    %c0_i32 = arith.constant 0 : i32
    %c0_i32_0 = arith.constant 0 : i32
    %c0_i32_1 = arith.constant 0 : i32
    return %c0_i32, %c0_i32_0 : i32, i32
  }
  func.func @transform_2(%arg0: i32, %arg1: i32) -> (i32, i32) {
    %c0_i32 = arith.constant 0 : i32
    %c0_i32_0 = arith.constant 0 : i32
    %c0_i32_1 = arith.constant 0 : i32
    return %c0_i32, %c0_i32_0 : i32, i32
  }
  func.func @transform_3(%arg0: i32, %arg1: i32) -> (i32, i32) {
    %c0_i32 = arith.constant 0 : i32
    %c0_i32_0 = arith.constant 0 : i32
    return %c0_i32, %arg0 : i32, i32
  }
  func.func @transform_4(%arg0: i32, %arg1: i32) -> (i32, i32) {
    %c0_i32 = arith.constant 0 : i32
    %c0_i32_0 = arith.constant 0 : i32
    return %arg0, %c0_i32 : i32, i32
  }
}

</mosaic_0001>

<llo_original>
// kernel: gcn_net_forward.3
$region0: #{gcn_net_forward.3}
  #allocation0 [shape = 'u32[]', space=smem, size = 0x4, offset = 0x4, fixed_abs, tag = 'smem constant byte address 0x4 - core index']
  #allocation1 [shape = 'u32[144,128]{1,0:T(1,128)}', space=vmem, size = 0x12000, scoped, tag = 'internal scratch']
  %s0 = inlined_call_operand.vmem [shape: bf16[256,1024], index: 0, kind: input, shape index: {}]
  %s1 = inlined_call_operand.vmem [shape: bf16[1024,256], index: 1, kind: input, shape index: {}]
  %s2 = inlined_call_operand.vmem [shape: f32[1,256], index: 2, kind: input, shape index: {}]
  %s3 = inlined_call_operand.vmem [shape: bf16[256,256], index: 3, kind: input, shape index: {}]
  %s4 = inlined_call_operand.vmem [shape: bf16[256,256], index: 4, kind: output, shape index: {}]
  %s5 = sld [smem:[#allocation0]]
  $region49: #{gcn_net_forward.3} parent=0
    _
  %s7 = ssub.s32 1, %s5
  %s8 = scalar_select 0, %s7, %s5
  loop: start=0, step=1, limit=4
  $region2: #{gcn_net_forward.3} parent=0 // loop_pre_header
    _
  $region3: #{gcn_net_forward.3} parent=0 // loop_header
    %s10 = sphi 0, %s14
    %p11 = scmp.ge.s32.totalorder %s10, 4
    %s20 = sphi 0, %s22
    %s23 = sphi 0, %s20
    %s24 = sphi 0, %s23
    %s40 = sphi 0, %s24
    %s44 = sphi 0, %s44
    %s46 = sphi 0, %s44
    %s47 = sphi 0, %s46
    %s61 = sphi 0, %s47
    %s65 = sphi 0, %s65
    %s67 = sphi 0, %s65
    %s68 = sphi 0, %s67
    %s82 = sphi 0, %s68
    %s86 = sphi 0, %s86
    %s88 = sphi 0, %s86
    %s89 = sphi 0, %s88
    %s103 = sphi 0, %s89
    %s109 = sphi 0, %s111
    %s112 = sphi 0, %s109
    %s113 = sphi 0, %s112
    %s129 = sphi 0, %s113
  $region4: #{gcn_net_forward.3} parent=0 // loop_header_branch
    %13 = sbr.rel (%p11) target = $region8
  $region5: #{gcn_net_forward.3} parent=0 // loop_body
    %s15 = ssub.s32 %s10, 1
    %s16 = ssub.s32 %s10, 2
    %s17 = sadd.s32 %s10, 1
    %s18 = ssub.s32 %s10, %s17
    %p19 = scmp.eq.s32.totalorder %s18, 0
    %s21 = sadd.s32 %s20, 1
    %s22 = scalar_select %p19, %s20, %s21
    %p25 = pneg %p19
    %p26 = scmp.eq.s32.totalorder %s10, 1
    %p27 = por %p25, %p26
    %p28 = scmp.ne.s32.totalorder %s20, %s23
    %p29 = scmp.eq.s32.totalorder %s10, 0
    %p30 = por %p28, %p29
    %p31 = scmp.ne.s32.totalorder %s20, %s23
    %p32 = scmp.eq.s32.totalorder %s15, 1
    %p33 = por %p31, %p32
    %p34 = scmp.ne.s32.totalorder %s23, %s24
    %p35 = scmp.eq.s32.totalorder %s15, 0
    %p36 = por %p34, %p35
    %p37 = scmp.ne.s32.totalorder %s23, %s24
    %p38 = scmp.eq.s32.totalorder %s16, 1
    %p39 = por %p37, %p38
    %p41 = scmp.ne.s32.totalorder %s24, %s40
    %p42 = scmp.eq.s32.totalorder %s16, 0
    %p43 = por %p41, %p42
    %s45 = sadd.s32 %s44, 1
    %p48 = scmp.eq.s32.totalorder %s10, 1
    %p49 = scmp.ne.s32.totalorder %s44, %s46
    %p50 = scmp.eq.s32.totalorder %s10, 0
    %p51 = por %p49, %p50
    %p52 = scmp.ne.s32.totalorder %s44, %s46
    %p53 = scmp.eq.s32.totalorder %s15, 1
    %p54 = por %p52, %p53
    %p55 = scmp.ne.s32.totalorder %s46, %s47
    %p56 = scmp.eq.s32.totalorder %s15, 0
    %p57 = por %p55, %p56
    %p58 = scmp.ne.s32.totalorder %s46, %s47
    %p59 = scmp.eq.s32.totalorder %s16, 1
    %p60 = por %p58, %p59
    %p62 = scmp.ne.s32.totalorder %s47, %s61
    %p63 = scmp.eq.s32.totalorder %s16, 0
    %p64 = por %p62, %p63
    %s66 = sadd.s32 %s65, 1
    %p69 = scmp.eq.s32.totalorder %s10, 1
    %p70 = scmp.ne.s32.totalorder %s65, %s67
    %p71 = scmp.eq.s32.totalorder %s10, 0
    %p72 = por %p70, %p71
    %p73 = scmp.ne.s32.totalorder %s65, %s67
    %p74 = scmp.eq.s32.totalorder %s15, 1
    %p75 = por %p73, %p74
    %p76 = scmp.ne.s32.totalorder %s67, %s68
    %p77 = scmp.eq.s32.totalorder %s15, 0
    %p78 = por %p76, %p77
    %p79 = scmp.ne.s32.totalorder %s67, %s68
    %p80 = scmp.eq.s32.totalorder %s16, 1
    %p81 = por %p79, %p80
    %p83 = scmp.ne.s32.totalorder %s68, %s82
    %p84 = scmp.eq.s32.totalorder %s16, 0
    %p85 = por %p83, %p84
    %s87 = sadd.s32 %s86, 1
    %p90 = scmp.eq.s32.totalorder %s10, 1
    %p91 = scmp.ne.s32.totalorder %s86, %s88
    %p92 = scmp.eq.s32.totalorder %s10, 0
    %p93 = por %p91, %p92
    %p94 = scmp.ne.s32.totalorder %s86, %s88
    %p95 = scmp.eq.s32.totalorder %s15, 1
    %p96 = por %p94, %p95
    %p97 = scmp.ne.s32.totalorder %s88, %s89
    %p98 = scmp.eq.s32.totalorder %s15, 0
    %p99 = por %p97, %p98
    %p100 = scmp.ne.s32.totalorder %s88, %s89
    %p101 = scmp.eq.s32.totalorder %s16, 1
    %p102 = por %p100, %p101
    %p104 = scmp.ne.s32.totalorder %s89, %s103
    %p105 = scmp.eq.s32.totalorder %s16, 0
    %p106 = por %p104, %p105
    %s107 = ssub.s32 %s10, %s17
    %p108 = scmp.eq.s32.totalorder %s107, 0
    %s110 = sadd.s32 %s109, 1
    %s111 = scalar_select %p108, %s109, %s110
    %p114 = pneg %p108
    %p115 = scmp.eq.s32.totalorder %s10, 1
    %p116 = por %p114, %p115
    %p117 = scmp.ne.s32.totalorder %s109, %s112
    %p118 = scmp.eq.s32.totalorder %s10, 0
    %p119 = por %p117, %p118
    %p120 = scmp.ne.s32.totalorder %s109, %s112
    %p121 = scmp.eq.s32.totalorder %s15, 1
    %p122 = por %p120, %p121
    %p123 = scmp.ne.s32.totalorder %s112, %s113
    %p124 = scmp.eq.s32.totalorder %s15, 0
    %p125 = por %p123, %p124
    %p126 = scmp.ne.s32.totalorder %s112, %s113
    %p127 = scmp.eq.s32.totalorder %s16, 1
    %p128 = por %p126, %p127
    %p130 = scmp.ne.s32.totalorder %s113, %s129
    %p131 = scmp.eq.s32.totalorder %s16, 0
    %p132 = por %p130, %p131
    %p133 = scmp.le.s32.totalorder 1, %s10
    %p134 = scmp.lt.s32.totalorder %s10, 3
    %p135 = pnand %p133, %p134
    %p136 = pneg %p135
    // Predicated region
    $region9: #{gcn_net_forward.3} parent=5 // pred_check
      _
    $region10: #{gcn_net_forward.3} parent=5 // pred_check_branch
      %138 = sbr.rel (%p135) target = $region12
    $region11: #{gcn_net_forward.3} parent=5 // pred_region
      %s139 = ssub.s32 %s10, 1
      // Predicated region
      $region13: #{gcn_net_forward.3} parent=11 // pred_check
        %p140 = pneg %p57
      $region14: #{gcn_net_forward.3} parent=11 // pred_check_branch
        %142 = sbr.rel (%p140) target = $region16
      $region15: #{gcn_net_forward.3} parent=11 // pred_region
        _
      $region16: #{gcn_net_forward.3} parent=11 // pred_fallthru
        _
      // Predicated region
      $region17: #{gcn_net_forward.3} parent=11 // pred_check
        %p143 = pneg %p78
      $region18: #{gcn_net_forward.3} parent=11 // pred_check_branch
        %145 = sbr.rel (%p143) target = $region20
      $region19: #{gcn_net_forward.3} parent=11 // pred_region
        _
      $region20: #{gcn_net_forward.3} parent=11 // pred_fallthru
        _
      // Predicated region
      $region21: #{gcn_net_forward.3} parent=11 // pred_check
        %p146 = pneg %p99
      $region22: #{gcn_net_forward.3} parent=11 // pred_check_branch
        %148 = sbr.rel (%p146) target = $region24
      $region23: #{gcn_net_forward.3} parent=11 // pred_region
        _
      $region24: #{gcn_net_forward.3} parent=11 // pred_fallthru
        _
    $region12: #{gcn_net_forward.3} parent=5 // pred_fallthru
      _
    %p149 = scmp.lt.s32.totalorder %s10, 2
    // Predicated region
    $region25: #{gcn_net_forward.3} parent=5 // pred_check
      %p150 = pneg %p149
    $region26: #{gcn_net_forward.3} parent=5 // pred_check_branch
      %152 = sbr.rel (%p150) target = $region28
    $region27: #{gcn_net_forward.3} parent=5 // pred_region
      // Predicated region
      $region29: #{gcn_net_forward.3} parent=27 // pred_check
        %p153 = pneg %p30
      $region30: #{gcn_net_forward.3} parent=27 // pred_check_branch
        %155 = sbr.rel (%p153) target = $region32
      $region31: #{gcn_net_forward.3} parent=27 // pred_region
        %s156 = smul.u32 16, %s10
        %p157 = scmp.lt.s32.totalorder %s156, 31
        %s158 = scalar_select %p157, %s156, 31
        %s159 = smul.addr %s158, 8
        %s160 = smul.addr %s159, 4
        %s161 = scalar_lea.vmem %s0, %s160
        %s162 = smul.u32 16, %s10
      $region32: #{gcn_net_forward.3} parent=27 // pred_fallthru
        _
    $region28: #{gcn_net_forward.3} parent=5 // pred_fallthru
      _
    %p163 = scmp.le.s32.totalorder 1, %s10
    %p164 = scmp.lt.s32.totalorder %s10, 3
    %p165 = pnand %p163, %p164
    %p166 = pneg %p165
    // Predicated region
    $region33: #{gcn_net_forward.3} parent=5 // pred_check
      _
    $region34: #{gcn_net_forward.3} parent=5 // pred_check_branch
      %168 = sbr.rel (%p165) target = $region36
    $region35: #{gcn_net_forward.3} parent=5 // pred_region
      %s169 = ssub.s32 %s10, 1
      %s170 = smul.u32 16, %s15
      %p171 = scmp.lt.s32.totalorder %s170, 31
      %s172 = scalar_select %p171, %s170, 31
      %s173 = smul.addr %s172, 8
      %s174 = smul.addr %s173, 4
      %s175 = scalar_lea.vmem %s0, %s174
      %p176 = pneg %p36
      %p177 = pneg %p33
      %p178 = pneg %p57
      %p179 = pneg %p54
      %p180 = pneg %p78
      %p181 = pneg %p75
      %p182 = pneg %p99
      %p183 = pneg %p96
      %p184 = pneg %p125
      %p185 = pneg %p122
      %s186 = smul.u32 16, %s15
      %p187 = scmp.lt.s32.totalorder %s186, 31
      %s188 = scalar_select %p187, %s186, 31
      %s189 = smul.addr %s188, 2
      %s190 = smul.addr %s189, 4
      %s191 = scalar_lea.vmem %s4, %s190
      %s192 = smul.u32 16, %s15
      %p193 = scmp.lt.s32.totalorder %s192, 31
      %s194 = scalar_select %p193, %s192, 31
      %s195 = smul.addr %s194, 8
      %s196 = smul.addr %s195, 4
      %s197 = scalar_lea.vmem %s0, %s196
      %s198 = smul.u32 16, %s15
      %s199 = smul.u32 16, %s15
      %p200 = scmp.lt.s32.totalorder %s199, 31
      %s201 = scalar_select %p200, %s199, 31
      %s202 = smul.addr %s201, 2
      %s203 = smul.addr %s202, 4
      %s204 = scalar_lea.vmem %s4, %s203
      %s205 = smul.u32 16, %s15
      %v206 = vld [vmem:[%s197] sm:$0xff]
      %v207 = vld [vmem:[%s197 + $0x8] sm:$0xff]
      %v208 = vld [vmem:[%s197 + $0x10] sm:$0xff]
      %v209 = vld [vmem:[%s197 + $0x18] sm:$0xff]
      %v210 = vld [vmem:[%s197 + $0x20] sm:$0xff]
      %v211 = vld [vmem:[%s197 + $0x28] sm:$0xff]
      %v212 = vld [vmem:[%s197 + $0x30] sm:$0xff]
      %v213 = vld [vmem:[%s197 + $0x38] sm:$0xff]
      %v214 = vld [vmem:[%s197 + $0x40] sm:$0xff]
      %v215 = vld [vmem:[%s197 + $0x48] sm:$0xff]
      %v216 = vld [vmem:[%s197 + $0x50] sm:$0xff]
      %v217 = vld [vmem:[%s197 + $0x58] sm:$0xff]
      %v218 = vld [vmem:[%s197 + $0x60] sm:$0xff]
      %v219 = vld [vmem:[%s197 + $0x68] sm:$0xff]
      %v220 = vld [vmem:[%s197 + $0x70] sm:$0xff]
      %v221 = vld [vmem:[%s197 + $0x78] sm:$0xff]
      %v222 = vld [vmem:[%s197 + $0x80] sm:$0xff]
      %v223 = vld [vmem:[%s197 + $0x88] sm:$0xff]
      %v224 = vld [vmem:[%s197 + $0x90] sm:$0xff]
      %v225 = vld [vmem:[%s197 + $0x98] sm:$0xff]
      %v226 = vld [vmem:[%s197 + $0xa0] sm:$0xff]
      %v227 = vld [vmem:[%s197 + $0xa8] sm:$0xff]
      %v228 = vld [vmem:[%s197 + $0xb0] sm:$0xff]
      %v229 = vld [vmem:[%s197 + $0xb8] sm:$0xff]
      %v230 = vld [vmem:[%s197 + $0xc0] sm:$0xff]
      %v231 = vld [vmem:[%s197 + $0xc8] sm:$0xff]
      %v232 = vld [vmem:[%s197 + $0xd0] sm:$0xff]
      %v233 = vld [vmem:[%s197 + $0xd8] sm:$0xff]
      %v234 = vld [vmem:[%s197 + $0xe0] sm:$0xff]
      %v235 = vld [vmem:[%s197 + $0xe8] sm:$0xff]
      %v236 = vld [vmem:[%s197 + $0xf0] sm:$0xff]
      %v237 = vld [vmem:[%s197 + $0xf8] sm:$0xff]
      %v238 = vld [vmem:[%s197 + $0x100] sm:$0xff]
      %v239 = vld [vmem:[%s197 + $0x108] sm:$0xff]
      %v240 = vld [vmem:[%s197 + $0x110] sm:$0xff]
      %v241 = vld [vmem:[%s197 + $0x118] sm:$0xff]
      %v242 = vld [vmem:[%s197 + $0x120] sm:$0xff]
      %v243 = vld [vmem:[%s197 + $0x128] sm:$0xff]
      %v244 = vld [vmem:[%s197 + $0x130] sm:$0xff]
      %v245 = vld [vmem:[%s197 + $0x138] sm:$0xff]
      %v246 = vld [vmem:[%s197 + $0x140] sm:$0xff]
      %v247 = vld [vmem:[%s197 + $0x148] sm:$0xff]
      %v248 = vld [vmem:[%s197 + $0x150] sm:$0xff]
      %v249 = vld [vmem:[%s197 + $0x158] sm:$0xff]
      %v250 = vld [vmem:[%s197 + $0x160] sm:$0xff]
      %v251 = vld [vmem:[%s197 + $0x168] sm:$0xff]
      %v252 = vld [vmem:[%s197 + $0x170] sm:$0xff]
      %v253 = vld [vmem:[%s197 + $0x178] sm:$0xff]
      %v254 = vld [vmem:[%s197 + $0x180] sm:$0xff]
      %v255 = vld [vmem:[%s197 + $0x188] sm:$0xff]
      %v256 = vld [vmem:[%s197 + $0x190] sm:$0xff]
      %v257 = vld [vmem:[%s197 + $0x198] sm:$0xff]
      %v258 = vld [vmem:[%s197 + $0x1a0] sm:$0xff]
      %v259 = vld [vmem:[%s197 + $0x1a8] sm:$0xff]
      %v260 = vld [vmem:[%s197 + $0x1b0] sm:$0xff]
      %v261 = vld [vmem:[%s197 + $0x1b8] sm:$0xff]
      %v262 = vld [vmem:[%s197 + $0x1c0] sm:$0xff]
      %v263 = vld [vmem:[%s197 + $0x1c8] sm:$0xff]
      %v264 = vld [vmem:[%s197 + $0x1d0] sm:$0xff]
      %v265 = vld [vmem:[%s197 + $0x1d8] sm:$0xff]
      %v266 = vld [vmem:[%s197 + $0x1e0] sm:$0xff]
      %v267 = vld [vmem:[%s197 + $0x1e8] sm:$0xff]
      %v268 = vld [vmem:[%s197 + $0x1f0] sm:$0xff]
      %v269 = vld [vmem:[%s197 + $0x1f8] sm:$0xff]
      %v270 = vld [vmem:[%s1] sm:$0xff]
      %v271 = vld [vmem:[%s1 + $0x8] sm:$0xff]
      %v272 = vld [vmem:[%s1 + $0x10] sm:$0xff]
      %v273 = vld [vmem:[%s1 + $0x18] sm:$0xff]
      %v274 = vld [vmem:[%s1 + $0x20] sm:$0xff]
      %v275 = vld [vmem:[%s1 + $0x28] sm:$0xff]
      %v276 = vld [vmem:[%s1 + $0x30] sm:$0xff]
      %v277 = vld [vmem:[%s1 + $0x38] sm:$0xff]
      %v278 = vld [vmem:[%s1 + $0x40] sm:$0xff]
      %v279 = vld [vmem:[%s1 + $0x48] sm:$0xff]
      %v280 = vld [vmem:[%s1 + $0x50] sm:$0xff]
      %v281 = vld [vmem:[%s1 + $0x58] sm:$0xff]
      %v282 = vld [vmem:[%s1 + $0x60] sm:$0xff]
      %v283 = vld [vmem:[%s1 + $0x68] sm:$0xff]
      %v284 = vld [vmem:[%s1 + $0x70] sm:$0xff]
      %v285 = vld [vmem:[%s1 + $0x78] sm:$0xff]
      %v286 = vld [vmem:[%s1 + $0x80] sm:$0xff]
      %v287 = vld [vmem:[%s1 + $0x88] sm:$0xff]
      %v288 = vld [vmem:[%s1 + $0x90] sm:$0xff]
      %v289 = vld [vmem:[%s1 + $0x98] sm:$0xff]
      %v290 = vld [vmem:[%s1 + $0xa0] sm:$0xff]
      %v291 = vld [vmem:[%s1 + $0xa8] sm:$0xff]
      %v292 = vld [vmem:[%s1 + $0xb0] sm:$0xff]
      %v293 = vld [vmem:[%s1 + $0xb8] sm:$0xff]
      %v294 = vld [vmem:[%s1 + $0xc0] sm:$0xff]
      %v295 = vld [vmem:[%s1 + $0xc8] sm:$0xff]
      %v296 = vld [vmem:[%s1 + $0xd0] sm:$0xff]
      %v297 = vld [vmem:[%s1 + $0xd8] sm:$0xff]
      %v298 = vld [vmem:[%s1 + $0xe0] sm:$0xff]
      %v299 = vld [vmem:[%s1 + $0xe8] sm:$0xff]
      %v300 = vld [vmem:[%s1 + $0xf0] sm:$0xff]
      %v301 = vld [vmem:[%s1 + $0xf8] sm:$0xff]
      %v302 = vld [vmem:[%s1 + $0x100] sm:$0xff]
      %v303 = vld [vmem:[%s1 + $0x108] sm:$0xff]
      %v304 = vld [vmem:[%s1 + $0x110] sm:$0xff]
      %v305 = vld [vmem:[%s1 + $0x118] sm:$0xff]
      %v306 = vld [vmem:[%s1 + $0x120] sm:$0xff]
      %v307 = vld [vmem:[%s1 + $0x128] sm:$0xff]
      %v308 = vld [vmem:[%s1 + $0x130] sm:$0xff]
      %v309 = vld [vmem:[%s1 + $0x138] sm:$0xff]
      %v310 = vld [vmem:[%s1 + $0x140] sm:$0xff]
      %v311 = vld [vmem:[%s1 + $0x148] sm:$0xff]
      %v312 = vld [vmem:[%s1 + $0x150] sm:$0xff]
      %v313 = vld [vmem:[%s1 + $0x158] sm:$0xff]
      %v314 = vld [vmem:[%s1 + $0x160] sm:$0xff]
      %v315 = vld [vmem:[%s1 + $0x168] sm:$0xff]
      %v316 = vld [vmem:[%s1 + $0x170] sm:$0xff]
      %v317 = vld [vmem:[%s1 + $0x178] sm:$0xff]
      %v318 = vld [vmem:[%s1 + $0x180] sm:$0xff]
      %v319 = vld [vmem:[%s1 + $0x188] sm:$0xff]
      %v320 = vld [vmem:[%s1 + $0x190] sm:$0xff]
      %v321 = vld [vmem:[%s1 + $0x198] sm:$0xff]
      %v322 = vld [vmem:[%s1 + $0x1a0] sm:$0xff]
      %v323 = vld [vmem:[%s1 + $0x1a8] sm:$0xff]
      %v324 = vld [vmem:[%s1 + $0x1b0] sm:$0xff]
      %v325 = vld [vmem:[%s1 + $0x1b8] sm:$0xff]
      %v326 = vld [vmem:[%s1 + $0x1c0] sm:$0xff]
      %v327 = vld [vmem:[%s1 + $0x1c8] sm:$0xff]
      %v328 = vld [vmem:[%s1 + $0x1d0] sm:$0xff]
      %v329 = vld [vmem:[%s1 + $0x1d8] sm:$0xff]
      %v330 = vld [vmem:[%s1 + $0x1e0] sm:$0xff]
      %v331 = vld [vmem:[%s1 + $0x1e8] sm:$0xff]
      %v332 = vld [vmem:[%s1 + $0x1f0] sm:$0xff]
      %v333 = vld [vmem:[%s1 + $0x1f8] sm:$0xff]
      %v334 = vld [vmem:[%s1 + $0x200] sm:$0xff]
      %v335 = vld [vmem:[%s1 + $0x208] sm:$0xff]
      %v336 = vld [vmem:[%s1 + $0x210] sm:$0xff]
      %v337 = vld [vmem:[%s1 + $0x218] sm:$0xff]
      %v338 = vld [vmem:[%s1 + $0x220] sm:$0xff]
      %v339 = vld [vmem:[%s1 + $0x228] sm:$0xff]
      %v340 = vld [vmem:[%s1 + $0x230] sm:$0xff]
      %v341 = vld [vmem:[%s1 + $0x238] sm:$0xff]
      %v342 = vld [vmem:[%s1 + $0x240] sm:$0xff]
      %v343 = vld [vmem:[%s1 + $0x248] sm:$0xff]
      %v344 = vld [vmem:[%s1 + $0x250] sm:$0xff]
      %v345 = vld [vmem:[%s1 + $0x258] sm:$0xff]
      %v346 = vld [vmem:[%s1 + $0x260] sm:$0xff]
      %v347 = vld [vmem:[%s1 + $0x268] sm:$0xff]
      %v348 = vld [vmem:[%s1 + $0x270] sm:$0xff]
      %v349 = vld [vmem:[%s1 + $0x278] sm:$0xff]
      %v350 = vld [vmem:[%s1 + $0x280] sm:$0xff]
      %v351 = vld [vmem:[%s1 + $0x288] sm:$0xff]
      %v352 = vld [vmem:[%s1 + $0x290] sm:$0xff]
      %v353 = vld [vmem:[%s1 + $0x298] sm:$0xff]
      %v354 = vld [vmem:[%s1 + $0x2a0] sm:$0xff]
      %v355 = vld [vmem:[%s1 + $0x2a8] sm:$0xff]
      %v356 = vld [vmem:[%s1 + $0x2b0] sm:$0xff]
      %v357 = vld [vmem:[%s1 + $0x2b8] sm:$0xff]
      %v358 = vld [vmem:[%s1 + $0x2c0] sm:$0xff]
      %v359 = vld [vmem:[%s1 + $0x2c8] sm:$0xff]
      %v360 = vld [vmem:[%s1 + $0x2d0] sm:$0xff]
      %v361 = vld [vmem:[%s1 + $0x2d8] sm:$0xff]
      %v362 = vld [vmem:[%s1 + $0x2e0] sm:$0xff]
      %v363 = vld [vmem:[%s1 + $0x2e8] sm:$0xff]
      %v364 = vld [vmem:[%s1 + $0x2f0] sm:$0xff]
      %v365 = vld [vmem:[%s1 + $0x2f8] sm:$0xff]
      %v366 = vld [vmem:[%s1 + $0x300] sm:$0xff]
      %v367 = vld [vmem:[%s1 + $0x308] sm:$0xff]
      %v368 = vld [vmem:[%s1 + $0x310] sm:$0xff]
      %v369 = vld [vmem:[%s1 + $0x318] sm:$0xff]
      %v370 = vld [vmem:[%s1 + $0x320] sm:$0xff]
      %v371 = vld [vmem:[%s1 + $0x328] sm:$0xff]
      %v372 = vld [vmem:[%s1 + $0x330] sm:$0xff]
      %v373 = vld [vmem:[%s1 + $0x338] sm:$0xff]
      %v374 = vld [vmem:[%s1 + $0x340] sm:$0xff]
      %v375 = vld [vmem:[%s1 + $0x348] sm:$0xff]
      %v376 = vld [vmem:[%s1 + $0x350] sm:$0xff]
      %v377 = vld [vmem:[%s1 + $0x358] sm:$0xff]
      %v378 = vld [vmem:[%s1 + $0x360] sm:$0xff]
      %v379 = vld [vmem:[%s1 + $0x368] sm:$0xff]
      %v380 = vld [vmem:[%s1 + $0x370] sm:$0xff]
      %v381 = vld [vmem:[%s1 + $0x378] sm:$0xff]
      %v382 = vld [vmem:[%s1 + $0x380] sm:$0xff]
      %v383 = vld [vmem:[%s1 + $0x388] sm:$0xff]
      %v384 = vld [vmem:[%s1 + $0x390] sm:$0xff]
      %v385 = vld [vmem:[%s1 + $0x398] sm:$0xff]
      %v386 = vld [vmem:[%s1 + $0x3a0] sm:$0xff]
      %v387 = vld [vmem:[%s1 + $0x3a8] sm:$0xff]
      %v388 = vld [vmem:[%s1 + $0x3b0] sm:$0xff]
      %v389 = vld [vmem:[%s1 + $0x3b8] sm:$0xff]
      %v390 = vld [vmem:[%s1 + $0x3c0] sm:$0xff]
      %v391 = vld [vmem:[%s1 + $0x3c8] sm:$0xff]
      %v392 = vld [vmem:[%s1 + $0x3d0] sm:$0xff]
      %v393 = vld [vmem:[%s1 + $0x3d8] sm:$0xff]
      %v394 = vld [vmem:[%s1 + $0x3e0] sm:$0xff]
      %v395 = vld [vmem:[%s1 + $0x3e8] sm:$0xff]
      %v396 = vld [vmem:[%s1 + $0x3f0] sm:$0xff]
      %v397 = vld [vmem:[%s1 + $0x3f8] sm:$0xff]
      %v398 = vld [vmem:[%s2] sm:$0x3]
      %v400 = vlaneseq
      %v401 = vshrl.u32 %v400, 7
      %v402 = vsub.s32 0, %v401
      %v403 = vrot.slane %v398, %v402
      %v404 = vlaneseq
      %v405 = vshrl.u32 %v404, 7
      %v406 = vsub.s32 1, %v405
      %v407 = vrot.slane %v398, %v406
      %v474 = vunpack.c.l.b16 %v206
      %v475 = vunpack.c.h.b16 %v206
      %v476 = vunpack.c.l.b16 %v207
      %v477 = vunpack.c.h.b16 %v207
      %v478 = vunpack.c.l.b16 %v208
      %v479 = vunpack.c.h.b16 %v208
      %v480 = vunpack.c.l.b16 %v209
      %v481 = vunpack.c.h.b16 %v209
      %v482 = vunpack.c.l.b16 %v210
      %v483 = vunpack.c.h.b16 %v210
      %v484 = vunpack.c.l.b16 %v211
      %v485 = vunpack.c.h.b16 %v211
      %v486 = vunpack.c.l.b16 %v212
      %v487 = vunpack.c.h.b16 %v212
      %v488 = vunpack.c.l.b16 %v213
      %v489 = vunpack.c.h.b16 %v213
      %v490 = vunpack.c.l.b16 %v214
      %v491 = vunpack.c.h.b16 %v214
      %v492 = vunpack.c.l.b16 %v215
      %v493 = vunpack.c.h.b16 %v215
      %v494 = vunpack.c.l.b16 %v216
      %v495 = vunpack.c.h.b16 %v216
      %v496 = vunpack.c.l.b16 %v217
      %v497 = vunpack.c.h.b16 %v217
      %v498 = vunpack.c.l.b16 %v218
      %v499 = vunpack.c.h.b16 %v218
      %v500 = vunpack.c.l.b16 %v219
      %v501 = vunpack.c.h.b16 %v219
      %v502 = vunpack.c.l.b16 %v220
      %v503 = vunpack.c.h.b16 %v220
      %v504 = vunpack.c.l.b16 %v221
      %v505 = vunpack.c.h.b16 %v221
      %v506 = vunpack.c.l.b16 %v222
      %v507 = vunpack.c.h.b16 %v222
      %v508 = vunpack.c.l.b16 %v223
      %v509 = vunpack.c.h.b16 %v223
      %v510 = vunpack.c.l.b16 %v224
      %v511 = vunpack.c.h.b16 %v224
      %v512 = vunpack.c.l.b16 %v225
      %v513 = vunpack.c.h.b16 %v225
      %v514 = vunpack.c.l.b16 %v226
      %v515 = vunpack.c.h.b16 %v226
      %v516 = vunpack.c.l.b16 %v227
      %v517 = vunpack.c.h.b16 %v227
      %v518 = vunpack.c.l.b16 %v228
      %v519 = vunpack.c.h.b16 %v228
      %v520 = vunpack.c.l.b16 %v229
      %v521 = vunpack.c.h.b16 %v229
      %v522 = vunpack.c.l.b16 %v230
      %v523 = vunpack.c.h.b16 %v230
      %v524 = vunpack.c.l.b16 %v231
      %v525 = vunpack.c.h.b16 %v231
      %v526 = vunpack.c.l.b16 %v232
      %v527 = vunpack.c.h.b16 %v232
      %v528 = vunpack.c.l.b16 %v233
      %v529 = vunpack.c.h.b16 %v233
      %v530 = vunpack.c.l.b16 %v234
      %v531 = vunpack.c.h.b16 %v234
      %v532 = vunpack.c.l.b16 %v235
      %v533 = vunpack.c.h.b16 %v235
      %v534 = vunpack.c.l.b16 %v236
      %v535 = vunpack.c.h.b16 %v236
      %v536 = vunpack.c.l.b16 %v237
      %v537 = vunpack.c.h.b16 %v237
      %v538 = vunpack.c.l.b16 %v238
      %v539 = vunpack.c.h.b16 %v238
      %v540 = vunpack.c.l.b16 %v239
      %v541 = vunpack.c.h.b16 %v239
      %v542 = vunpack.c.l.b16 %v240
      %v543 = vunpack.c.h.b16 %v240
      %v544 = vunpack.c.l.b16 %v241
      %v545 = vunpack.c.h.b16 %v241
      %v546 = vunpack.c.l.b16 %v242
      %v547 = vunpack.c.h.b16 %v242
      %v548 = vunpack.c.l.b16 %v243
      %v549 = vunpack.c.h.b16 %v243
      %v550 = vunpack.c.l.b16 %v244
      %v551 = vunpack.c.h.b16 %v244
      %v552 = vunpack.c.l.b16 %v245
      %v553 = vunpack.c.h.b16 %v245
      %v554 = vunpack.c.l.b16 %v246
      %v555 = vunpack.c.h.b16 %v246
      %v556 = vunpack.c.l.b16 %v247
      %v557 = vunpack.c.h.b16 %v247
      %v558 = vunpack.c.l.b16 %v248
      %v559 = vunpack.c.h.b16 %v248
      %v560 = vunpack.c.l.b16 %v249
      %v561 = vunpack.c.h.b16 %v249
      %v562 = vunpack.c.l.b16 %v250
      %v563 = vunpack.c.h.b16 %v250
      %v564 = vunpack.c.l.b16 %v251
      %v565 = vunpack.c.h.b16 %v251
      %v566 = vunpack.c.l.b16 %v252
      %v567 = vunpack.c.h.b16 %v252
      %v568 = vunpack.c.l.b16 %v253
      %v569 = vunpack.c.h.b16 %v253
      %v570 = vunpack.c.l.b16 %v254
      %v571 = vunpack.c.h.b16 %v254
      %v572 = vunpack.c.l.b16 %v255
      %v573 = vunpack.c.h.b16 %v255
      %v574 = vunpack.c.l.b16 %v256
      %v575 = vunpack.c.h.b16 %v256
      %v576 = vunpack.c.l.b16 %v257
      %v577 = vunpack.c.h.b16 %v257
      %v578 = vunpack.c.l.b16 %v258
      %v579 = vunpack.c.h.b16 %v258
      %v580 = vunpack.c.l.b16 %v259
      %v581 = vunpack.c.h.b16 %v259
      %v582 = vunpack.c.l.b16 %v260
      %v583 = vunpack.c.h.b16 %v260
      %v584 = vunpack.c.l.b16 %v261
      %v585 = vunpack.c.h.b16 %v261
      %v586 = vunpack.c.l.b16 %v262
      %v587 = vunpack.c.h.b16 %v262
      %v588 = vunpack.c.l.b16 %v263
      %v589 = vunpack.c.h.b16 %v263
      %v590 = vunpack.c.l.b16 %v264
      %v591 = vunpack.c.h.b16 %v264
      %v592 = vunpack.c.l.b16 %v265
      %v593 = vunpack.c.h.b16 %v265
      %v594 = vunpack.c.l.b16 %v266
      %v595 = vunpack.c.h.b16 %v266
      %v596 = vunpack.c.l.b16 %v267
      %v597 = vunpack.c.h.b16 %v267
      %v598 = vunpack.c.l.b16 %v268
      %v599 = vunpack.c.h.b16 %v268
      %v600 = vunpack.c.l.b16 %v269
      %v601 = vunpack.c.h.b16 %v269
      %v602 = vpack.c.b16 %v482, %v474
      %v603 = vpack.c.b16 %v483, %v475
      %v604 = vpack.c.b16 %v484, %v476
      %v605 = vpack.c.b16 %v485, %v477
      %v606 = vpack.c.b16 %v486, %v478
      %v607 = vpack.c.b16 %v487, %v479
      %v608 = vpack.c.b16 %v488, %v480
      %v609 = vpack.c.b16 %v489, %v481
      %v610 = vpack.c.b16 %v498, %v490
      %v611 = vpack.c.b16 %v499, %v491
      %v612 = vpack.c.b16 %v500, %v492
      %v613 = vpack.c.b16 %v501, %v493
      %v614 = vpack.c.b16 %v502, %v494
      %v615 = vpack.c.b16 %v503, %v495
      %v616 = vpack.c.b16 %v504, %v496
      %v617 = vpack.c.b16 %v505, %v497
      %v618 = vpack.c.b16 %v514, %v506
      %v619 = vpack.c.b16 %v515, %v507
      %v620 = vpack.c.b16 %v516, %v508
      %v621 = vpack.c.b16 %v517, %v509
      %v622 = vpack.c.b16 %v518, %v510
      %v623 = vpack.c.b16 %v519, %v511
      %v624 = vpack.c.b16 %v520, %v512
      %v625 = vpack.c.b16 %v521, %v513
      %v626 = vpack.c.b16 %v530, %v522
      %v627 = vpack.c.b16 %v531, %v523
      %v628 = vpack.c.b16 %v532, %v524
      %v629 = vpack.c.b16 %v533, %v525
      %v630 = vpack.c.b16 %v534, %v526
      %v631 = vpack.c.b16 %v535, %v527
      %v632 = vpack.c.b16 %v536, %v528
      %v633 = vpack.c.b16 %v537, %v529
      %v634 = vpack.c.b16 %v546, %v538
      %v635 = vpack.c.b16 %v547, %v539
      %v636 = vpack.c.b16 %v548, %v540
      %v637 = vpack.c.b16 %v549, %v541
      %v638 = vpack.c.b16 %v550, %v542
      %v639 = vpack.c.b16 %v551, %v543
      %v640 = vpack.c.b16 %v552, %v544
      %v641 = vpack.c.b16 %v553, %v545
      %v642 = vpack.c.b16 %v562, %v554
      %v643 = vpack.c.b16 %v563, %v555
      %v644 = vpack.c.b16 %v564, %v556
      %v645 = vpack.c.b16 %v565, %v557
      %v646 = vpack.c.b16 %v566, %v558
      %v647 = vpack.c.b16 %v567, %v559
      %v648 = vpack.c.b16 %v568, %v560
      %v649 = vpack.c.b16 %v569, %v561
      %v650 = vpack.c.b16 %v578, %v570
      %v651 = vpack.c.b16 %v579, %v571
      %v652 = vpack.c.b16 %v580, %v572
      %v653 = vpack.c.b16 %v581, %v573
      %v654 = vpack.c.b16 %v582, %v574
      %v655 = vpack.c.b16 %v583, %v575
      %v656 = vpack.c.b16 %v584, %v576
      %v657 = vpack.c.b16 %v585, %v577
      %v658 = vpack.c.b16 %v594, %v586
      %v659 = vpack.c.b16 %v595, %v587
      %v660 = vpack.c.b16 %v596, %v588
      %v661 = vpack.c.b16 %v597, %v589
      %v662 = vpack.c.b16 %v598, %v590
      %v663 = vpack.c.b16 %v599, %v591
      %v664 = vpack.c.b16 %v600, %v592
      %v665 = vpack.c.b16 %v601, %v593
      %v858 = vunpack.c.l.b16 %v270
      %v859 = vunpack.c.h.b16 %v270
      %v860 = vunpack.c.l.b16 %v271
      %v861 = vunpack.c.h.b16 %v271
      %v862 = vunpack.c.l.b16 %v272
      %v863 = vunpack.c.h.b16 %v272
      %v864 = vunpack.c.l.b16 %v273
      %v865 = vunpack.c.h.b16 %v273
      %v866 = vunpack.c.l.b16 %v274
      %v867 = vunpack.c.h.b16 %v274
      %v868 = vunpack.c.l.b16 %v275
      %v869 = vunpack.c.h.b16 %v275
      %v870 = vunpack.c.l.b16 %v276
      %v871 = vunpack.c.h.b16 %v276
      %v872 = vunpack.c.l.b16 %v277
      %v873 = vunpack.c.h.b16 %v277
      %v874 = vunpack.c.l.b16 %v278
      %v875 = vunpack.c.h.b16 %v278
      %v876 = vunpack.c.l.b16 %v279
      %v877 = vunpack.c.h.b16 %v279
      %v878 = vunpack.c.l.b16 %v280
      %v879 = vunpack.c.h.b16 %v280
      %v880 = vunpack.c.l.b16 %v281
      %v881 = vunpack.c.h.b16 %v281
      %v882 = vunpack.c.l.b16 %v282
      %v883 = vunpack.c.h.b16 %v282
      %v884 = vunpack.c.l.b16 %v283
      %v885 = vunpack.c.h.b16 %v283
      %v886 = vunpack.c.l.b16 %v284
      %v887 = vunpack.c.h.b16 %v284
      %v888 = vunpack.c.l.b16 %v285
      %v889 = vunpack.c.h.b16 %v285
      %v890 = vunpack.c.l.b16 %v286
      %v891 = vunpack.c.h.b16 %v286
      %v892 = vunpack.c.l.b16 %v287
      %v893 = vunpack.c.h.b16 %v287
      %v894 = vunpack.c.l.b16 %v288
      %v895 = vunpack.c.h.b16 %v288
      %v896 = vunpack.c.l.b16 %v289
      %v897 = vunpack.c.h.b16 %v289
      %v898 = vunpack.c.l.b16 %v290
      %v899 = vunpack.c.h.b16 %v290
      %v900 = vunpack.c.l.b16 %v291
      %v901 = vunpack.c.h.b16 %v291
      %v902 = vunpack.c.l.b16 %v292
      %v903 = vunpack.c.h.b16 %v292
      %v904 = vunpack.c.l.b16 %v293
      %v905 = vunpack.c.h.b16 %v293
      %v906 = vunpack.c.l.b16 %v294
      %v907 = vunpack.c.h.b16 %v294
      %v908 = vunpack.c.l.b16 %v295
      %v909 = vunpack.c.h.b16 %v295
      %v910 = vunpack.c.l.b16 %v296
      %v911 = vunpack.c.h.b16 %v296
      %v912 = vunpack.c.l.b16 %v297
      %v913 = vunpack.c.h.b16 %v297
      %v914 = vunpack.c.l.b16 %v298
      %v915 = vunpack.c.h.b16 %v298
      %v916 = vunpack.c.l.b16 %v299
      %v917 = vunpack.c.h.b16 %v299
      %v918 = vunpack.c.l.b16 %v300
      %v919 = vunpack.c.h.b16 %v300
      %v920 = vunpack.c.l.b16 %v301
      %v921 = vunpack.c.h.b16 %v301
      %v922 = vunpack.c.l.b16 %v302
      %v923 = vunpack.c.h.b16 %v302
      %v924 = vunpack.c.l.b16 %v303
      %v925 = vunpack.c.h.b16 %v303
      %v926 = vunpack.c.l.b16 %v304
      %v927 = vunpack.c.h.b16 %v304
      %v928 = vunpack.c.l.b16 %v305
      %v929 = vunpack.c.h.b16 %v305
      %v930 = vunpack.c.l.b16 %v306
      %v931 = vunpack.c.h.b16 %v306
      %v932 = vunpack.c.l.b16 %v307
      %v933 = vunpack.c.h.b16 %v307
      %v934 = vunpack.c.l.b16 %v308
      %v935 = vunpack.c.h.b16 %v308
      %v936 = vunpack.c.l.b16 %v309
      %v937 = vunpack.c.h.b16 %v309
      %v938 = vunpack.c.l.b16 %v310
      %v939 = vunpack.c.h.b16 %v310
      %v940 = vunpack.c.l.b16 %v311
      %v941 = vunpack.c.h.b16 %v311
      %v942 = vunpack.c.l.b16 %v312
      %v943 = vunpack.c.h.b16 %v312
      %v944 = vunpack.c.l.b16 %v313
      %v945 = vunpack.c.h.b16 %v313
      %v946 = vunpack.c.l.b16 %v314
      %v947 = vunpack.c.h.b16 %v314
      %v948 = vunpack.c.l.b16 %v315
      %v949 = vunpack.c.h.b16 %v315
      %v950 = vunpack.c.l.b16 %v316
      %v951 = vunpack.c.h.b16 %v316
      %v952 = vunpack.c.l.b16 %v317
      %v953 = vunpack.c.h.b16 %v317
      %v954 = vunpack.c.l.b16 %v318
      %v955 = vunpack.c.h.b16 %v318
      %v956 = vunpack.c.l.b16 %v319
      %v957 = vunpack.c.h.b16 %v319
      %v958 = vunpack.c.l.b16 %v320
      %v959 = vunpack.c.h.b16 %v320
      %v960 = vunpack.c.l.b16 %v321
      %v961 = vunpack.c.h.b16 %v321
      %v962 = vunpack.c.l.b16 %v322
      %v963 = vunpack.c.h.b16 %v322
      %v964 = vunpack.c.l.b16 %v323
      %v965 = vunpack.c.h.b16 %v323
      %v966 = vunpack.c.l.b16 %v324
      %v967 = vunpack.c.h.b16 %v324
      %v968 = vunpack.c.l.b16 %v325
      %v969 = vunpack.c.h.b16 %v325
      %v970 = vunpack.c.l.b16 %v326
      %v971 = vunpack.c.h.b16 %v326
      %v972 = vunpack.c.l.b16 %v327
      %v973 = vunpack.c.h.b16 %v327
      %v974 = vunpack.c.l.b16 %v328
      %v975 = vunpack.c.h.b16 %v328
      %v976 = vunpack.c.l.b16 %v329
      %v977 = vunpack.c.h.b16 %v329
      %v978 = vunpack.c.l.b16 %v330
      %v979 = vunpack.c.h.b16 %v330
      %v980 = vunpack.c.l.b16 %v331
      %v981 = vunpack.c.h.b16 %v331
      %v982 = vunpack.c.l.b16 %v332
      %v983 = vunpack.c.h.b16 %v332
      %v984 = vunpack.c.l.b16 %v333
      %v985 = vunpack.c.h.b16 %v333
      %v986 = vunpack.c.l.b16 %v334
      %v987 = vunpack.c.h.b16 %v334
      %v988 = vunpack.c.l.b16 %v335
      %v989 = vunpack.c.h.b16 %v335
      %v990 = vunpack.c.l.b16 %v336
      %v991 = vunpack.c.h.b16 %v336
      %v992 = vunpack.c.l.b16 %v337
      %v993 = vunpack.c.h.b16 %v337
      %v994 = vunpack.c.l.b16 %v338
      %v995 = vunpack.c.h.b16 %v338
      %v996 = vunpack.c.l.b16 %v339
      %v997 = vunpack.c.h.b16 %v339
      %v998 = vunpack.c.l.b16 %v340
      %v999 = vunpack.c.h.b16 %v340
      %v1000 = vunpack.c.l.b16 %v341
      %v1001 = vunpack.c.h.b16 %v341
      %v1002 = vunpack.c.l.b16 %v342
      %v1003 = vunpack.c.h.b16 %v342
      %v1004 = vunpack.c.l.b16 %v343
      %v1005 = vunpack.c.h.b16 %v343
      %v1006 = vunpack.c.l.b16 %v344
      %v1007 = vunpack.c.h.b16 %v344
      %v1008 = vunpack.c.l.b16 %v345
      %v1009 = vunpack.c.h.b16 %v345
      %v1010 = vunpack.c.l.b16 %v346
      %v1011 = vunpack.c.h.b16 %v346
      %v1012 = vunpack.c.l.b16 %v347
      %v1013 = vunpack.c.h.b16 %v347
      %v1014 = vunpack.c.l.b16 %v348
      %v1015 = vunpack.c.h.b16 %v348
      %v1016 = vunpack.c.l.b16 %v349
      %v1017 = vunpack.c.h.b16 %v349
      %v1018 = vunpack.c.l.b16 %v350
      %v1019 = vunpack.c.h.b16 %v350
      %v1020 = vunpack.c.l.b16 %v351
      %v1021 = vunpack.c.h.b16 %v351
      %v1022 = vunpack.c.l.b16 %v352
      %v1023 = vunpack.c.h.b16 %v352
      %v1024 = vunpack.c.l.b16 %v353
      %v1025 = vunpack.c.h.b16 %v353
      %v1026 = vunpack.c.l.b16 %v354
      %v1027 = vunpack.c.h.b16 %v354
      %v1028 = vunpack.c.l.b16 %v355
      %v1029 = vunpack.c.h.b16 %v355
      %v1030 = vunpack.c.l.b16 %v356
      %v1031 = vunpack.c.h.b16 %v356
      %v1032 = vunpack.c.l.b16 %v357
      %v1033 = vunpack.c.h.b16 %v357
      %v1034 = vunpack.c.l.b16 %v358
      %v1035 = vunpack.c.h.b16 %v358
      %v1036 = vunpack.c.l.b16 %v359
      %v1037 = vunpack.c.h.b16 %v359
      %v1038 = vunpack.c.l.b16 %v360
      %v1039 = vunpack.c.h.b16 %v360
      %v1040 = vunpack.c.l.b16 %v361
      %v1041 = vunpack.c.h.b16 %v361
      %v1042 = vunpack.c.l.b16 %v362
      %v1043 = vunpack.c.h.b16 %v362
      %v1044 = vunpack.c.l.b16 %v363
      %v1045 = vunpack.c.h.b16 %v363
      %v1046 = vunpack.c.l.b16 %v364
      %v1047 = vunpack.c.h.b16 %v364
      %v1048 = vunpack.c.l.b16 %v365
      %v1049 = vunpack.c.h.b16 %v365
      %v1050 = vunpack.c.l.b16 %v366
      %v1051 = vunpack.c.h.b16 %v366
      %v1052 = vunpack.c.l.b16 %v367
      %v1053 = vunpack.c.h.b16 %v367
      %v1054 = vunpack.c.l.b16 %v368
      %v1055 = vunpack.c.h.b16 %v368
      %v1056 = vunpack.c.l.b16 %v369
      %v1057 = vunpack.c.h.b16 %v369
      %v1058 = vunpack.c.l.b16 %v370
      %v1059 = vunpack.c.h.b16 %v370
      %v1060 = vunpack.c.l.b16 %v371
      %v1061 = vunpack.c.h.b16 %v371
      %v1062 = vunpack.c.l.b16 %v372
      %v1063 = vunpack.c.h.b16 %v372
      %v1064 = vunpack.c.l.b16 %v373
      %v1065 = vunpack.c.h.b16 %v373
      %v1066 = vunpack.c.l.b16 %v374
      %v1067 = vunpack.c.h.b16 %v374
      %v1068 = vunpack.c.l.b16 %v375
      %v1069 = vunpack.c.h.b16 %v375
      %v1070 = vunpack.c.l.b16 %v376
      %v1071 = vunpack.c.h.b16 %v376
      %v1072 = vunpack.c.l.b16 %v377
      %v1073 = vunpack.c.h.b16 %v377
      %v1074 = vunpack.c.l.b16 %v378
      %v1075 = vunpack.c.h.b16 %v378
      %v1076 = vunpack.c.l.b16 %v379
      %v1077 = vunpack.c.h.b16 %v379
      %v1078 = vunpack.c.l.b16 %v380
      %v1079 = vunpack.c.h.b16 %v380
      %v1080 = vunpack.c.l.b16 %v381
      %v1081 = vunpack.c.h.b16 %v381
      %v1082 = vunpack.c.l.b16 %v382
      %v1083 = vunpack.c.h.b16 %v382
      %v1084 = vunpack.c.l.b16 %v383
      %v1085 = vunpack.c.h.b16 %v383
      %v1086 = vunpack.c.l.b16 %v384
      %v1087 = vunpack.c.h.b16 %v384
      %v1088 = vunpack.c.l.b16 %v385
      %v1089 = vunpack.c.h.b16 %v385
      %v1090 = vunpack.c.l.b16 %v386
      %v1091 = vunpack.c.h.b16 %v386
      %v1092 = vunpack.c.l.b16 %v387
      %v1093 = vunpack.c.h.b16 %v387
      %v1094 = vunpack.c.l.b16 %v388
      %v1095 = vunpack.c.h.b16 %v388
      %v1096 = vunpack.c.l.b16 %v389
      %v1097 = vunpack.c.h.b16 %v389
      %v1098 = vunpack.c.l.b16 %v390
      %v1099 = vunpack.c.h.b16 %v390
      %v1100 = vunpack.c.l.b16 %v391
      %v1101 = vunpack.c.h.b16 %v391
      %v1102 = vunpack.c.l.b16 %v392
      %v1103 = vunpack.c.h.b16 %v392
      %v1104 = vunpack.c.l.b16 %v393
      %v1105 = vunpack.c.h.b16 %v393
      %v1106 = vunpack.c.l.b16 %v394
      %v1107 = vunpack.c.h.b16 %v394
      %v1108 = vunpack.c.l.b16 %v395
      %v1109 = vunpack.c.h.b16 %v395
      %v1110 = vunpack.c.l.b16 %v396
      %v1111 = vunpack.c.h.b16 %v396
      %v1112 = vunpack.c.l.b16 %v397
      %v1113 = vunpack.c.h.b16 %v397
      %v1114 = vpack.c.b16 %v860, %v858
      %v1115 = vpack.c.b16 %v861, %v859
      %v1116 = vpack.c.b16 %v864, %v862
      %v1117 = vpack.c.b16 %v865, %v863
      %v1118 = vpack.c.b16 %v868, %v866
      %v1119 = vpack.c.b16 %v869, %v867
      %v1120 = vpack.c.b16 %v872, %v870
      %v1121 = vpack.c.b16 %v873, %v871
      %v1122 = vpack.c.b16 %v876, %v874
      %v1123 = vpack.c.b16 %v877, %v875
      %v1124 = vpack.c.b16 %v880, %v878
      %v1125 = vpack.c.b16 %v881, %v879
      %v1126 = vpack.c.b16 %v884, %v882
      %v1127 = vpack.c.b16 %v885, %v883
      %v1128 = vpack.c.b16 %v888, %v886
      %v1129 = vpack.c.b16 %v889, %v887
      %v1130 = vpack.c.b16 %v892, %v890
      %v1131 = vpack.c.b16 %v893, %v891
      %v1132 = vpack.c.b16 %v896, %v894
      %v1133 = vpack.c.b16 %v897, %v895
      %v1134 = vpack.c.b16 %v900, %v898
      %v1135 = vpack.c.b16 %v901, %v899
      %v1136 = vpack.c.b16 %v904, %v902
      %v1137 = vpack.c.b16 %v905, %v903
      %v1138 = vpack.c.b16 %v908, %v906
      %v1139 = vpack.c.b16 %v909, %v907
      %v1140 = vpack.c.b16 %v912, %v910
      %v1141 = vpack.c.b16 %v913, %v911
      %v1142 = vpack.c.b16 %v916, %v914
      %v1143 = vpack.c.b16 %v917, %v915
      %v1144 = vpack.c.b16 %v920, %v918
      %v1145 = vpack.c.b16 %v921, %v919
      %v1146 = vpack.c.b16 %v924, %v922
      %v1147 = vpack.c.b16 %v925, %v923
      %v1148 = vpack.c.b16 %v928, %v926
      %v1149 = vpack.c.b16 %v929, %v927
      %v1150 = vpack.c.b16 %v932, %v930
      %v1151 = vpack.c.b16 %v933, %v931
      %v1152 = vpack.c.b16 %v936, %v934
      %v1153 = vpack.c.b16 %v937, %v935
      %v1154 = vpack.c.b16 %v940, %v938
      %v1155 = vpack.c.b16 %v941, %v939
      %v1156 = vpack.c.b16 %v944, %v942
      %v1157 = vpack.c.b16 %v945, %v943
      %v1158 = vpack.c.b16 %v948, %v946
      %v1159 = vpack.c.b16 %v949, %v947
      %v1160 = vpack.c.b16 %v952, %v950
      %v1161 = vpack.c.b16 %v953, %v951
      %v1162 = vpack.c.b16 %v956, %v954
      %v1163 = vpack.c.b16 %v957, %v955
      %v1164 = vpack.c.b16 %v960, %v958
      %v1165 = vpack.c.b16 %v961, %v959
      %v1166 = vpack.c.b16 %v964, %v962
      %v1167 = vpack.c.b16 %v965, %v963
      %v1168 = vpack.c.b16 %v968, %v966
      %v1169 = vpack.c.b16 %v969, %v967
      %v1170 = vpack.c.b16 %v972, %v970
      %v1171 = vpack.c.b16 %v973, %v971
      %v1172 = vpack.c.b16 %v976, %v974
      %v1173 = vpack.c.b16 %v977, %v975
      %v1174 = vpack.c.b16 %v980, %v978
      %v1175 = vpack.c.b16 %v981, %v979
      %v1176 = vpack.c.b16 %v984, %v982
      %v1177 = vpack.c.b16 %v985, %v983
      %v1178 = vpack.c.b16 %v988, %v986
      %v1179 = vpack.c.b16 %v989, %v987
      %v1180 = vpack.c.b16 %v992, %v990
      %v1181 = vpack.c.b16 %v993, %v991
      %v1182 = vpack.c.b16 %v996, %v994
      %v1183 = vpack.c.b16 %v997, %v995
      %v1184 = vpack.c.b16 %v1000, %v998
      %v1185 = vpack.c.b16 %v1001, %v999
      %v1186 = vpack.c.b16 %v1004, %v1002
      %v1187 = vpack.c.b16 %v1005, %v1003
      %v1188 = vpack.c.b16 %v1008, %v1006
      %v1189 = vpack.c.b16 %v1009, %v1007
      %v1190 = vpack.c.b16 %v1012, %v1010
      %v1191 = vpack.c.b16 %v1013, %v1011
      %v1192 = vpack.c.b16 %v1016, %v1014
      %v1193 = vpack.c.b16 %v1017, %v1015
      %v1194 = vpack.c.b16 %v1020, %v1018
      %v1195 = vpack.c.b16 %v1021, %v1019
      %v1196 = vpack.c.b16 %v1024, %v1022
      %v1197 = vpack.c.b16 %v1025, %v1023
      %v1198 = vpack.c.b16 %v1028, %v1026
      %v1199 = vpack.c.b16 %v1029, %v1027
      %v1200 = vpack.c.b16 %v1032, %v1030
      %v1201 = vpack.c.b16 %v1033, %v1031
      %v1202 = vpack.c.b16 %v1036, %v1034
      %v1203 = vpack.c.b16 %v1037, %v1035
      %v1204 = vpack.c.b16 %v1040, %v1038
      %v1205 = vpack.c.b16 %v1041, %v1039
      %v1206 = vpack.c.b16 %v1044, %v1042
      %v1207 = vpack.c.b16 %v1045, %v1043
      %v1208 = vpack.c.b16 %v1048, %v1046
      %v1209 = vpack.c.b16 %v1049, %v1047
      %v1210 = vpack.c.b16 %v1052, %v1050
      %v1211 = vpack.c.b16 %v1053, %v1051
      %v1212 = vpack.c.b16 %v1056, %v1054
      %v1213 = vpack.c.b16 %v1057, %v1055
      %v1214 = vpack.c.b16 %v1060, %v1058
      %v1215 = vpack.c.b16 %v1061, %v1059
      %v1216 = vpack.c.b16 %v1064, %v1062
      %v1217 = vpack.c.b16 %v1065, %v1063
      %v1218 = vpack.c.b16 %v1068, %v1066
      %v1219 = vpack.c.b16 %v1069, %v1067
      %v1220 = vpack.c.b16 %v1072, %v1070
      %v1221 = vpack.c.b16 %v1073, %v1071
      %v1222 = vpack.c.b16 %v1076, %v1074
      %v1223 = vpack.c.b16 %v1077, %v1075
      %v1224 = vpack.c.b16 %v1080, %v1078
      %v1225 = vpack.c.b16 %v1081, %v1079
      %v1226 = vpack.c.b16 %v1084, %v1082
      %v1227 = vpack.c.b16 %v1085, %v1083
      %v1228 = vpack.c.b16 %v1088, %v1086
      %v1229 = vpack.c.b16 %v1089, %v1087
      %v1230 = vpack.c.b16 %v1092, %v1090
      %v1231 = vpack.c.b16 %v1093, %v1091
      %v1232 = vpack.c.b16 %v1096, %v1094
      %v1233 = vpack.c.b16 %v1097, %v1095
      %v1234 = vpack.c.b16 %v1100, %v1098
      %v1235 = vpack.c.b16 %v1101, %v1099
      %v1236 = vpack.c.b16 %v1104, %v1102
      %v1237 = vpack.c.b16 %v1105, %v1103
      %v1238 = vpack.c.b16 %v1108, %v1106
      %v1239 = vpack.c.b16 %v1109, %v1107
      %v1240 = vpack.c.b16 %v1112, %v1110
      %v1241 = vpack.c.b16 %v1113, %v1111
      %1370 = vmatprep.subr.bf16.mxu0 %v1129
      %1371 = vmatpush1.bf16.msra.mxu0 %v1128
      %1372 = vmatprep.subr.bf16.mxu0 %v1127
      %1373 = vmatpush1.bf16.msra.mxu0 %v1126
      %1374 = vmatprep.subr.bf16.mxu0 %v1125
      %1375 = vmatpush1.bf16.msra.mxu0 %v1124
      %1376 = vmatprep.subr.bf16.mxu0 %v1123
      %1377 = vmatpush1.bf16.msra.mxu0 %v1122
      %1378 = vmatprep.subr.bf16.mxu0 %v1121
      %1379 = vmatpush1.bf16.msra.mxu0 %v1120
      %1380 = vmatprep.subr.bf16.mxu0 %v1119
      %1381 = vmatpush1.bf16.msra.mxu0 %v1118
      %1382 = vmatprep.subr.bf16.mxu0 %v1117
      %1383 = vmatpush1.bf16.msra.mxu0 %v1116
      %1384 = vmatprep.subr.bf16.mxu0 %v1115
      %1385 = vmatpush1.bf16.msra.mxu0 %v1114
      %1386 = vmatprep.subr.bf16.mxu0 %v1145
      %1387 = vmatpush2.bf16.msra.mxu0 %v1144
      %1388 = vmatprep.subr.bf16.mxu0 %v1143
      %1389 = vmatpush2.bf16.msra.mxu0 %v1142
      %1390 = vmatprep.subr.bf16.mxu0 %v1141
      %1391 = vmatpush2.bf16.msra.mxu0 %v1140
      %1392 = vmatprep.subr.bf16.mxu0 %v1139
      %1393 = vmatpush2.bf16.msra.mxu0 %v1138
      %1394 = vmatprep.subr.bf16.mxu0 %v1137
      %1395 = vmatpush2.bf16.msra.mxu0 %v1136
      %1396 = vmatprep.subr.bf16.mxu0 %v1135
      %1397 = vmatpush2.bf16.msra.mxu0 %v1134
      %1398 = vmatprep.subr.bf16.mxu0 %v1133
      %1399 = vmatpush2.bf16.msra.mxu0 %v1132
      %1400 = vmatprep.subr.bf16.mxu0 %v1131
      %1401 = vmatpush2.bf16.msra.mxu0 %v1130
      %1402 = vmatprep.mubr.bf16.mxu0 %v603
      %1403 = vmatmul.mubr.bf16.gmra.mxu0 %v602
      %v1404 = vpop.f32.mrf.mxu0
      %v1405 = vadd.f32 %v403, %v1404
      %v1406 = vpop.f32.mrf.mxu0
      %v1407 = vadd.f32 %v407, %v1406
      %v1408 = vpop.f32.mrf.mxu0
      %v1409 = vadd.f32 %v403, %v1408
      %v1410 = vpop.f32.mrf.mxu0
      %v1411 = vadd.f32 %v407, %v1410
      %1412 = vmatprep.mubr.bf16.mxu0 %v611
      %1413 = vmatmul.mubr.bf16.gmra.mxu0 %v610
      %v1414 = vpop.f32.mrf.mxu0
      %v1415 = vadd.f32 %v403, %v1414
      %v1416 = vpop.f32.mrf.mxu0
      %v1417 = vadd.f32 %v407, %v1416
      %v1418 = vpop.f32.mrf.mxu0
      %v1419 = vadd.f32 %v403, %v1418
      %v1420 = vpop.f32.mrf.mxu0
      %v1421 = vadd.f32 %v407, %v1420
      %1422 = vmatprep.mubr.bf16.mxu0 %v619
      %1423 = vmatmul.mubr.bf16.gmra.mxu0 %v618
      %v1424 = vpop.f32.mrf.mxu0
      %v1425 = vadd.f32 %v403, %v1424
      %v1426 = vpop.f32.mrf.mxu0
      %v1427 = vadd.f32 %v407, %v1426
      %v1428 = vpop.f32.mrf.mxu0
      %v1429 = vadd.f32 %v403, %v1428
      %v1430 = vpop.f32.mrf.mxu0
      %v1431 = vadd.f32 %v407, %v1430
      %1432 = vmatprep.mubr.bf16.mxu0 %v627
      %1433 = vmatmul.mubr.bf16.gmra.mxu0 %v626
      %v1434 = vpop.f32.mrf.mxu0
      %v1435 = vadd.f32 %v403, %v1434
      %v1436 = vpop.f32.mrf.mxu0
      %v1437 = vadd.f32 %v407, %v1436
      %v1438 = vpop.f32.mrf.mxu0
      %v1439 = vadd.f32 %v403, %v1438
      %v1440 = vpop.f32.mrf.mxu0
      %v1441 = vadd.f32 %v407, %v1440
      %1442 = vmatprep.mubr.bf16.mxu0 %v635
      %1443 = vmatmul.mubr.bf16.gmra.mxu0 %v634
      %v1444 = vpop.f32.mrf.mxu0
      %v1445 = vadd.f32 %v403, %v1444
      %v1446 = vpop.f32.mrf.mxu0
      %v1447 = vadd.f32 %v407, %v1446
      %v1448 = vpop.f32.mrf.mxu0
      %v1449 = vadd.f32 %v403, %v1448
      %v1450 = vpop.f32.mrf.mxu0
      %v1451 = vadd.f32 %v407, %v1450
      %1452 = vmatprep.mubr.bf16.mxu0 %v643
      %1453 = vmatmul.mubr.bf16.gmra.mxu0 %v642
      %v1454 = vpop.f32.mrf.mxu0
      %v1455 = vadd.f32 %v403, %v1454
      %v1456 = vpop.f32.mrf.mxu0
      %v1457 = vadd.f32 %v407, %v1456
      %v1458 = vpop.f32.mrf.mxu0
      %v1459 = vadd.f32 %v403, %v1458
      %v1460 = vpop.f32.mrf.mxu0
      %v1461 = vadd.f32 %v407, %v1460
      %1462 = vmatprep.mubr.bf16.mxu0 %v651
      %1463 = vmatmul.mubr.bf16.gmra.mxu0 %v650
      %v1464 = vpop.f32.mrf.mxu0
      %v1465 = vadd.f32 %v403, %v1464
      %v1466 = vpop.f32.mrf.mxu0
      %v1467 = vadd.f32 %v407, %v1466
      %v1468 = vpop.f32.mrf.mxu0
      %v1469 = vadd.f32 %v403, %v1468
      %v1470 = vpop.f32.mrf.mxu0
      %v1471 = vadd.f32 %v407, %v1470
      %1472 = vmatprep.mubr.bf16.mxu0 %v659
      %1473 = vmatmul.mubr.bf16.gmra.mxu0 %v658
      %v1474 = vpop.f32.mrf.mxu0
      %v1475 = vadd.f32 %v403, %v1474
      %v1476 = vpop.f32.mrf.mxu0
      %v1477 = vadd.f32 %v407, %v1476
      %v1478 = vpop.f32.mrf.mxu0
      %v1479 = vadd.f32 %v403, %v1478
      %v1480 = vpop.f32.mrf.mxu0
      %v1481 = vadd.f32 %v407, %v1480
      %1482 = vdwg.mxu0
      %1483 = vmatprep.subr.bf16.mxu0 %v1161
      %1484 = vmatpush1.bf16.msra.mxu0 %v1160
      %1485 = vmatprep.subr.bf16.mxu0 %v1159
      %1486 = vmatpush1.bf16.msra.mxu0 %v1158
      %1487 = vmatprep.subr.bf16.mxu0 %v1157
      %1488 = vmatpush1.bf16.msra.mxu0 %v1156
      %1489 = vmatprep.subr.bf16.mxu0 %v1155
      %1490 = vmatpush1.bf16.msra.mxu0 %v1154
      %1491 = vmatprep.subr.bf16.mxu0 %v1153
      %1492 = vmatpush1.bf16.msra.mxu0 %v1152
      %1493 = vmatprep.subr.bf16.mxu0 %v1151
      %1494 = vmatpush1.bf16.msra.mxu0 %v1150
      %1495 = vmatprep.subr.bf16.mxu0 %v1149
      %1496 = vmatpush1.bf16.msra.mxu0 %v1148
      %1497 = vmatprep.subr.bf16.mxu0 %v1147
      %1498 = vmatpush1.bf16.msra.mxu0 %v1146
      %1499 = vmatprep.subr.bf16.mxu0 %v1177
      %1500 = vmatpush2.bf16.msra.mxu0 %v1176
      %1501 = vmatprep.subr.bf16.mxu0 %v1175
      %1502 = vmatpush2.bf16.msra.mxu0 %v1174
      %1503 = vmatprep.subr.bf16.mxu0 %v1173
      %1504 = vmatpush2.bf16.msra.mxu0 %v1172
      %1505 = vmatprep.subr.bf16.mxu0 %v1171
      %1506 = vmatpush2.bf16.msra.mxu0 %v1170
      %1507 = vmatprep.subr.bf16.mxu0 %v1169
      %1508 = vmatpush2.bf16.msra.mxu0 %v1168
      %1509 = vmatprep.subr.bf16.mxu0 %v1167
      %1510 = vmatpush2.bf16.msra.mxu0 %v1166
      %1511 = vmatprep.subr.bf16.mxu0 %v1165
      %1512 = vmatpush2.bf16.msra.mxu0 %v1164
      %1513 = vmatprep.subr.bf16.mxu0 %v1163
      %1514 = vmatpush2.bf16.msra.mxu0 %v1162
      %1515 = vmatprep.mubr.bf16.mxu0 %v605
      %1516 = vmatmul.mubr.bf16.gmra.mxu0 %v604
      %v1517 = vpop.f32.mrf.mxu0
      %v1518 = vadd.f32 %v1405, %v1517
      %v1519 = vpop.f32.mrf.mxu0
      %v1520 = vadd.f32 %v1407, %v1519
      %v1521 = vpop.f32.mrf.mxu0
      %v1522 = vadd.f32 %v1409, %v1521
      %v1523 = vpop.f32.mrf.mxu0
      %v1524 = vadd.f32 %v1411, %v1523
      %1525 = vmatprep.mubr.bf16.mxu0 %v613
      %1526 = vmatmul.mubr.bf16.gmra.mxu0 %v612
      %v1527 = vpop.f32.mrf.mxu0
      %v1528 = vadd.f32 %v1415, %v1527
      %v1529 = vpop.f32.mrf.mxu0
      %v1530 = vadd.f32 %v1417, %v1529
      %v1531 = vpop.f32.mrf.mxu0
      %v1532 = vadd.f32 %v1419, %v1531
      %v1533 = vpop.f32.mrf.mxu0
      %v1534 = vadd.f32 %v1421, %v1533
      %1535 = vmatprep.mubr.bf16.mxu0 %v621
      %1536 = vmatmul.mubr.bf16.gmra.mxu0 %v620
      %v1537 = vpop.f32.mrf.mxu0
      %v1538 = vadd.f32 %v1425, %v1537
      %v1539 = vpop.f32.mrf.mxu0
      %v1540 = vadd.f32 %v1427, %v1539
      %v1541 = vpop.f32.mrf.mxu0
      %v1542 = vadd.f32 %v1429, %v1541
      %v1543 = vpop.f32.mrf.mxu0
      %v1544 = vadd.f32 %v1431, %v1543
      %1545 = vmatprep.mubr.bf16.mxu0 %v629
      %1546 = vmatmul.mubr.bf16.gmra.mxu0 %v628
      %v1547 = vpop.f32.mrf.mxu0
      %v1548 = vadd.f32 %v1435, %v1547
      %v1549 = vpop.f32.mrf.mxu0
      %v1550 = vadd.f32 %v1437, %v1549
      %v1551 = vpop.f32.mrf.mxu0
      %v1552 = vadd.f32 %v1439, %v1551
      %v1553 = vpop.f32.mrf.mxu0
      %v1554 = vadd.f32 %v1441, %v1553
      %1555 = vmatprep.mubr.bf16.mxu0 %v637
      %1556 = vmatmul.mubr.bf16.gmra.mxu0 %v636
      %v1557 = vpop.f32.mrf.mxu0
      %v1558 = vadd.f32 %v1445, %v1557
      %v1559 = vpop.f32.mrf.mxu0
      %v1560 = vadd.f32 %v1447, %v1559
      %v1561 = vpop.f32.mrf.mxu0
      %v1562 = vadd.f32 %v1449, %v1561
      %v1563 = vpop.f32.mrf.mxu0
      %v1564 = vadd.f32 %v1451, %v1563
      %1565 = vmatprep.mubr.bf16.mxu0 %v645
      %1566 = vmatmul.mubr.bf16.gmra.mxu0 %v644
      %v1567 = vpop.f32.mrf.mxu0
      %v1568 = vadd.f32 %v1455, %v1567
      %v1569 = vpop.f32.mrf.mxu0
      %v1570 = vadd.f32 %v1457, %v1569
      %v1571 = vpop.f32.mrf.mxu0
      %v1572 = vadd.f32 %v1459, %v1571
      %v1573 = vpop.f32.mrf.mxu0
      %v1574 = vadd.f32 %v1461, %v1573
      %1575 = vmatprep.mubr.bf16.mxu0 %v653
      %1576 = vmatmul.mubr.bf16.gmra.mxu0 %v652
      %v1577 = vpop.f32.mrf.mxu0
      %v1578 = vadd.f32 %v1465, %v1577
      %v1579 = vpop.f32.mrf.mxu0
      %v1580 = vadd.f32 %v1467, %v1579
      %v1581 = vpop.f32.mrf.mxu0
      %v1582 = vadd.f32 %v1469, %v1581
      %v1583 = vpop.f32.mrf.mxu0
      %v1584 = vadd.f32 %v1471, %v1583
      %1585 = vmatprep.mubr.bf16.mxu0 %v661
      %1586 = vmatmul.mubr.bf16.gmra.mxu0 %v660
      %v1587 = vpop.f32.mrf.mxu0
      %v1588 = vadd.f32 %v1475, %v1587
      %v1589 = vpop.f32.mrf.mxu0
      %v1590 = vadd.f32 %v1477, %v1589
      %v1591 = vpop.f32.mrf.mxu0
      %v1592 = vadd.f32 %v1479, %v1591
      %v1593 = vpop.f32.mrf.mxu0
      %v1594 = vadd.f32 %v1481, %v1593
      %1595 = vdwg.mxu0
      %1596 = vmatprep.subr.bf16.mxu0 %v1193
      %1597 = vmatpush1.bf16.msra.mxu0 %v1192
      %1598 = vmatprep.subr.bf16.mxu0 %v1191
      %1599 = vmatpush1.bf16.msra.mxu0 %v1190
      %1600 = vmatprep.subr.bf16.mxu0 %v1189
      %1601 = vmatpush1.bf16.msra.mxu0 %v1188
      %1602 = vmatprep.subr.bf16.mxu0 %v1187
      %1603 = vmatpush1.bf16.msra.mxu0 %v1186
      %1604 = vmatprep.subr.bf16.mxu0 %v1185
      %1605 = vmatpush1.bf16.msra.mxu0 %v1184
      %1606 = vmatprep.subr.bf16.mxu0 %v1183
      %1607 = vmatpush1.bf16.msra.mxu0 %v1182
      %1608 = vmatprep.subr.bf16.mxu0 %v1181
      %1609 = vmatpush1.bf16.msra.mxu0 %v1180
      %1610 = vmatprep.subr.bf16.mxu0 %v1179
      %1611 = vmatpush1.bf16.msra.mxu0 %v1178
      %1612 = vmatprep.subr.bf16.mxu0 %v1209
      %1613 = vmatpush2.bf16.msra.mxu0 %v1208
      %1614 = vmatprep.subr.bf16.mxu0 %v1207
      %1615 = vmatpush2.bf16.msra.mxu0 %v1206
      %1616 = vmatprep.subr.bf16.mxu0 %v1205
      %1617 = vmatpush2.bf16.msra.mxu0 %v1204
      %1618 = vmatprep.subr.bf16.mxu0 %v1203
      %1619 = vmatpush2.bf16.msra.mxu0 %v1202
      %1620 = vmatprep.subr.bf16.mxu0 %v1201
      %1621 = vmatpush2.bf16.msra.mxu0 %v1200
      %1622 = vmatprep.subr.bf16.mxu0 %v1199
      %1623 = vmatpush2.bf16.msra.mxu0 %v1198
      %1624 = vmatprep.subr.bf16.mxu0 %v1197
      %1625 = vmatpush2.bf16.msra.mxu0 %v1196
      %1626 = vmatprep.subr.bf16.mxu0 %v1195
      %1627 = vmatpush2.bf16.msra.mxu0 %v1194
      %1628 = vmatprep.mubr.bf16.mxu0 %v607
      %1629 = vmatmul.mubr.bf16.gmra.mxu0 %v606
      %v1630 = vpop.f32.mrf.mxu0
      %v1631 = vadd.f32 %v1518, %v1630
      %v1632 = vpop.f32.mrf.mxu0
      %v1633 = vadd.f32 %v1520, %v1632
      %v1634 = vpop.f32.mrf.mxu0
      %v1635 = vadd.f32 %v1522, %v1634
      %v1636 = vpop.f32.mrf.mxu0
      %v1637 = vadd.f32 %v1524, %v1636
      %1638 = vmatprep.mubr.bf16.mxu0 %v615
      %1639 = vmatmul.mubr.bf16.gmra.mxu0 %v614
      %v1640 = vpop.f32.mrf.mxu0
      %v1641 = vadd.f32 %v1528, %v1640
      %v1642 = vpop.f32.mrf.mxu0
      %v1643 = vadd.f32 %v1530, %v1642
      %v1644 = vpop.f32.mrf.mxu0
      %v1645 = vadd.f32 %v1532, %v1644
      %v1646 = vpop.f32.mrf.mxu0
      %v1647 = vadd.f32 %v1534, %v1646
      %1648 = vmatprep.mubr.bf16.mxu0 %v623
      %1649 = vmatmul.mubr.bf16.gmra.mxu0 %v622
      %v1650 = vpop.f32.mrf.mxu0
      %v1651 = vadd.f32 %v1538, %v1650
      %v1652 = vpop.f32.mrf.mxu0
      %v1653 = vadd.f32 %v1540, %v1652
      %v1654 = vpop.f32.mrf.mxu0
      %v1655 = vadd.f32 %v1542, %v1654
      %v1656 = vpop.f32.mrf.mxu0
      %v1657 = vadd.f32 %v1544, %v1656
      %1658 = vmatprep.mubr.bf16.mxu0 %v631
      %1659 = vmatmul.mubr.bf16.gmra.mxu0 %v630
      %v1660 = vpop.f32.mrf.mxu0
      %v1661 = vadd.f32 %v1548, %v1660
      %v1662 = vpop.f32.mrf.mxu0
      %v1663 = vadd.f32 %v1550, %v1662
      %v1664 = vpop.f32.mrf.mxu0
      %v1665 = vadd.f32 %v1552, %v1664
      %v1666 = vpop.f32.mrf.mxu0
      %v1667 = vadd.f32 %v1554, %v1666
      %1668 = vmatprep.mubr.bf16.mxu0 %v639
      %1669 = vmatmul.mubr.bf16.gmra.mxu0 %v638
      %v1670 = vpop.f32.mrf.mxu0
      %v1671 = vadd.f32 %v1558, %v1670
      %v1672 = vpop.f32.mrf.mxu0
      %v1673 = vadd.f32 %v1560, %v1672
      %v1674 = vpop.f32.mrf.mxu0
      %v1675 = vadd.f32 %v1562, %v1674
      %v1676 = vpop.f32.mrf.mxu0
      %v1677 = vadd.f32 %v1564, %v1676
      %1678 = vmatprep.mubr.bf16.mxu0 %v647
      %1679 = vmatmul.mubr.bf16.gmra.mxu0 %v646
      %v1680 = vpop.f32.mrf.mxu0
      %v1681 = vadd.f32 %v1568, %v1680
      %v1682 = vpop.f32.mrf.mxu0
      %v1683 = vadd.f32 %v1570, %v1682
      %v1684 = vpop.f32.mrf.mxu0
      %v1685 = vadd.f32 %v1572, %v1684
      %v1686 = vpop.f32.mrf.mxu0
      %v1687 = vadd.f32 %v1574, %v1686
      %1688 = vmatprep.mubr.bf16.mxu0 %v655
      %1689 = vmatmul.mubr.bf16.gmra.mxu0 %v654
      %v1690 = vpop.f32.mrf.mxu0
      %v1691 = vadd.f32 %v1578, %v1690
      %v1692 = vpop.f32.mrf.mxu0
      %v1693 = vadd.f32 %v1580, %v1692
      %v1694 = vpop.f32.mrf.mxu0
      %v1695 = vadd.f32 %v1582, %v1694
      %v1696 = vpop.f32.mrf.mxu0
      %v1697 = vadd.f32 %v1584, %v1696
      %1698 = vmatprep.mubr.bf16.mxu0 %v663
      %1699 = vmatmul.mubr.bf16.gmra.mxu0 %v662
      %v1700 = vpop.f32.mrf.mxu0
      %v1701 = vadd.f32 %v1588, %v1700
      %v1702 = vpop.f32.mrf.mxu0
      %v1703 = vadd.f32 %v1590, %v1702
      %v1704 = vpop.f32.mrf.mxu0
      %v1705 = vadd.f32 %v1592, %v1704
      %v1706 = vpop.f32.mrf.mxu0
      %v1707 = vadd.f32 %v1594, %v1706
      %1708 = vdwg.mxu0
      %1709 = vmatprep.subr.bf16.mxu0 %v1225
      %1710 = vmatpush1.bf16.msra.mxu0 %v1224
      %1711 = vmatprep.subr.bf16.mxu0 %v1223
      %1712 = vmatpush1.bf16.msra.mxu0 %v1222
      %1713 = vmatprep.subr.bf16.mxu0 %v1221
      %1714 = vmatpush1.bf16.msra.mxu0 %v1220
      %1715 = vmatprep.subr.bf16.mxu0 %v1219
      %1716 = vmatpush1.bf16.msra.mxu0 %v1218
      %1717 = vmatprep.subr.bf16.mxu0 %v1217
      %1718 = vmatpush1.bf16.msra.mxu0 %v1216
      %1719 = vmatprep.subr.bf16.mxu0 %v1215
      %1720 = vmatpush1.bf16.msra.mxu0 %v1214
      %1721 = vmatprep.subr.bf16.mxu0 %v1213
      %1722 = vmatpush1.bf16.msra.mxu0 %v1212
      %1723 = vmatprep.subr.bf16.mxu0 %v1211
      %1724 = vmatpush1.bf16.msra.mxu0 %v1210
      %1725 = vmatprep.subr.bf16.mxu0 %v1241
      %1726 = vmatpush2.bf16.msra.mxu0 %v1240
      %1727 = vmatprep.subr.bf16.mxu0 %v1239
      %1728 = vmatpush2.bf16.msra.mxu0 %v1238
      %1729 = vmatprep.subr.bf16.mxu0 %v1237
      %1730 = vmatpush2.bf16.msra.mxu0 %v1236
      %1731 = vmatprep.subr.bf16.mxu0 %v1235
      %1732 = vmatpush2.bf16.msra.mxu0 %v1234
      %1733 = vmatprep.subr.bf16.mxu0 %v1233
      %1734 = vmatpush2.bf16.msra.mxu0 %v1232
      %1735 = vmatprep.subr.bf16.mxu0 %v1231
      %1736 = vmatpush2.bf16.msra.mxu0 %v1230
      %1737 = vmatprep.subr.bf16.mxu0 %v1229
      %1738 = vmatpush2.bf16.msra.mxu0 %v1228
      %1739 = vmatprep.subr.bf16.mxu0 %v1227
      %1740 = vmatpush2.bf16.msra.mxu0 %v1226
      %1741 = vmatprep.mubr.bf16.mxu0 %v609
      %1742 = vmatmul.mubr.bf16.gmra.mxu0 %v608
      %v1743 = vpop.f32.mrf.mxu0
      %v1744 = vadd.f32 %v1631, %v1743
      %v1745 = vpop.f32.mrf.mxu0
      %v1746 = vadd.f32 %v1633, %v1745
      %v1747 = vpop.f32.mrf.mxu0
      %v1748 = vadd.f32 %v1635, %v1747
      %v1749 = vpop.f32.mrf.mxu0
      %v1750 = vadd.f32 %v1637, %v1749
      %1751 = vmatprep.mubr.bf16.mxu0 %v617
      %1752 = vmatmul.mubr.bf16.gmra.mxu0 %v616
      %v1753 = vpop.f32.mrf.mxu0
      %v1754 = vadd.f32 %v1641, %v1753
      %v1755 = vpop.f32.mrf.mxu0
      %v1756 = vadd.f32 %v1643, %v1755
      %v1757 = vpop.f32.mrf.mxu0
      %v1758 = vadd.f32 %v1645, %v1757
      %v1759 = vpop.f32.mrf.mxu0
      %v1760 = vadd.f32 %v1647, %v1759
      %1761 = vmatprep.mubr.bf16.mxu0 %v625
      %1762 = vmatmul.mubr.bf16.gmra.mxu0 %v624
      %v1763 = vpop.f32.mrf.mxu0
      %v1764 = vadd.f32 %v1651, %v1763
      %v1765 = vpop.f32.mrf.mxu0
      %v1766 = vadd.f32 %v1653, %v1765
      %v1767 = vpop.f32.mrf.mxu0
      %v1768 = vadd.f32 %v1655, %v1767
      %v1769 = vpop.f32.mrf.mxu0
      %v1770 = vadd.f32 %v1657, %v1769
      %1771 = vmatprep.mubr.bf16.mxu0 %v633
      %1772 = vmatmul.mubr.bf16.gmra.mxu0 %v632
      %v1773 = vpop.f32.mrf.mxu0
      %v1774 = vadd.f32 %v1661, %v1773
      %v1775 = vpop.f32.mrf.mxu0
      %v1776 = vadd.f32 %v1663, %v1775
      %v1777 = vpop.f32.mrf.mxu0
      %v1778 = vadd.f32 %v1665, %v1777
      %v1779 = vpop.f32.mrf.mxu0
      %v1780 = vadd.f32 %v1667, %v1779
      %1781 = vmatprep.mubr.bf16.mxu0 %v641
      %1782 = vmatmul.mubr.bf16.gmra.mxu0 %v640
      %v1783 = vpop.f32.mrf.mxu0
      %v1784 = vadd.f32 %v1671, %v1783
      %v1785 = vpop.f32.mrf.mxu0
      %v1786 = vadd.f32 %v1673, %v1785
      %v1787 = vpop.f32.mrf.mxu0
      %v1788 = vadd.f32 %v1675, %v1787
      %v1789 = vpop.f32.mrf.mxu0
      %v1790 = vadd.f32 %v1677, %v1789
      %1791 = vmatprep.mubr.bf16.mxu0 %v649
      %1792 = vmatmul.mubr.bf16.gmra.mxu0 %v648
      %v1793 = vpop.f32.mrf.mxu0
      %v1794 = vadd.f32 %v1681, %v1793
      %v1795 = vpop.f32.mrf.mxu0
      %v1796 = vadd.f32 %v1683, %v1795
      %v1797 = vpop.f32.mrf.mxu0
      %v1798 = vadd.f32 %v1685, %v1797
      %v1799 = vpop.f32.mrf.mxu0
      %v1800 = vadd.f32 %v1687, %v1799
      %1801 = vmatprep.mubr.bf16.mxu0 %v657
      %1802 = vmatmul.mubr.bf16.gmra.mxu0 %v656
      %v1803 = vpop.f32.mrf.mxu0
      %v1804 = vadd.f32 %v1691, %v1803
      %v1805 = vpop.f32.mrf.mxu0
      %v1806 = vadd.f32 %v1693, %v1805
      %v1807 = vpop.f32.mrf.mxu0
      %v1808 = vadd.f32 %v1695, %v1807
      %v1809 = vpop.f32.mrf.mxu0
      %v1810 = vadd.f32 %v1697, %v1809
      %1811 = vmatprep.mubr.bf16.mxu0 %v665
      %1812 = vmatmul.mubr.bf16.gmra.mxu0 %v664
      %v1813 = vpop.f32.mrf.mxu0
      %v1814 = vadd.f32 %v1701, %v1813
      %v1815 = vpop.f32.mrf.mxu0
      %v1816 = vadd.f32 %v1703, %v1815
      %v1817 = vpop.f32.mrf.mxu0
      %v1818 = vadd.f32 %v1705, %v1817
      %v1819 = vpop.f32.mrf.mxu0
      %v1820 = vadd.f32 %v1707, %v1819
      %1821 = vdwg.mxu0
      %v1822 = vpack.c.bf16 %v1748, %v1744
      %v1823 = vpack.c.bf16 %v1750, %v1746
      %v1824 = vpack.c.bf16 %v1758, %v1754
      %v1825 = vpack.c.bf16 %v1760, %v1756
      %v1826 = vpack.c.bf16 %v1768, %v1764
      %v1827 = vpack.c.bf16 %v1770, %v1766
      %v1828 = vpack.c.bf16 %v1778, %v1774
      %v1829 = vpack.c.bf16 %v1780, %v1776
      %v1830 = vpack.c.bf16 %v1788, %v1784
      %v1831 = vpack.c.bf16 %v1790, %v1786
      %v1832 = vpack.c.bf16 %v1798, %v1794
      %v1833 = vpack.c.bf16 %v1800, %v1796
      %v1834 = vpack.c.bf16 %v1808, %v1804
      %v1835 = vpack.c.bf16 %v1810, %v1806
      %v1836 = vpack.c.bf16 %v1818, %v1814
      %v1837 = vpack.c.bf16 %v1820, %v1816
      %v1838 = vld [vmem:[%s3] sm:$0xff]
      %v1839 = vld [vmem:[%s3 + $0x8] sm:$0xff]
      %v1840 = vld [vmem:[%s3 + $0x10] sm:$0xff]
      %v1841 = vld [vmem:[%s3 + $0x18] sm:$0xff]
      %v1842 = vld [vmem:[%s3 + $0x20] sm:$0xff]
      %v1843 = vld [vmem:[%s3 + $0x28] sm:$0xff]
      %v1844 = vld [vmem:[%s3 + $0x30] sm:$0xff]
      %v1845 = vld [vmem:[%s3 + $0x38] sm:$0xff]
      %v1846 = vld [vmem:[%s3 + $0x40] sm:$0xff]
      %v1847 = vld [vmem:[%s3 + $0x48] sm:$0xff]
      %v1848 = vld [vmem:[%s3 + $0x50] sm:$0xff]
      %v1849 = vld [vmem:[%s3 + $0x58] sm:$0xff]
      %v1850 = vld [vmem:[%s3 + $0x60] sm:$0xff]
      %v1851 = vld [vmem:[%s3 + $0x68] sm:$0xff]
      %v1852 = vld [vmem:[%s3 + $0x70] sm:$0xff]
      %v1853 = vld [vmem:[%s3 + $0x78] sm:$0xff]
      %v1854 = vld [vmem:[%s3 + $0x80] sm:$0xff]
      %v1855 = vld [vmem:[%s3 + $0x88] sm:$0xff]
      %v1856 = vld [vmem:[%s3 + $0x90] sm:$0xff]
      %v1857 = vld [vmem:[%s3 + $0x98] sm:$0xff]
      %v1858 = vld [vmem:[%s3 + $0xa0] sm:$0xff]
      %v1859 = vld [vmem:[%s3 + $0xa8] sm:$0xff]
      %v1860 = vld [vmem:[%s3 + $0xb0] sm:$0xff]
      %v1861 = vld [vmem:[%s3 + $0xb8] sm:$0xff]
      %v1862 = vld [vmem:[%s3 + $0xc0] sm:$0xff]
      %v1863 = vld [vmem:[%s3 + $0xc8] sm:$0xff]
      %v1864 = vld [vmem:[%s3 + $0xd0] sm:$0xff]
      %v1865 = vld [vmem:[%s3 + $0xd8] sm:$0xff]
      %v1866 = vld [vmem:[%s3 + $0xe0] sm:$0xff]
      %v1867 = vld [vmem:[%s3 + $0xe8] sm:$0xff]
      %v1868 = vld [vmem:[%s3 + $0xf0] sm:$0xff]
      %v1869 = vld [vmem:[%s3 + $0xf8] sm:$0xff]
      %v1902 = vunpack.c.l.b16 %v1838
      %v1903 = vunpack.c.h.b16 %v1838
      %v1904 = vunpack.c.l.b16 %v1839
      %v1905 = vunpack.c.h.b16 %v1839
      %v1906 = vunpack.c.l.b16 %v1840
      %v1907 = vunpack.c.h.b16 %v1840
      %v1908 = vunpack.c.l.b16 %v1841
      %v1909 = vunpack.c.h.b16 %v1841
      %v1910 = vunpack.c.l.b16 %v1842
      %v1911 = vunpack.c.h.b16 %v1842
      %v1912 = vunpack.c.l.b16 %v1843
      %v1913 = vunpack.c.h.b16 %v1843
      %v1914 = vunpack.c.l.b16 %v1844
      %v1915 = vunpack.c.h.b16 %v1844
      %v1916 = vunpack.c.l.b16 %v1845
      %v1917 = vunpack.c.h.b16 %v1845
      %v1918 = vunpack.c.l.b16 %v1846
      %v1919 = vunpack.c.h.b16 %v1846
      %v1920 = vunpack.c.l.b16 %v1847
      %v1921 = vunpack.c.h.b16 %v1847
      %v1922 = vunpack.c.l.b16 %v1848
      %v1923 = vunpack.c.h.b16 %v1848
      %v1924 = vunpack.c.l.b16 %v1849
      %v1925 = vunpack.c.h.b16 %v1849
      %v1926 = vunpack.c.l.b16 %v1850
      %v1927 = vunpack.c.h.b16 %v1850
      %v1928 = vunpack.c.l.b16 %v1851
      %v1929 = vunpack.c.h.b16 %v1851
      %v1930 = vunpack.c.l.b16 %v1852
      %v1931 = vunpack.c.h.b16 %v1852
      %v1932 = vunpack.c.l.b16 %v1853
      %v1933 = vunpack.c.h.b16 %v1853
      %v1934 = vunpack.c.l.b16 %v1854
      %v1935 = vunpack.c.h.b16 %v1854
      %v1936 = vunpack.c.l.b16 %v1855
      %v1937 = vunpack.c.h.b16 %v1855
      %v1938 = vunpack.c.l.b16 %v1856
      %v1939 = vunpack.c.h.b16 %v1856
      %v1940 = vunpack.c.l.b16 %v1857
      %v1941 = vunpack.c.h.b16 %v1857
      %v1942 = vunpack.c.l.b16 %v1858
      %v1943 = vunpack.c.h.b16 %v1858
      %v1944 = vunpack.c.l.b16 %v1859
      %v1945 = vunpack.c.h.b16 %v1859
      %v1946 = vunpack.c.l.b16 %v1860
      %v1947 = vunpack.c.h.b16 %v1860
      %v1948 = vunpack.c.l.b16 %v1861
      %v1949 = vunpack.c.h.b16 %v1861
      %v1950 = vunpack.c.l.b16 %v1862
      %v1951 = vunpack.c.h.b16 %v1862
      %v1952 = vunpack.c.l.b16 %v1863
      %v1953 = vunpack.c.h.b16 %v1863
      %v1954 = vunpack.c.l.b16 %v1864
      %v1955 = vunpack.c.h.b16 %v1864
      %v1956 = vunpack.c.l.b16 %v1865
      %v1957 = vunpack.c.h.b16 %v1865
      %v1958 = vunpack.c.l.b16 %v1866
      %v1959 = vunpack.c.h.b16 %v1866
      %v1960 = vunpack.c.l.b16 %v1867
      %v1961 = vunpack.c.h.b16 %v1867
      %v1962 = vunpack.c.l.b16 %v1868
      %v1963 = vunpack.c.h.b16 %v1868
      %v1964 = vunpack.c.l.b16 %v1869
      %v1965 = vunpack.c.h.b16 %v1869
      %v1966 = vpack.c.b16 %v1904, %v1902
      %v1967 = vpack.c.b16 %v1905, %v1903
      %v1968 = vpack.c.b16 %v1908, %v1906
      %v1969 = vpack.c.b16 %v1909, %v1907
      %v1970 = vpack.c.b16 %v1912, %v1910
      %v1971 = vpack.c.b16 %v1913, %v1911
      %v1972 = vpack.c.b16 %v1916, %v1914
      %v1973 = vpack.c.b16 %v1917, %v1915
      %v1974 = vpack.c.b16 %v1920, %v1918
      %v1975 = vpack.c.b16 %v1921, %v1919
      %v1976 = vpack.c.b16 %v1924, %v1922
      %v1977 = vpack.c.b16 %v1925, %v1923
      %v1978 = vpack.c.b16 %v1928, %v1926
      %v1979 = vpack.c.b16 %v1929, %v1927
      %v1980 = vpack.c.b16 %v1932, %v1930
      %v1981 = vpack.c.b16 %v1933, %v1931
      %v1982 = vpack.c.b16 %v1936, %v1934
      %v1983 = vpack.c.b16 %v1937, %v1935
      %v1984 = vpack.c.b16 %v1940, %v1938
      %v1985 = vpack.c.b16 %v1941, %v1939
      %v1986 = vpack.c.b16 %v1944, %v1942
      %v1987 = vpack.c.b16 %v1945, %v1943
      %v1988 = vpack.c.b16 %v1948, %v1946
      %v1989 = vpack.c.b16 %v1949, %v1947
      %v1990 = vpack.c.b16 %v1952, %v1950
      %v1991 = vpack.c.b16 %v1953, %v1951
      %v1992 = vpack.c.b16 %v1956, %v1954
      %v1993 = vpack.c.b16 %v1957, %v1955
      %v1994 = vpack.c.b16 %v1960, %v1958
      %v1995 = vpack.c.b16 %v1961, %v1959
      %v1996 = vpack.c.b16 %v1964, %v1962
      %v1997 = vpack.c.b16 %v1965, %v1963
      %2030 = vmatprep.subr.bf16.mxu0 %v1981
      %2031 = vmatpush1.bf16.msra.mxu0 %v1980
      %2032 = vmatprep.subr.bf16.mxu0 %v1979
      %2033 = vmatpush1.bf16.msra.mxu0 %v1978
      %2034 = vmatprep.subr.bf16.mxu0 %v1977
      %2035 = vmatpush1.bf16.msra.mxu0 %v1976
      %2036 = vmatprep.subr.bf16.mxu0 %v1975
      %2037 = vmatpush1.bf16.msra.mxu0 %v1974
      %2038 = vmatprep.subr.bf16.mxu0 %v1973
      %2039 = vmatpush1.bf16.msra.mxu0 %v1972
      %2040 = vmatprep.subr.bf16.mxu0 %v1971
      %2041 = vmatpush1.bf16.msra.mxu0 %v1970
      %2042 = vmatprep.subr.bf16.mxu0 %v1969
      %2043 = vmatpush1.bf16.msra.mxu0 %v1968
      %2044 = vmatprep.subr.bf16.mxu0 %v1967
      %2045 = vmatpush1.bf16.msra.mxu0 %v1966
      %2046 = vmatprep.subr.bf16.mxu0 %v1997
      %2047 = vmatpush2.bf16.msra.mxu0 %v1996
      %2048 = vmatprep.subr.bf16.mxu0 %v1995
      %2049 = vmatpush2.bf16.msra.mxu0 %v1994
      %2050 = vmatprep.subr.bf16.mxu0 %v1993
      %2051 = vmatpush2.bf16.msra.mxu0 %v1992
      %2052 = vmatprep.subr.bf16.mxu0 %v1991
      %2053 = vmatpush2.bf16.msra.mxu0 %v1990
      %2054 = vmatprep.subr.bf16.mxu0 %v1989
      %2055 = vmatpush2.bf16.msra.mxu0 %v1988
      %2056 = vmatprep.subr.bf16.mxu0 %v1987
      %2057 = vmatpush2.bf16.msra.mxu0 %v1986
      %2058 = vmatprep.subr.bf16.mxu0 %v1985
      %2059 = vmatpush2.bf16.msra.mxu0 %v1984
      %2060 = vmatprep.subr.bf16.mxu0 %v1983
      %2061 = vmatpush2.bf16.msra.mxu0 %v1982
      %2062 = vmatprep.mubr.bf16.mxu0 %v1823
      %2063 = vmatmul.mubr.bf16.gmra.mxu0 %v1822
      %v2064 = vpop.f32.mrf.mxu0
      %v2065 = vadd.f32 0.0, %v2064
      %v2066 = vpop.f32.mrf.mxu0
      %v2067 = vadd.f32 0.0, %v2066
      %v2068 = vpop.f32.mrf.mxu0
      %v2069 = vadd.f32 0.0, %v2068
      %v2070 = vpop.f32.mrf.mxu0
      %v2071 = vadd.f32 0.0, %v2070
      %2072 = vmatprep.mubr.bf16.mxu0 %v1825
      %2073 = vmatmul.mubr.bf16.gmra.mxu0 %v1824
      %v2074 = vpop.f32.mrf.mxu0
      %v2075 = vadd.f32 0.0, %v2074
      %v2076 = vpop.f32.mrf.mxu0
      %v2077 = vadd.f32 0.0, %v2076
      %v2078 = vpop.f32.mrf.mxu0
      %v2079 = vadd.f32 0.0, %v2078
      %v2080 = vpop.f32.mrf.mxu0
      %v2081 = vadd.f32 0.0, %v2080
      %2082 = vmatprep.mubr.bf16.mxu0 %v1827
      %2083 = vmatmul.mubr.bf16.gmra.mxu0 %v1826
      %v2084 = vpop.f32.mrf.mxu0
      %v2085 = vadd.f32 0.0, %v2084
      %v2086 = vpop.f32.mrf.mxu0
      %v2087 = vadd.f32 0.0, %v2086
      %v2088 = vpop.f32.mrf.mxu0
      %v2089 = vadd.f32 0.0, %v2088
      %v2090 = vpop.f32.mrf.mxu0
      %v2091 = vadd.f32 0.0, %v2090
      %2092 = vmatprep.mubr.bf16.mxu0 %v1829
      %2093 = vmatmul.mubr.bf16.gmra.mxu0 %v1828
      %v2094 = vpop.f32.mrf.mxu0
      %v2095 = vadd.f32 0.0, %v2094
      %v2096 = vpop.f32.mrf.mxu0
      %v2097 = vadd.f32 0.0, %v2096
      %v2098 = vpop.f32.mrf.mxu0
      %v2099 = vadd.f32 0.0, %v2098
      %v2100 = vpop.f32.mrf.mxu0
      %v2101 = vadd.f32 0.0, %v2100
      %2102 = vmatprep.mubr.bf16.mxu0 %v1831
      %2103 = vmatmul.mubr.bf16.gmra.mxu0 %v1830
      %v2104 = vpop.f32.mrf.mxu0
      %v2105 = vadd.f32 0.0, %v2104
      %v2106 = vpop.f32.mrf.mxu0
      %v2107 = vadd.f32 0.0, %v2106
      %v2108 = vpop.f32.mrf.mxu0
      %v2109 = vadd.f32 0.0, %v2108
      %v2110 = vpop.f32.mrf.mxu0
      %v2111 = vadd.f32 0.0, %v2110
      %2112 = vmatprep.mubr.bf16.mxu0 %v1833
      %2113 = vmatmul.mubr.bf16.gmra.mxu0 %v1832
      %v2114 = vpop.f32.mrf.mxu0
      %v2115 = vadd.f32 0.0, %v2114
      %v2116 = vpop.f32.mrf.mxu0
      %v2117 = vadd.f32 0.0, %v2116
      %v2118 = vpop.f32.mrf.mxu0
      %v2119 = vadd.f32 0.0, %v2118
      %v2120 = vpop.f32.mrf.mxu0
      %v2121 = vadd.f32 0.0, %v2120
      %2122 = vmatprep.mubr.bf16.mxu0 %v1835
      %2123 = vmatmul.mubr.bf16.gmra.mxu0 %v1834
      %v2124 = vpop.f32.mrf.mxu0
      %v2125 = vadd.f32 0.0, %v2124
      %v2126 = vpop.f32.mrf.mxu0
      %v2127 = vadd.f32 0.0, %v2126
      %v2128 = vpop.f32.mrf.mxu0
      %v2129 = vadd.f32 0.0, %v2128
      %v2130 = vpop.f32.mrf.mxu0
      %v2131 = vadd.f32 0.0, %v2130
      %2132 = vmatprep.mubr.bf16.mxu0 %v1837
      %2133 = vmatmul.mubr.bf16.gmra.mxu0 %v1836
      %v2134 = vpop.f32.mrf.mxu0
      %v2135 = vadd.f32 0.0, %v2134
      %v2136 = vpop.f32.mrf.mxu0
      %v2137 = vadd.f32 0.0, %v2136
      %v2138 = vpop.f32.mrf.mxu0
      %v2139 = vadd.f32 0.0, %v2138
      %v2140 = vpop.f32.mrf.mxu0
      %v2141 = vadd.f32 0.0, %v2140
      %2142 = vdwg.mxu0
      %v2143 = vpack.c.bf16 %v2069, %v2065
      %v2144 = vpack.c.bf16 %v2071, %v2067
      %v2145 = vpack.c.bf16 %v2079, %v2075
      %v2146 = vpack.c.bf16 %v2081, %v2077
      %v2147 = vpack.c.bf16 %v2089, %v2085
      %v2148 = vpack.c.bf16 %v2091, %v2087
      %v2149 = vpack.c.bf16 %v2099, %v2095
      %v2150 = vpack.c.bf16 %v2101, %v2097
      %v2151 = vpack.c.bf16 %v2109, %v2105
      %v2152 = vpack.c.bf16 %v2111, %v2107
      %v2153 = vpack.c.bf16 %v2119, %v2115
      %v2154 = vpack.c.bf16 %v2121, %v2117
      %v2155 = vpack.c.bf16 %v2129, %v2125
      %v2156 = vpack.c.bf16 %v2131, %v2127
      %v2157 = vpack.c.bf16 %v2139, %v2135
      %v2158 = vpack.c.bf16 %v2141, %v2137
      %v2175 = vunpack.c.l.b16 %v2143
      %v2176 = vunpack.c.l.b16 %v2144
      %v2177 = vunpack.c.h.b16 %v2143
      %v2178 = vunpack.c.h.b16 %v2144
      %v2179 = vunpack.c.l.b16 %v2145
      %v2180 = vunpack.c.l.b16 %v2146
      %v2181 = vunpack.c.h.b16 %v2145
      %v2182 = vunpack.c.h.b16 %v2146
      %v2183 = vunpack.c.l.b16 %v2147
      %v2184 = vunpack.c.l.b16 %v2148
      %v2185 = vunpack.c.h.b16 %v2147
      %v2186 = vunpack.c.h.b16 %v2148
      %v2187 = vunpack.c.l.b16 %v2149
      %v2188 = vunpack.c.l.b16 %v2150
      %v2189 = vunpack.c.h.b16 %v2149
      %v2190 = vunpack.c.h.b16 %v2150
      %v2191 = vunpack.c.l.b16 %v2151
      %v2192 = vunpack.c.l.b16 %v2152
      %v2193 = vunpack.c.h.b16 %v2151
      %v2194 = vunpack.c.h.b16 %v2152
      %v2195 = vunpack.c.l.b16 %v2153
      %v2196 = vunpack.c.l.b16 %v2154
      %v2197 = vunpack.c.h.b16 %v2153
      %v2198 = vunpack.c.h.b16 %v2154
      %v2199 = vunpack.c.l.b16 %v2155
      %v2200 = vunpack.c.l.b16 %v2156
      %v2201 = vunpack.c.h.b16 %v2155
      %v2202 = vunpack.c.h.b16 %v2156
      %v2203 = vunpack.c.l.b16 %v2157
      %v2204 = vunpack.c.l.b16 %v2158
      %v2205 = vunpack.c.h.b16 %v2157
      %v2206 = vunpack.c.h.b16 %v2158
      %v2207 = vpack.c.b16 %v2176, %v2175
      %v2208 = vpack.c.b16 %v2178, %v2177
      %v2209 = vpack.c.b16 %v2180, %v2179
      %v2210 = vpack.c.b16 %v2182, %v2181
      %v2211 = vpack.c.b16 %v2184, %v2183
      %v2212 = vpack.c.b16 %v2186, %v2185
      %v2213 = vpack.c.b16 %v2188, %v2187
      %v2214 = vpack.c.b16 %v2190, %v2189
      %v2215 = vpack.c.b16 %v2192, %v2191
      %v2216 = vpack.c.b16 %v2194, %v2193
      %v2217 = vpack.c.b16 %v2196, %v2195
      %v2218 = vpack.c.b16 %v2198, %v2197
      %v2219 = vpack.c.b16 %v2200, %v2199
      %v2220 = vpack.c.b16 %v2202, %v2201
      %v2221 = vpack.c.b16 %v2204, %v2203
      %v2222 = vpack.c.b16 %v2206, %v2205
      %2239 = vst [vmem:[%s204] sm:$0xff] %v2207
      %2240 = vst [vmem:[%s204 + $0x8] sm:$0xff] %v2208
      %2241 = vst [vmem:[%s204 + $0x10] sm:$0xff] %v2209
      %2242 = vst [vmem:[%s204 + $0x18] sm:$0xff] %v2210
      %2243 = vst [vmem:[%s204 + $0x20] sm:$0xff] %v2211
      %2244 = vst [vmem:[%s204 + $0x28] sm:$0xff] %v2212
      %2245 = vst [vmem:[%s204 + $0x30] sm:$0xff] %v2213
      %2246 = vst [vmem:[%s204 + $0x38] sm:$0xff] %v2214
      %2247 = vst [vmem:[%s204 + $0x40] sm:$0xff] %v2215
      %2248 = vst [vmem:[%s204 + $0x48] sm:$0xff] %v2216
      %2249 = vst [vmem:[%s204 + $0x50] sm:$0xff] %v2217
      %2250 = vst [vmem:[%s204 + $0x58] sm:$0xff] %v2218
      %2251 = vst [vmem:[%s204 + $0x60] sm:$0xff] %v2219
      %2252 = vst [vmem:[%s204 + $0x68] sm:$0xff] %v2220
      %2253 = vst [vmem:[%s204 + $0x70] sm:$0xff] %v2221
      %2254 = vst [vmem:[%s204 + $0x78] sm:$0xff] %v2222
      %s2255 = smul.u32 16, %s15
      %p2256 = scmp.lt.s32.totalorder %s2255, 31
      %s2257 = scalar_select %p2256, %s2255, 31
      %s2258 = smul.addr %s2257, 2
      %s2259 = smul.addr %s2258, 4
      %s2260 = scalar_lea.vmem %s4, %s2259
      // Predicated region
      $region37: #{gcn_net_forward.3} parent=35 // pred_check
        %p2261 = pneg %p122
      $region38: #{gcn_net_forward.3} parent=35 // pred_check_branch
        %2263 = sbr.rel (%p2261) target = $region40
      $region39: #{gcn_net_forward.3} parent=35 // pred_region
        %s2264 = smul.u32 16, %s15
      $region40: #{gcn_net_forward.3} parent=35 // pred_fallthru
        _
    $region36: #{gcn_net_forward.3} parent=5 // pred_fallthru
      _
    %p2265 = scmp.le.s32.totalorder 2, %s10
    // Predicated region
    $region41: #{gcn_net_forward.3} parent=5 // pred_check
      %p2266 = pneg %p2265
    $region42: #{gcn_net_forward.3} parent=5 // pred_check_branch
      %2268 = sbr.rel (%p2266) target = $region44
    $region43: #{gcn_net_forward.3} parent=5 // pred_region
      %s2269 = ssub.s32 %s10, 2
      // Predicated region
      $region45: #{gcn_net_forward.3} parent=43 // pred_check
        %p2270 = pneg %p128
      $region46: #{gcn_net_forward.3} parent=43 // pred_check_branch
        %2272 = sbr.rel (%p2270) target = $region48
      $region47: #{gcn_net_forward.3} parent=43 // pred_region
        %s2273 = smul.u32 16, %s16
        %p2274 = scmp.lt.s32.totalorder %s2273, 31
        %s2275 = scalar_select %p2274, %s2273, 31
        %s2276 = smul.addr %s2275, 2
        %s2277 = smul.addr %s2276, 4
        %s2278 = scalar_lea.vmem %s4, %s2277
      $region48: #{gcn_net_forward.3} parent=43 // pred_fallthru
        _
    $region44: #{gcn_net_forward.3} parent=5 // pred_fallthru
      _
  $region6: #{gcn_net_forward.3} parent=0 // loop_footer
    %s14 = sadd.s32 1, %s10
  $region7: #{gcn_net_forward.3} parent=0 // loop_footer_branch
    %9 = sbr.rel target = $region3
  $region8: #{gcn_net_forward.3} parent=0 // loop_exit
    _

// kernel: gcn_net_forward.5
$region0: #{gcn_net_forward.5}
  #allocation0 [shape = 'u32[]', space=smem, size = 0x4, offset = 0x4, fixed_abs, tag = 'smem constant byte address 0x4 - core index']
  #allocation1 [shape = 'u32[144,128]{1,0:T(1,128)}', space=vmem, size = 0x12000, scoped, tag = 'internal scratch']
  #allocation2 [shape = 'f32[128,256]{1,0:T(8,128)}', space=vmem, size = 0x20000, scoped, tag = 'scratch operand']
  %s0 = inlined_call_operand.vmem [shape: bf16[256,256], index: 0, kind: input, shape index: {}]
  %s1 = inlined_call_operand.vmem [shape: bf16[256,256], index: 1, kind: input, shape index: {}]
  %s2 = inlined_call_operand.vmem [shape: f32[1,256], index: 2, kind: input, shape index: {}]
  %s3 = inlined_call_operand.vmem [shape: f32[8,256], index: 3, kind: input, shape index: {}]
  %s4 = inlined_call_operand.vmem [shape: f32[16,256], index: 4, kind: output, shape index: {}]
  %s5 = sld [smem:[#allocation0]]
  $region57: #{gcn_net_forward.5} parent=0
    _
  %s7 = ssub.s32 1, %s5
  %s8 = scalar_select 0, %s7, %s5
  loop: start=0, step=1, limit=4
  $region2: #{gcn_net_forward.5} parent=0 // loop_pre_header
    _
  $region3: #{gcn_net_forward.5} parent=0 // loop_header
    %s10 = sphi 0, %s14
    %p11 = scmp.ge.s32.totalorder %s10, 4
    %s17 = sphi 0, %s29
    %s18 = sphi 0, %s25
    %s19 = sphi 0, %s17
    %s20 = sphi 0, %s18
    %s21 = sphi 0, %s19
    %s22 = sphi 0, %s20
    %s34 = sphi 0, %s36
    %s37 = sphi 0, %s34
    %s38 = sphi 0, %s37
    %s54 = sphi 0, %s38
    %s58 = sphi 0, %s58
    %s60 = sphi 0, %s58
    %s61 = sphi 0, %s60
    %s75 = sphi 0, %s61
    %s79 = sphi 0, %s79
    %s81 = sphi 0, %s79
    %s82 = sphi 0, %s81
    %s96 = sphi 0, %s82
    %s102 = sphi 0, %s104
    %s105 = sphi 0, %s102
    %s106 = sphi 0, %s105
    %s122 = sphi 0, %s106
    %s128 = sphi 0, %s130
    %s131 = sphi 0, %s128
    %s132 = sphi 0, %s131
    %s148 = sphi 0, %s132
  $region4: #{gcn_net_forward.5} parent=0 // loop_header_branch
    %13 = sbr.rel (%p11) target = $region8
  $region5: #{gcn_net_forward.5} parent=0 // loop_body
    %s15 = ssub.s32 %s10, 1
    %s16 = ssub.s32 %s10, 2
    %s23 = sadd.s32 1, %s18
    %p24 = scmp.ge.s32.totalorder %s23, 1
    %s25 = scalar_select %p24, 0, %s23
    %s26 = sadd.s32 1, %s17
    %s27 = scalar_select %p24, %s26, %s17
    %p28 = scmp.ge.s32.totalorder %s27, 2
    %s29 = scalar_select %p28, 0, %s27
    %s30 = ssub.s32 %s17, %s29
    %s31 = ssub.s32 %s18, %s25
    %s32 = sor.u32 %s30, %s31
    %p33 = scmp.eq.s32.totalorder %s32, 0
    %s35 = sadd.s32 %s34, 1
    %s36 = scalar_select %p33, %s34, %s35
    %p39 = pneg %p33
    %p40 = scmp.eq.s32.totalorder %s10, 1
    %p41 = por %p39, %p40
    %p42 = scmp.ne.s32.totalorder %s34, %s37
    %p43 = scmp.eq.s32.totalorder %s10, 0
    %p44 = por %p42, %p43
    %p45 = scmp.ne.s32.totalorder %s34, %s37
    %p46 = scmp.eq.s32.totalorder %s15, 1
    %p47 = por %p45, %p46
    %p48 = scmp.ne.s32.totalorder %s37, %s38
    %p49 = scmp.eq.s32.totalorder %s15, 0
    %p50 = por %p48, %p49
    %p51 = scmp.ne.s32.totalorder %s37, %s38
    %p52 = scmp.eq.s32.totalorder %s16, 1
    %p53 = por %p51, %p52
    %p55 = scmp.ne.s32.totalorder %s38, %s54
    %p56 = scmp.eq.s32.totalorder %s16, 0
    %p57 = por %p55, %p56
    %s59 = sadd.s32 %s58, 1
    %p62 = scmp.eq.s32.totalorder %s10, 1
    %p63 = scmp.ne.s32.totalorder %s58, %s60
    %p64 = scmp.eq.s32.totalorder %s10, 0
    %p65 = por %p63, %p64
    %p66 = scmp.ne.s32.totalorder %s58, %s60
    %p67 = scmp.eq.s32.totalorder %s15, 1
    %p68 = por %p66, %p67
    %p69 = scmp.ne.s32.totalorder %s60, %s61
    %p70 = scmp.eq.s32.totalorder %s15, 0
    %p71 = por %p69, %p70
    %p72 = scmp.ne.s32.totalorder %s60, %s61
    %p73 = scmp.eq.s32.totalorder %s16, 1
    %p74 = por %p72, %p73
    %p76 = scmp.ne.s32.totalorder %s61, %s75
    %p77 = scmp.eq.s32.totalorder %s16, 0
    %p78 = por %p76, %p77
    %s80 = sadd.s32 %s79, 1
    %p83 = scmp.eq.s32.totalorder %s10, 1
    %p84 = scmp.ne.s32.totalorder %s79, %s81
    %p85 = scmp.eq.s32.totalorder %s10, 0
    %p86 = por %p84, %p85
    %p87 = scmp.ne.s32.totalorder %s79, %s81
    %p88 = scmp.eq.s32.totalorder %s15, 1
    %p89 = por %p87, %p88
    %p90 = scmp.ne.s32.totalorder %s81, %s82
    %p91 = scmp.eq.s32.totalorder %s15, 0
    %p92 = por %p90, %p91
    %p93 = scmp.ne.s32.totalorder %s81, %s82
    %p94 = scmp.eq.s32.totalorder %s16, 1
    %p95 = por %p93, %p94
    %p97 = scmp.ne.s32.totalorder %s82, %s96
    %p98 = scmp.eq.s32.totalorder %s16, 0
    %p99 = por %p97, %p98
    %s100 = ssub.s32 %s17, %s29
    %p101 = scmp.eq.s32.totalorder %s100, 0
    %s103 = sadd.s32 %s102, 1
    %s104 = scalar_select %p101, %s102, %s103
    %p107 = pneg %p101
    %p108 = scmp.eq.s32.totalorder %s10, 1
    %p109 = por %p107, %p108
    %p110 = scmp.ne.s32.totalorder %s102, %s105
    %p111 = scmp.eq.s32.totalorder %s10, 0
    %p112 = por %p110, %p111
    %p113 = scmp.ne.s32.totalorder %s102, %s105
    %p114 = scmp.eq.s32.totalorder %s15, 1
    %p115 = por %p113, %p114
    %p116 = scmp.ne.s32.totalorder %s105, %s106
    %p117 = scmp.eq.s32.totalorder %s15, 0
    %p118 = por %p116, %p117
    %p119 = scmp.ne.s32.totalorder %s105, %s106
    %p120 = scmp.eq.s32.totalorder %s16, 1
    %p121 = por %p119, %p120
    %p123 = scmp.ne.s32.totalorder %s106, %s122
    %p124 = scmp.eq.s32.totalorder %s16, 0
    %p125 = por %p123, %p124
    %s126 = ssub.s32 %s17, %s29
    %p127 = scmp.eq.s32.totalorder %s126, 0
    %s129 = sadd.s32 %s128, 1
    %s130 = scalar_select %p127, %s128, %s129
    %p133 = pneg %p127
    %p134 = scmp.eq.s32.totalorder %s10, 1
    %p135 = por %p133, %p134
    %p136 = scmp.ne.s32.totalorder %s128, %s131
    %p137 = scmp.eq.s32.totalorder %s10, 0
    %p138 = por %p136, %p137
    %p139 = scmp.ne.s32.totalorder %s128, %s131
    %p140 = scmp.eq.s32.totalorder %s15, 1
    %p141 = por %p139, %p140
    %p142 = scmp.ne.s32.totalorder %s131, %s132
    %p143 = scmp.eq.s32.totalorder %s15, 0
    %p144 = por %p142, %p143
    %p145 = scmp.ne.s32.totalorder %s131, %s132
    %p146 = scmp.eq.s32.totalorder %s16, 1
    %p147 = por %p145, %p146
    %p149 = scmp.ne.s32.totalorder %s132, %s148
    %p150 = scmp.eq.s32.totalorder %s16, 0
    %p151 = por %p149, %p150
    %p152 = scmp.le.s32.totalorder 1, %s10
    %p153 = scmp.lt.s32.totalorder %s10, 3
    %p154 = pnand %p152, %p153
    %p155 = pneg %p154
    // Predicated region
    $region9: #{gcn_net_forward.5} parent=5 // pred_check
      _
    $region10: #{gcn_net_forward.5} parent=5 // pred_check_branch
      %157 = sbr.rel (%p154) target = $region12
    $region11: #{gcn_net_forward.5} parent=5 // pred_region
      %s158 = ssub.s32 %s10, 1
      // Predicated region
      $region13: #{gcn_net_forward.5} parent=11 // pred_check
        %p159 = pneg %p71
      $region14: #{gcn_net_forward.5} parent=11 // pred_check_branch
        %161 = sbr.rel (%p159) target = $region16
      $region15: #{gcn_net_forward.5} parent=11 // pred_region
        _
      $region16: #{gcn_net_forward.5} parent=11 // pred_fallthru
        _
      // Predicated region
      $region17: #{gcn_net_forward.5} parent=11 // pred_check
        %p162 = pneg %p92
      $region18: #{gcn_net_forward.5} parent=11 // pred_check_branch
        %164 = sbr.rel (%p162) target = $region20
      $region19: #{gcn_net_forward.5} parent=11 // pred_region
        _
      $region20: #{gcn_net_forward.5} parent=11 // pred_fallthru
        _
    $region12: #{gcn_net_forward.5} parent=5 // pred_fallthru
      _
    %p165 = scmp.lt.s32.totalorder %s10, 2
    // Predicated region
    $region21: #{gcn_net_forward.5} parent=5 // pred_check
      %p166 = pneg %p165
    $region22: #{gcn_net_forward.5} parent=5 // pred_check_branch
      %168 = sbr.rel (%p166) target = $region24
    $region23: #{gcn_net_forward.5} parent=5 // pred_region
      // Predicated region
      $region25: #{gcn_net_forward.5} parent=23 // pred_check
        %p169 = pneg %p44
      $region26: #{gcn_net_forward.5} parent=23 // pred_check_branch
        %171 = sbr.rel (%p169) target = $region28
      $region27: #{gcn_net_forward.5} parent=23 // pred_region
        %s172 = smul.u32 16, %s17
        %s173 = smul.u32 2, %s18
        %p174 = scmp.lt.s32.totalorder %s172, 31
        %s175 = scalar_select %p174, %s172, 31
        %p176 = scmp.lt.s32.totalorder %s173, 1
        %s177 = scalar_select %p176, %s173, 1
        %s178 = smul.addr %s175, 2
        %s179 = sadd.s32 %s177, %s178
        %s180 = smul.addr %s179, 4
        %s181 = scalar_lea.vmem %s0, %s180
        %s182 = smul.u32 16, %s17
        %s183 = smul.u32 2, %s18
      $region28: #{gcn_net_forward.5} parent=23 // pred_fallthru
        _
      // Predicated region
      $region29: #{gcn_net_forward.5} parent=23 // pred_check
        %p184 = pneg %p112
      $region30: #{gcn_net_forward.5} parent=23 // pred_check_branch
        %186 = sbr.rel (%p184) target = $region32
      $region31: #{gcn_net_forward.5} parent=23 // pred_region
        %p187 = scmp.lt.s32.totalorder %s17, 1
        %s188 = scalar_select %p187, %s17, 1
        %s189 = smul.addr %s188, 8
        %s190 = scalar_lea.vmem %s3, %s189
      $region32: #{gcn_net_forward.5} parent=23 // pred_fallthru
        _
    $region24: #{gcn_net_forward.5} parent=5 // pred_fallthru
      _
    %p191 = scmp.le.s32.totalorder 1, %s10
    %p192 = scmp.lt.s32.totalorder %s10, 3
    %p193 = pnand %p191, %p192
    %p194 = pneg %p193
    // Predicated region
    $region33: #{gcn_net_forward.5} parent=5 // pred_check
      _
    $region34: #{gcn_net_forward.5} parent=5 // pred_check_branch
      %196 = sbr.rel (%p193) target = $region36
    $region35: #{gcn_net_forward.5} parent=5 // pred_region
      %s197 = ssub.s32 %s10, 1
      %s198 = smul.u32 16, %s19
      %s199 = smul.u32 2, %s20
      %p200 = scmp.lt.s32.totalorder %s198, 31
      %s201 = scalar_select %p200, %s198, 31
      %p202 = scmp.lt.s32.totalorder %s199, 1
      %s203 = scalar_select %p202, %s199, 1
      %s204 = smul.addr %s201, 2
      %s205 = sadd.s32 %s203, %s204
      %s206 = smul.addr %s205, 4
      %s207 = scalar_lea.vmem %s0, %s206
      %p208 = pneg %p50
      %p209 = pneg %p47
      %p210 = pneg %p71
      %p211 = pneg %p68
      %p212 = pneg %p92
      %p213 = pneg %p89
      %p214 = scmp.lt.s32.totalorder %s19, 1
      %s215 = scalar_select %p214, %s19, 1
      %s216 = smul.addr %s215, 8
      %s217 = scalar_lea.vmem %s3, %s216
      %p218 = pneg %p118
      %p219 = pneg %p115
      %p220 = pneg %p144
      %p221 = pneg %p141
      %p222 = scmp.lt.s32.totalorder %s19, 1
      %s223 = scalar_select %p222, %s19, 1
      %s224 = smul.addr %s223, 2
      %s225 = smul.addr %s224, 8
      %s226 = scalar_lea.vmem %s4, %s225
      %s227 = smul.u32 16, %s19
      %s228 = smul.u32 2, %s20
      %p229 = scmp.lt.s32.totalorder %s227, 31
      %s230 = scalar_select %p229, %s227, 31
      %p231 = scmp.lt.s32.totalorder %s228, 1
      %s232 = scalar_select %p231, %s228, 1
      %s233 = smul.addr %s230, 2
      %s234 = sadd.s32 %s232, %s233
      %s235 = smul.addr %s234, 4
      %s236 = scalar_lea.vmem %s0, %s235
      %s237 = smul.u32 16, %s19
      %s238 = smul.u32 2, %s20
      %p239 = scmp.lt.s32.totalorder %s19, 1
      %s240 = scalar_select %p239, %s19, 1
      %s241 = smul.addr %s240, 8
      %s242 = scalar_lea.vmem %s3, %s241
      %p243 = scmp.lt.s32.totalorder %s19, 1
      %s244 = scalar_select %p243, %s19, 1
      %s245 = smul.addr %s244, 2
      %s246 = smul.addr %s245, 8
      %s247 = scalar_lea.vmem %s4, %s246
      %p248 = scmp.eq.s32.totalorder %s20, 0
      // Predicated region
      $region37: #{gcn_net_forward.5} parent=35 // pred_check
        %p249 = pneg %p248
      $region38: #{gcn_net_forward.5} parent=35 // pred_check_branch
        %251 = sbr.rel (%p249) target = $region40
      $region39: #{gcn_net_forward.5} parent=35 // pred_region
        %252 = vst [vmem:[#allocation2] sm:$0xff] 0.0
        %253 = vst [vmem:[#allocation2 + $0x8] sm:$0xff] 0.0
        %254 = vst [vmem:[#allocation2 + $0x10] sm:$0xff] 0.0
        %255 = vst [vmem:[#allocation2 + $0x18] sm:$0xff] 0.0
        %256 = vst [vmem:[#allocation2 + $0x20] sm:$0xff] 0.0
        %257 = vst [vmem:[#allocation2 + $0x28] sm:$0xff] 0.0
        %258 = vst [vmem:[#allocation2 + $0x30] sm:$0xff] 0.0
        %259 = vst [vmem:[#allocation2 + $0x38] sm:$0xff] 0.0
        %260 = vst [vmem:[#allocation2 + $0x40] sm:$0xff] 0.0
        %261 = vst [vmem:[#allocation2 + $0x48] sm:$0xff] 0.0
        %262 = vst [vmem:[#allocation2 + $0x50] sm:$0xff] 0.0
        %263 = vst [vmem:[#allocation2 + $0x58] sm:$0xff] 0.0
        %264 = vst [vmem:[#allocation2 + $0x60] sm:$0xff] 0.0
        %265 = vst [vmem:[#allocation2 + $0x68] sm:$0xff] 0.0
        %266 = vst [vmem:[#allocation2 + $0x70] sm:$0xff] 0.0
        %267 = vst [vmem:[#allocation2 + $0x78] sm:$0xff] 0.0
        %268 = vst [vmem:[#allocation2 + $0x80] sm:$0xff] 0.0
        %269 = vst [vmem:[#allocation2 + $0x88] sm:$0xff] 0.0
        %270 = vst [vmem:[#allocation2 + $0x90] sm:$0xff] 0.0
        %271 = vst [vmem:[#allocation2 + $0x98] sm:$0xff] 0.0
        %272 = vst [vmem:[#allocation2 + $0xa0] sm:$0xff] 0.0
        %273 = vst [vmem:[#allocation2 + $0xa8] sm:$0xff] 0.0
        %274 = vst [vmem:[#allocation2 + $0xb0] sm:$0xff] 0.0
        %275 = vst [vmem:[#allocation2 + $0xb8] sm:$0xff] 0.0
        %276 = vst [vmem:[#allocation2 + $0xc0] sm:$0xff] 0.0
        %277 = vst [vmem:[#allocation2 + $0xc8] sm:$0xff] 0.0
        %278 = vst [vmem:[#allocation2 + $0xd0] sm:$0xff] 0.0
        %279 = vst [vmem:[#allocation2 + $0xd8] sm:$0xff] 0.0
        %280 = vst [vmem:[#allocation2 + $0xe0] sm:$0xff] 0.0
        %281 = vst [vmem:[#allocation2 + $0xe8] sm:$0xff] 0.0
        %282 = vst [vmem:[#allocation2 + $0xf0] sm:$0xff] 0.0
        %283 = vst [vmem:[#allocation2 + $0xf8] sm:$0xff] 0.0
      $region40: #{gcn_net_forward.5} parent=35 // pred_fallthru
        _
      %s284 = smul.u32 %s20, 256
      %s285 = sshra.s32 %s284, 3
      %s286 = sand.u32 %s284, 7
      %s287 = smul.u32 %s285, 2
      %s288 = smul.addr %s287, 4
      %s289 = scalar_lea.vmem %s1, %s288
      %v290 = vld [vmem:[%s289] sm:$0xff]
      %v291 = vld [vmem:[%s289 + $0x8] sm:$0xff]
      %v292 = vld [vmem:[%s289 + $0x10] sm:$0xff]
      %v293 = vld [vmem:[%s289 + $0x18] sm:$0xff]
      %v294 = vld [vmem:[%s289 + $0x20] sm:$0xff]
      %v295 = vld [vmem:[%s289 + $0x28] sm:$0xff]
      %v296 = vld [vmem:[%s289 + $0x30] sm:$0xff]
      %v297 = vld [vmem:[%s289 + $0x38] sm:$0xff]
      %v298 = vld [vmem:[%s289 + $0x40] sm:$0xff]
      %v299 = vld [vmem:[%s289 + $0x48] sm:$0xff]
      %v300 = vld [vmem:[%s289 + $0x50] sm:$0xff]
      %v301 = vld [vmem:[%s289 + $0x58] sm:$0xff]
      %v302 = vld [vmem:[%s289 + $0x60] sm:$0xff]
      %v303 = vld [vmem:[%s289 + $0x68] sm:$0xff]
      %v304 = vld [vmem:[%s289 + $0x70] sm:$0xff]
      %v305 = vld [vmem:[%s289 + $0x78] sm:$0xff]
      %v306 = vld [vmem:[%s289 + $0x80] sm:$0xff]
      %v307 = vld [vmem:[%s289 + $0x88] sm:$0xff]
      %v308 = vld [vmem:[%s289 + $0x90] sm:$0xff]
      %v309 = vld [vmem:[%s289 + $0x98] sm:$0xff]
      %v310 = vld [vmem:[%s289 + $0xa0] sm:$0xff]
      %v311 = vld [vmem:[%s289 + $0xa8] sm:$0xff]
      %v312 = vld [vmem:[%s289 + $0xb0] sm:$0xff]
      %v313 = vld [vmem:[%s289 + $0xb8] sm:$0xff]
      %v314 = vld [vmem:[%s289 + $0xc0] sm:$0xff]
      %v315 = vld [vmem:[%s289 + $0xc8] sm:$0xff]
      %v316 = vld [vmem:[%s289 + $0xd0] sm:$0xff]
      %v317 = vld [vmem:[%s289 + $0xd8] sm:$0xff]
      %v318 = vld [vmem:[%s289 + $0xe0] sm:$0xff]
      %v319 = vld [vmem:[%s289 + $0xe8] sm:$0xff]
      %v320 = vld [vmem:[%s289 + $0xf0] sm:$0xff]
      %v321 = vld [vmem:[%s289 + $0xf8] sm:$0xff]
      %v322 = vld [vmem:[#allocation2] sm:$0xff]
      %v323 = vld [vmem:[#allocation2 + $0x8] sm:$0xff]
      %v324 = vld [vmem:[#allocation2 + $0x10] sm:$0xff]
      %v325 = vld [vmem:[#allocation2 + $0x18] sm:$0xff]
      %v326 = vld [vmem:[#allocation2 + $0x20] sm:$0xff]
      %v327 = vld [vmem:[#allocation2 + $0x28] sm:$0xff]
      %v328 = vld [vmem:[#allocation2 + $0x30] sm:$0xff]
      %v329 = vld [vmem:[#allocation2 + $0x38] sm:$0xff]
      %v330 = vld [vmem:[#allocation2 + $0x40] sm:$0xff]
      %v331 = vld [vmem:[#allocation2 + $0x48] sm:$0xff]
      %v332 = vld [vmem:[#allocation2 + $0x50] sm:$0xff]
      %v333 = vld [vmem:[#allocation2 + $0x58] sm:$0xff]
      %v334 = vld [vmem:[#allocation2 + $0x60] sm:$0xff]
      %v335 = vld [vmem:[#allocation2 + $0x68] sm:$0xff]
      %v336 = vld [vmem:[#allocation2 + $0x70] sm:$0xff]
      %v337 = vld [vmem:[#allocation2 + $0x78] sm:$0xff]
      %v338 = vld [vmem:[#allocation2 + $0x80] sm:$0xff]
      %v339 = vld [vmem:[#allocation2 + $0x88] sm:$0xff]
      %v340 = vld [vmem:[#allocation2 + $0x90] sm:$0xff]
      %v341 = vld [vmem:[#allocation2 + $0x98] sm:$0xff]
      %v342 = vld [vmem:[#allocation2 + $0xa0] sm:$0xff]
      %v343 = vld [vmem:[#allocation2 + $0xa8] sm:$0xff]
      %v344 = vld [vmem:[#allocation2 + $0xb0] sm:$0xff]
      %v345 = vld [vmem:[#allocation2 + $0xb8] sm:$0xff]
      %v346 = vld [vmem:[#allocation2 + $0xc0] sm:$0xff]
      %v347 = vld [vmem:[#allocation2 + $0xc8] sm:$0xff]
      %v348 = vld [vmem:[#allocation2 + $0xd0] sm:$0xff]
      %v349 = vld [vmem:[#allocation2 + $0xd8] sm:$0xff]
      %v350 = vld [vmem:[#allocation2 + $0xe0] sm:$0xff]
      %v351 = vld [vmem:[#allocation2 + $0xe8] sm:$0xff]
      %v352 = vld [vmem:[#allocation2 + $0xf0] sm:$0xff]
      %v353 = vld [vmem:[#allocation2 + $0xf8] sm:$0xff]
      %v354 = vld [vmem:[%s236] sm:$0xff]
      %v355 = vld [vmem:[%s236 + $0x8] sm:$0xff]
      %v356 = vld [vmem:[%s236 + $0x10] sm:$0xff]
      %v357 = vld [vmem:[%s236 + $0x18] sm:$0xff]
      %v358 = vld [vmem:[%s236 + $0x20] sm:$0xff]
      %v359 = vld [vmem:[%s236 + $0x28] sm:$0xff]
      %v360 = vld [vmem:[%s236 + $0x30] sm:$0xff]
      %v361 = vld [vmem:[%s236 + $0x38] sm:$0xff]
      %v362 = vld [vmem:[%s236 + $0x40] sm:$0xff]
      %v363 = vld [vmem:[%s236 + $0x48] sm:$0xff]
      %v364 = vld [vmem:[%s236 + $0x50] sm:$0xff]
      %v365 = vld [vmem:[%s236 + $0x58] sm:$0xff]
      %v366 = vld [vmem:[%s236 + $0x60] sm:$0xff]
      %v367 = vld [vmem:[%s236 + $0x68] sm:$0xff]
      %v368 = vld [vmem:[%s236 + $0x70] sm:$0xff]
      %v369 = vld [vmem:[%s236 + $0x78] sm:$0xff]
      %v386 = vunpack.c.l.b16 %v354
      %v387 = vunpack.c.h.b16 %v354
      %v388 = vunpack.c.l.b16 %v355
      %v389 = vunpack.c.h.b16 %v355
      %v390 = vunpack.c.l.b16 %v356
      %v391 = vunpack.c.h.b16 %v356
      %v392 = vunpack.c.l.b16 %v357
      %v393 = vunpack.c.h.b16 %v357
      %v394 = vunpack.c.l.b16 %v358
      %v395 = vunpack.c.h.b16 %v358
      %v396 = vunpack.c.l.b16 %v359
      %v397 = vunpack.c.h.b16 %v359
      %v398 = vunpack.c.l.b16 %v360
      %v399 = vunpack.c.h.b16 %v360
      %v400 = vunpack.c.l.b16 %v361
      %v401 = vunpack.c.h.b16 %v361
      %v402 = vunpack.c.l.b16 %v362
      %v403 = vunpack.c.h.b16 %v362
      %v404 = vunpack.c.l.b16 %v363
      %v405 = vunpack.c.h.b16 %v363
      %v406 = vunpack.c.l.b16 %v364
      %v407 = vunpack.c.h.b16 %v364
      %v408 = vunpack.c.l.b16 %v365
      %v409 = vunpack.c.h.b16 %v365
      %v410 = vunpack.c.l.b16 %v366
      %v411 = vunpack.c.h.b16 %v366
      %v412 = vunpack.c.l.b16 %v367
      %v413 = vunpack.c.h.b16 %v367
      %v414 = vunpack.c.l.b16 %v368
      %v415 = vunpack.c.h.b16 %v368
      %v416 = vunpack.c.l.b16 %v369
      %v417 = vunpack.c.h.b16 %v369
      %v418 = vpack.c.b16 %v388, %v386
      %v419 = vpack.c.b16 %v389, %v387
      %v420 = vpack.c.b16 %v392, %v390
      %v421 = vpack.c.b16 %v393, %v391
      %v422 = vpack.c.b16 %v396, %v394
      %v423 = vpack.c.b16 %v397, %v395
      %v424 = vpack.c.b16 %v400, %v398
      %v425 = vpack.c.b16 %v401, %v399
      %v426 = vpack.c.b16 %v404, %v402
      %v427 = vpack.c.b16 %v405, %v403
      %v428 = vpack.c.b16 %v408, %v406
      %v429 = vpack.c.b16 %v409, %v407
      %v430 = vpack.c.b16 %v412, %v410
      %v431 = vpack.c.b16 %v413, %v411
      %v432 = vpack.c.b16 %v416, %v414
      %v433 = vpack.c.b16 %v417, %v415
      %v482 = vunpack.c.l.b16 %v290
      %v483 = vunpack.c.h.b16 %v290
      %v484 = vunpack.c.l.b16 %v291
      %v485 = vunpack.c.h.b16 %v291
      %v486 = vunpack.c.l.b16 %v292
      %v487 = vunpack.c.h.b16 %v292
      %v488 = vunpack.c.l.b16 %v293
      %v489 = vunpack.c.h.b16 %v293
      %v490 = vunpack.c.l.b16 %v294
      %v491 = vunpack.c.h.b16 %v294
      %v492 = vunpack.c.l.b16 %v295
      %v493 = vunpack.c.h.b16 %v295
      %v494 = vunpack.c.l.b16 %v296
      %v495 = vunpack.c.h.b16 %v296
      %v496 = vunpack.c.l.b16 %v297
      %v497 = vunpack.c.h.b16 %v297
      %v498 = vunpack.c.l.b16 %v298
      %v499 = vunpack.c.h.b16 %v298
      %v500 = vunpack.c.l.b16 %v299
      %v501 = vunpack.c.h.b16 %v299
      %v502 = vunpack.c.l.b16 %v300
      %v503 = vunpack.c.h.b16 %v300
      %v504 = vunpack.c.l.b16 %v301
      %v505 = vunpack.c.h.b16 %v301
      %v506 = vunpack.c.l.b16 %v302
      %v507 = vunpack.c.h.b16 %v302
      %v508 = vunpack.c.l.b16 %v303
      %v509 = vunpack.c.h.b16 %v303
      %v510 = vunpack.c.l.b16 %v304
      %v511 = vunpack.c.h.b16 %v304
      %v512 = vunpack.c.l.b16 %v305
      %v513 = vunpack.c.h.b16 %v305
      %v514 = vunpack.c.l.b16 %v306
      %v515 = vunpack.c.h.b16 %v306
      %v516 = vunpack.c.l.b16 %v307
      %v517 = vunpack.c.h.b16 %v307
      %v518 = vunpack.c.l.b16 %v308
      %v519 = vunpack.c.h.b16 %v308
      %v520 = vunpack.c.l.b16 %v309
      %v521 = vunpack.c.h.b16 %v309
      %v522 = vunpack.c.l.b16 %v310
      %v523 = vunpack.c.h.b16 %v310
      %v524 = vunpack.c.l.b16 %v311
      %v525 = vunpack.c.h.b16 %v311
      %v526 = vunpack.c.l.b16 %v312
      %v527 = vunpack.c.h.b16 %v312
      %v528 = vunpack.c.l.b16 %v313
      %v529 = vunpack.c.h.b16 %v313
      %v530 = vunpack.c.l.b16 %v314
      %v531 = vunpack.c.h.b16 %v314
      %v532 = vunpack.c.l.b16 %v315
      %v533 = vunpack.c.h.b16 %v315
      %v534 = vunpack.c.l.b16 %v316
      %v535 = vunpack.c.h.b16 %v316
      %v536 = vunpack.c.l.b16 %v317
      %v537 = vunpack.c.h.b16 %v317
      %v538 = vunpack.c.l.b16 %v318
      %v539 = vunpack.c.h.b16 %v318
      %v540 = vunpack.c.l.b16 %v319
      %v541 = vunpack.c.h.b16 %v319
      %v542 = vunpack.c.l.b16 %v320
      %v543 = vunpack.c.h.b16 %v320
      %v544 = vunpack.c.l.b16 %v321
      %v545 = vunpack.c.h.b16 %v321
      %v546 = vpack.c.b16 %v484, %v482
      %v547 = vpack.c.b16 %v485, %v483
      %v548 = vpack.c.b16 %v488, %v486
      %v549 = vpack.c.b16 %v489, %v487
      %v550 = vpack.c.b16 %v492, %v490
      %v551 = vpack.c.b16 %v493, %v491
      %v552 = vpack.c.b16 %v496, %v494
      %v553 = vpack.c.b16 %v497, %v495
      %v554 = vpack.c.b16 %v500, %v498
      %v555 = vpack.c.b16 %v501, %v499
      %v556 = vpack.c.b16 %v504, %v502
      %v557 = vpack.c.b16 %v505, %v503
      %v558 = vpack.c.b16 %v508, %v506
      %v559 = vpack.c.b16 %v509, %v507
      %v560 = vpack.c.b16 %v512, %v510
      %v561 = vpack.c.b16 %v513, %v511
      %v562 = vpack.c.b16 %v516, %v514
      %v563 = vpack.c.b16 %v517, %v515
      %v564 = vpack.c.b16 %v520, %v518
      %v565 = vpack.c.b16 %v521, %v519
      %v566 = vpack.c.b16 %v524, %v522
      %v567 = vpack.c.b16 %v525, %v523
      %v568 = vpack.c.b16 %v528, %v526
      %v569 = vpack.c.b16 %v529, %v527
      %v570 = vpack.c.b16 %v532, %v530
      %v571 = vpack.c.b16 %v533, %v531
      %v572 = vpack.c.b16 %v536, %v534
      %v573 = vpack.c.b16 %v537, %v535
      %v574 = vpack.c.b16 %v540, %v538
      %v575 = vpack.c.b16 %v541, %v539
      %v576 = vpack.c.b16 %v544, %v542
      %v577 = vpack.c.b16 %v545, %v543
      %610 = vmatprep.subr.bf16.mxu0 %v561
      %611 = vmatpush1.bf16.msra.mxu0 %v560
      %612 = vmatprep.subr.bf16.mxu0 %v559
      %613 = vmatpush1.bf16.msra.mxu0 %v558
      %614 = vmatprep.subr.bf16.mxu0 %v557
      %615 = vmatpush1.bf16.msra.mxu0 %v556
      %616 = vmatprep.subr.bf16.mxu0 %v555
      %617 = vmatpush1.bf16.msra.mxu0 %v554
      %618 = vmatprep.subr.bf16.mxu0 %v553
      %619 = vmatpush1.bf16.msra.mxu0 %v552
      %620 = vmatprep.subr.bf16.mxu0 %v551
      %621 = vmatpush1.bf16.msra.mxu0 %v550
      %622 = vmatprep.subr.bf16.mxu0 %v549
      %623 = vmatpush1.bf16.msra.mxu0 %v548
      %624 = vmatprep.subr.bf16.mxu0 %v547
      %625 = vmatpush1.bf16.msra.mxu0 %v546
      %626 = vmatprep.subr.bf16.mxu0 %v577
      %627 = vmatpush2.bf16.msra.mxu0 %v576
      %628 = vmatprep.subr.bf16.mxu0 %v575
      %629 = vmatpush2.bf16.msra.mxu0 %v574
      %630 = vmatprep.subr.bf16.mxu0 %v573
      %631 = vmatpush2.bf16.msra.mxu0 %v572
      %632 = vmatprep.subr.bf16.mxu0 %v571
      %633 = vmatpush2.bf16.msra.mxu0 %v570
      %634 = vmatprep.subr.bf16.mxu0 %v569
      %635 = vmatpush2.bf16.msra.mxu0 %v568
      %636 = vmatprep.subr.bf16.mxu0 %v567
      %637 = vmatpush2.bf16.msra.mxu0 %v566
      %638 = vmatprep.subr.bf16.mxu0 %v565
      %639 = vmatpush2.bf16.msra.mxu0 %v564
      %640 = vmatprep.subr.bf16.mxu0 %v563
      %641 = vmatpush2.bf16.msra.mxu0 %v562
      %642 = vmatprep.mubr.bf16.mxu0 %v419
      %643 = vmatmul.mubr.bf16.gmra.mxu0 %v418
      %v644 = vpop.f32.mrf.mxu0
      %v645 = vadd.f32 0.0, %v644
      %v646 = vpop.f32.mrf.mxu0
      %v647 = vadd.f32 0.0, %v646
      %v648 = vpop.f32.mrf.mxu0
      %v649 = vadd.f32 0.0, %v648
      %v650 = vpop.f32.mrf.mxu0
      %v651 = vadd.f32 0.0, %v650
      %652 = vmatprep.mubr.bf16.mxu0 %v421
      %653 = vmatmul.mubr.bf16.gmra.mxu0 %v420
      %v654 = vpop.f32.mrf.mxu0
      %v655 = vadd.f32 0.0, %v654
      %v656 = vpop.f32.mrf.mxu0
      %v657 = vadd.f32 0.0, %v656
      %v658 = vpop.f32.mrf.mxu0
      %v659 = vadd.f32 0.0, %v658
      %v660 = vpop.f32.mrf.mxu0
      %v661 = vadd.f32 0.0, %v660
      %662 = vmatprep.mubr.bf16.mxu0 %v423
      %663 = vmatmul.mubr.bf16.gmra.mxu0 %v422
      %v664 = vpop.f32.mrf.mxu0
      %v665 = vadd.f32 0.0, %v664
      %v666 = vpop.f32.mrf.mxu0
      %v667 = vadd.f32 0.0, %v666
      %v668 = vpop.f32.mrf.mxu0
      %v669 = vadd.f32 0.0, %v668
      %v670 = vpop.f32.mrf.mxu0
      %v671 = vadd.f32 0.0, %v670
      %672 = vmatprep.mubr.bf16.mxu0 %v425
      %673 = vmatmul.mubr.bf16.gmra.mxu0 %v424
      %v674 = vpop.f32.mrf.mxu0
      %v675 = vadd.f32 0.0, %v674
      %v676 = vpop.f32.mrf.mxu0
      %v677 = vadd.f32 0.0, %v676
      %v678 = vpop.f32.mrf.mxu0
      %v679 = vadd.f32 0.0, %v678
      %v680 = vpop.f32.mrf.mxu0
      %v681 = vadd.f32 0.0, %v680
      %682 = vmatprep.mubr.bf16.mxu0 %v427
      %683 = vmatmul.mubr.bf16.gmra.mxu0 %v426
      %v684 = vpop.f32.mrf.mxu0
      %v685 = vadd.f32 0.0, %v684
      %v686 = vpop.f32.mrf.mxu0
      %v687 = vadd.f32 0.0, %v686
      %v688 = vpop.f32.mrf.mxu0
      %v689 = vadd.f32 0.0, %v688
      %v690 = vpop.f32.mrf.mxu0
      %v691 = vadd.f32 0.0, %v690
      %692 = vmatprep.mubr.bf16.mxu0 %v429
      %693 = vmatmul.mubr.bf16.gmra.mxu0 %v428
      %v694 = vpop.f32.mrf.mxu0
      %v695 = vadd.f32 0.0, %v694
      %v696 = vpop.f32.mrf.mxu0
      %v697 = vadd.f32 0.0, %v696
      %v698 = vpop.f32.mrf.mxu0
      %v699 = vadd.f32 0.0, %v698
      %v700 = vpop.f32.mrf.mxu0
      %v701 = vadd.f32 0.0, %v700
      %702 = vmatprep.mubr.bf16.mxu0 %v431
      %703 = vmatmul.mubr.bf16.gmra.mxu0 %v430
      %v704 = vpop.f32.mrf.mxu0
      %v705 = vadd.f32 0.0, %v704
      %v706 = vpop.f32.mrf.mxu0
      %v707 = vadd.f32 0.0, %v706
      %v708 = vpop.f32.mrf.mxu0
      %v709 = vadd.f32 0.0, %v708
      %v710 = vpop.f32.mrf.mxu0
      %v711 = vadd.f32 0.0, %v710
      %712 = vmatprep.mubr.bf16.mxu0 %v433
      %713 = vmatmul.mubr.bf16.gmra.mxu0 %v432
      %v714 = vpop.f32.mrf.mxu0
      %v715 = vadd.f32 0.0, %v714
      %v716 = vpop.f32.mrf.mxu0
      %v717 = vadd.f32 0.0, %v716
      %v718 = vpop.f32.mrf.mxu0
      %v719 = vadd.f32 0.0, %v718
      %v720 = vpop.f32.mrf.mxu0
      %v721 = vadd.f32 0.0, %v720
      %722 = vdwg.mxu0
      %v723 = vadd.f32 %v322, %v645
      %v724 = vadd.f32 %v323, %v647
      %v725 = vadd.f32 %v324, %v649
      %v726 = vadd.f32 %v325, %v651
      %v727 = vadd.f32 %v326, %v655
      %v728 = vadd.f32 %v327, %v657
      %v729 = vadd.f32 %v328, %v659
      %v730 = vadd.f32 %v329, %v661
      %v731 = vadd.f32 %v330, %v665
      %v732 = vadd.f32 %v331, %v667
      %v733 = vadd.f32 %v332, %v669
      %v734 = vadd.f32 %v333, %v671
      %v735 = vadd.f32 %v334, %v675
      %v736 = vadd.f32 %v335, %v677
      %v737 = vadd.f32 %v336, %v679
      %v738 = vadd.f32 %v337, %v681
      %v739 = vadd.f32 %v338, %v685
      %v740 = vadd.f32 %v339, %v687
      %v741 = vadd.f32 %v340, %v689
      %v742 = vadd.f32 %v341, %v691
      %v743 = vadd.f32 %v342, %v695
      %v744 = vadd.f32 %v343, %v697
      %v745 = vadd.f32 %v344, %v699
      %v746 = vadd.f32 %v345, %v701
      %v747 = vadd.f32 %v346, %v705
      %v748 = vadd.f32 %v347, %v707
      %v749 = vadd.f32 %v348, %v709
      %v750 = vadd.f32 %v349, %v711
      %v751 = vadd.f32 %v350, %v715
      %v752 = vadd.f32 %v351, %v717
      %v753 = vadd.f32 %v352, %v719
      %v754 = vadd.f32 %v353, %v721
      %755 = vst [vmem:[#allocation2] sm:$0xff] %v723
      %756 = vst [vmem:[#allocation2 + $0x8] sm:$0xff] %v724
      %757 = vst [vmem:[#allocation2 + $0x10] sm:$0xff] %v725
      %758 = vst [vmem:[#allocation2 + $0x18] sm:$0xff] %v726
      %759 = vst [vmem:[#allocation2 + $0x20] sm:$0xff] %v727
      %760 = vst [vmem:[#allocation2 + $0x28] sm:$0xff] %v728
      %761 = vst [vmem:[#allocation2 + $0x30] sm:$0xff] %v729
      %762 = vst [vmem:[#allocation2 + $0x38] sm:$0xff] %v730
      %763 = vst [vmem:[#allocation2 + $0x40] sm:$0xff] %v731
      %764 = vst [vmem:[#allocation2 + $0x48] sm:$0xff] %v732
      %765 = vst [vmem:[#allocation2 + $0x50] sm:$0xff] %v733
      %766 = vst [vmem:[#allocation2 + $0x58] sm:$0xff] %v734
      %767 = vst [vmem:[#allocation2 + $0x60] sm:$0xff] %v735
      %768 = vst [vmem:[#allocation2 + $0x68] sm:$0xff] %v736
      %769 = vst [vmem:[#allocation2 + $0x70] sm:$0xff] %v737
      %770 = vst [vmem:[#allocation2 + $0x78] sm:$0xff] %v738
      %771 = vst [vmem:[#allocation2 + $0x80] sm:$0xff] %v739
      %772 = vst [vmem:[#allocation2 + $0x88] sm:$0xff] %v740
      %773 = vst [vmem:[#allocation2 + $0x90] sm:$0xff] %v741
      %774 = vst [vmem:[#allocation2 + $0x98] sm:$0xff] %v742
      %775 = vst [vmem:[#allocation2 + $0xa0] sm:$0xff] %v743
      %776 = vst [vmem:[#allocation2 + $0xa8] sm:$0xff] %v744
      %777 = vst [vmem:[#allocation2 + $0xb0] sm:$0xff] %v745
      %778 = vst [vmem:[#allocation2 + $0xb8] sm:$0xff] %v746
      %779 = vst [vmem:[#allocation2 + $0xc0] sm:$0xff] %v747
      %780 = vst [vmem:[#allocation2 + $0xc8] sm:$0xff] %v748
      %781 = vst [vmem:[#allocation2 + $0xd0] sm:$0xff] %v749
      %782 = vst [vmem:[#allocation2 + $0xd8] sm:$0xff] %v750
      %783 = vst [vmem:[#allocation2 + $0xe0] sm:$0xff] %v751
      %784 = vst [vmem:[#allocation2 + $0xe8] sm:$0xff] %v752
      %785 = vst [vmem:[#allocation2 + $0xf0] sm:$0xff] %v753
      %786 = vst [vmem:[#allocation2 + $0xf8] sm:$0xff] %v754
      // Predicated region
      $region41: #{gcn_net_forward.5} parent=35 // pred_check
        %p787 = pneg %p248
      $region42: #{gcn_net_forward.5} parent=35 // pred_check_branch
        %789 = sbr.rel (%p787) target = $region44
      $region43: #{gcn_net_forward.5} parent=35 // pred_region
        %v790 = vld [vmem:[#allocation2] sm:$0xff]
        %v791 = vld [vmem:[#allocation2 + $0x8] sm:$0xff]
        %v792 = vld [vmem:[#allocation2 + $0x10] sm:$0xff]
        %v793 = vld [vmem:[#allocation2 + $0x18] sm:$0xff]
        %v794 = vld [vmem:[#allocation2 + $0x20] sm:$0xff]
        %v795 = vld [vmem:[#allocation2 + $0x28] sm:$0xff]
        %v796 = vld [vmem:[#allocation2 + $0x30] sm:$0xff]
        %v797 = vld [vmem:[#allocation2 + $0x38] sm:$0xff]
        %v798 = vld [vmem:[#allocation2 + $0x40] sm:$0xff]
        %v799 = vld [vmem:[#allocation2 + $0x48] sm:$0xff]
        %v800 = vld [vmem:[#allocation2 + $0x50] sm:$0xff]
        %v801 = vld [vmem:[#allocation2 + $0x58] sm:$0xff]
        %v802 = vld [vmem:[#allocation2 + $0x60] sm:$0xff]
        %v803 = vld [vmem:[#allocation2 + $0x68] sm:$0xff]
        %v804 = vld [vmem:[#allocation2 + $0x70] sm:$0xff]
        %v805 = vld [vmem:[#allocation2 + $0x78] sm:$0xff]
        %v806 = vld [vmem:[#allocation2 + $0x80] sm:$0xff]
        %v807 = vld [vmem:[#allocation2 + $0x88] sm:$0xff]
        %v808 = vld [vmem:[#allocation2 + $0x90] sm:$0xff]
        %v809 = vld [vmem:[#allocation2 + $0x98] sm:$0xff]
        %v810 = vld [vmem:[#allocation2 + $0xa0] sm:$0xff]
        %v811 = vld [vmem:[#allocation2 + $0xa8] sm:$0xff]
        %v812 = vld [vmem:[#allocation2 + $0xb0] sm:$0xff]
        %v813 = vld [vmem:[#allocation2 + $0xb8] sm:$0xff]
        %v814 = vld [vmem:[#allocation2 + $0xc0] sm:$0xff]
        %v815 = vld [vmem:[#allocation2 + $0xc8] sm:$0xff]
        %v816 = vld [vmem:[#allocation2 + $0xd0] sm:$0xff]
        %v817 = vld [vmem:[#allocation2 + $0xd8] sm:$0xff]
        %v818 = vld [vmem:[#allocation2 + $0xe0] sm:$0xff]
        %v819 = vld [vmem:[#allocation2 + $0xe8] sm:$0xff]
        %v820 = vld [vmem:[#allocation2 + $0xf0] sm:$0xff]
        %v821 = vld [vmem:[#allocation2 + $0xf8] sm:$0xff]
        %v822 = vld [vmem:[%s2] sm:$0x3]
        %v824 = vlaneseq
        %v825 = vshrl.u32 %v824, 7
        %v826 = vsub.s32 0, %v825
        %v827 = vrot.slane %v822, %v826
        %v828 = vlaneseq
        %v829 = vshrl.u32 %v828, 7
        %v830 = vsub.s32 1, %v829
        %v831 = vrot.slane %v822, %v830
        %v834 = vadd.f32 %v790, %v827
        %v835 = vadd.f32 %v791, %v831
        %v836 = vadd.f32 %v792, %v827
        %v837 = vadd.f32 %v793, %v831
        %v838 = vadd.f32 %v794, %v827
        %v839 = vadd.f32 %v795, %v831
        %v840 = vadd.f32 %v796, %v827
        %v841 = vadd.f32 %v797, %v831
        %v842 = vadd.f32 %v798, %v827
        %v843 = vadd.f32 %v799, %v831
        %v844 = vadd.f32 %v800, %v827
        %v845 = vadd.f32 %v801, %v831
        %v846 = vadd.f32 %v802, %v827
        %v847 = vadd.f32 %v803, %v831
        %v848 = vadd.f32 %v804, %v827
        %v849 = vadd.f32 %v805, %v831
        %v850 = vadd.f32 %v806, %v827
        %v851 = vadd.f32 %v807, %v831
        %v852 = vadd.f32 %v808, %v827
        %v853 = vadd.f32 %v809, %v831
        %v854 = vadd.f32 %v810, %v827
        %v855 = vadd.f32 %v811, %v831
        %v856 = vadd.f32 %v812, %v827
        %v857 = vadd.f32 %v813, %v831
        %v858 = vadd.f32 %v814, %v827
        %v859 = vadd.f32 %v815, %v831
        %v860 = vadd.f32 %v816, %v827
        %v861 = vadd.f32 %v817, %v831
        %v862 = vadd.f32 %v818, %v827
        %v863 = vadd.f32 %v819, %v831
        %v864 = vadd.f32 %v820, %v827
        %v865 = vadd.f32 %v821, %v831
        %v866 = vmax.f32 %v834, 0.0
        %v867 = vmax.f32 %v835, 0.0
        %v868 = vmax.f32 %v836, 0.0
        %v869 = vmax.f32 %v837, 0.0
        %v870 = vmax.f32 %v838, 0.0
        %v871 = vmax.f32 %v839, 0.0
        %v872 = vmax.f32 %v840, 0.0
        %v873 = vmax.f32 %v841, 0.0
        %v874 = vmax.f32 %v842, 0.0
        %v875 = vmax.f32 %v843, 0.0
        %v876 = vmax.f32 %v844, 0.0
        %v877 = vmax.f32 %v845, 0.0
        %v878 = vmax.f32 %v846, 0.0
        %v879 = vmax.f32 %v847, 0.0
        %v880 = vmax.f32 %v848, 0.0
        %v881 = vmax.f32 %v849, 0.0
        %v882 = vmax.f32 %v850, 0.0
        %v883 = vmax.f32 %v851, 0.0
        %v884 = vmax.f32 %v852, 0.0
        %v885 = vmax.f32 %v853, 0.0
        %v886 = vmax.f32 %v854, 0.0
        %v887 = vmax.f32 %v855, 0.0
        %v888 = vmax.f32 %v856, 0.0
        %v889 = vmax.f32 %v857, 0.0
        %v890 = vmax.f32 %v858, 0.0
        %v891 = vmax.f32 %v859, 0.0
        %v892 = vmax.f32 %v860, 0.0
        %v893 = vmax.f32 %v861, 0.0
        %v894 = vmax.f32 %v862, 0.0
        %v895 = vmax.f32 %v863, 0.0
        %v896 = vmax.f32 %v864, 0.0
        %v897 = vmax.f32 %v865, 0.0
        %v898 = vld [vmem:[%s242] sm:$0xff]
        %899 = vmatprep.subr.mxu0 %v897
        %900 = vmatpush1.msra.mxu0 %v896
        %901 = vmatprep.subr.mxu0 %v895
        %902 = vmatpush1.msra.mxu0 %v894
        %903 = vmatprep.subr.mxu0 %v893
        %904 = vmatpush1.msra.mxu0 %v892
        %905 = vmatprep.subr.mxu0 %v891
        %906 = vmatpush1.msra.mxu0 %v890
        %907 = vmatprep.subr.mxu0 %v889
        %908 = vmatpush1.msra.mxu0 %v888
        %909 = vmatprep.subr.mxu0 %v887
        %910 = vmatpush1.msra.mxu0 %v886
        %911 = vmatprep.subr.mxu0 %v885
        %912 = vmatpush1.msra.mxu0 %v884
        %913 = vmatprep.subr.mxu0 %v883
        %914 = vmatpush1.msra.mxu0 %v882
        %915 = vmatprep.subr.mxu0 %v881
        %916 = vmatpush1.msra.mxu0 %v880
        %917 = vmatprep.subr.mxu0 %v879
        %918 = vmatpush1.msra.mxu0 %v878
        %919 = vmatprep.subr.mxu0 %v877
        %920 = vmatpush1.msra.mxu0 %v876
        %921 = vmatprep.subr.mxu0 %v875
        %922 = vmatpush1.msra.mxu0 %v874
        %923 = vmatprep.subr.mxu0 %v873
        %924 = vmatpush1.msra.mxu0 %v872
        %925 = vmatprep.subr.mxu0 %v871
        %926 = vmatpush1.msra.mxu0 %v870
        %927 = vmatprep.subr.mxu0 %v869
        %928 = vmatpush1.msra.mxu0 %v868
        %929 = vmatprep.subr.mxu0 %v867
        %930 = vmatpush1.msra.mxu0 %v866
        %931 = vmatprep.subr.mxu0 0.0
        %932 = vmatpush2.msra.mxu0 0.0
        %933 = vmatprep.subr.mxu0 0.0
        %934 = vmatpush2.msra.mxu0 0.0
        %935 = vmatprep.subr.mxu0 0.0
        %936 = vmatpush2.msra.mxu0 0.0
        %937 = vmatprep.subr.mxu0 0.0
        %938 = vmatpush2.msra.mxu0 0.0
        %939 = vmatprep.subr.mxu0 0.0
        %940 = vmatpush2.msra.mxu0 0.0
        %941 = vmatprep.subr.mxu0 0.0
        %942 = vmatpush2.msra.mxu0 0.0
        %943 = vmatprep.subr.mxu0 0.0
        %944 = vmatpush2.msra.mxu0 0.0
        %945 = vmatprep.subr.mxu0 0.0
        %946 = vmatpush2.msra.mxu0 0.0
        %947 = vmatprep.subr.mxu0 0.0
        %948 = vmatpush2.msra.mxu0 0.0
        %949 = vmatprep.subr.mxu0 0.0
        %950 = vmatpush2.msra.mxu0 0.0
        %951 = vmatprep.subr.mxu0 0.0
        %952 = vmatpush2.msra.mxu0 0.0
        %953 = vmatprep.subr.mxu0 0.0
        %954 = vmatpush2.msra.mxu0 0.0
        %955 = vmatprep.subr.mxu0 0.0
        %956 = vmatpush2.msra.mxu0 0.0
        %957 = vmatprep.subr.mxu0 0.0
        %958 = vmatpush2.msra.mxu0 0.0
        %959 = vmatprep.subr.mxu0 0.0
        %960 = vmatpush2.msra.mxu0 0.0
        %961 = vmatprep.subr.mxu0 0.0
        %962 = vmatpush2.msra.mxu0 0.0
        %963 = vmatprep.mubr.f32.mxu0 0.0
        %964 = vmatmul.mubr.f32.gmra.mxu0 %v898
        %v965 = vpop.f32.mrf.mxu0
        %v966 = vadd.f32 0.0, %v965
        %v967 = vpop.f32.mrf.mxu0
        %v968 = vadd.f32 0.0, %v967
        %969 = vdwg.mxu0
        %970 = vst [vmem:[%s247] sm:$0xff] %v966
        %971 = vst [vmem:[%s247 + $0x8] sm:$0xff] %v968
      $region44: #{gcn_net_forward.5} parent=35 // pred_fallthru
        _
      %p972 = scmp.lt.s32.totalorder %s19, 1
      %s973 = scalar_select %p972, %s19, 1
      %s974 = smul.addr %s973, 2
      %s975 = smul.addr %s974, 8
      %s976 = scalar_lea.vmem %s4, %s975
      // Predicated region
      $region45: #{gcn_net_forward.5} parent=35 // pred_check
        %p977 = pneg %p141
      $region46: #{gcn_net_forward.5} parent=35 // pred_check_branch
        %979 = sbr.rel (%p977) target = $region48
      $region47: #{gcn_net_forward.5} parent=35 // pred_region
        _
      $region48: #{gcn_net_forward.5} parent=35 // pred_fallthru
        _
    $region36: #{gcn_net_forward.5} parent=5 // pred_fallthru
      _
    %p980 = scmp.le.s32.totalorder 2, %s10
    // Predicated region
    $region49: #{gcn_net_forward.5} parent=5 // pred_check
      %p981 = pneg %p980
    $region50: #{gcn_net_forward.5} parent=5 // pred_check_branch
      %983 = sbr.rel (%p981) target = $region52
    $region51: #{gcn_net_forward.5} parent=5 // pred_region
      %s984 = ssub.s32 %s10, 2
      // Predicated region
      $region53: #{gcn_net_forward.5} parent=51 // pred_check
        %p985 = pneg %p147
      $region54: #{gcn_net_forward.5} parent=51 // pred_check_branch
        %987 = sbr.rel (%p985) target = $region56
      $region55: #{gcn_net_forward.5} parent=51 // pred_region
        %p988 = scmp.lt.s32.totalorder %s21, 1
        %s989 = scalar_select %p988, %s21, 1
        %s990 = smul.addr %s989, 2
        %s991 = smul.addr %s990, 8
        %s992 = scalar_lea.vmem %s4, %s991
      $region56: #{gcn_net_forward.5} parent=51 // pred_fallthru
        _
    $region52: #{gcn_net_forward.5} parent=5 // pred_fallthru
      _
  $region6: #{gcn_net_forward.5} parent=0 // loop_footer
    %s14 = sadd.s32 1, %s10
  $region7: #{gcn_net_forward.5} parent=0 // loop_footer_branch
    %9 = sbr.rel target = $region3
  $region8: #{gcn_net_forward.5} parent=0 // loop_exit
    _

// kernel: gcn_net_forward.4
$region0: #{gcn_net_forward.4}
  #allocation0 [shape = 'u32[]', space=smem, size = 0x4, offset = 0x4, fixed_abs, tag = 'smem constant byte address 0x4 - core index']
  #allocation1 [shape = 'u32[144,128]{1,0:T(1,128)}', space=vmem, size = 0x12000, scoped, tag = 'internal scratch']
  #allocation2 [shape = 'f32[128,256]{1,0:T(8,128)}', space=vmem, size = 0x20000, scoped, tag = 'scratch operand']
  %s0 = inlined_call_operand.vmem [shape: bf16[256,256], index: 0, kind: input, shape index: {}]
  %s1 = inlined_call_operand.vmem [shape: bf16[256,256], index: 1, kind: input, shape index: {}]
  %s2 = inlined_call_operand.vmem [shape: f32[1,256], index: 2, kind: input, shape index: {}]
  %s3 = inlined_call_operand.vmem [shape: bf16[256,256], index: 3, kind: input, shape index: {}]
  %s4 = inlined_call_operand.vmem [shape: bf16[256,256], index: 4, kind: output, shape index: {}]
  %s5 = sld [smem:[#allocation0]]
  $region57: #{gcn_net_forward.4} parent=0
    _
  %s7 = ssub.s32 1, %s5
  %s8 = scalar_select 0, %s7, %s5
  loop: start=0, step=1, limit=4
  $region2: #{gcn_net_forward.4} parent=0 // loop_pre_header
    _
  $region3: #{gcn_net_forward.4} parent=0 // loop_header
    %s10 = sphi 0, %s14
    %p11 = scmp.ge.s32.totalorder %s10, 4
    %s17 = sphi 0, %s29
    %s18 = sphi 0, %s25
    %s19 = sphi 0, %s17
    %s20 = sphi 0, %s18
    %s21 = sphi 0, %s19
    %s22 = sphi 0, %s20
    %s34 = sphi 0, %s36
    %s37 = sphi 0, %s34
    %s38 = sphi 0, %s37
    %s54 = sphi 0, %s38
    %s58 = sphi 0, %s58
    %s60 = sphi 0, %s58
    %s61 = sphi 0, %s60
    %s75 = sphi 0, %s61
    %s79 = sphi 0, %s79
    %s81 = sphi 0, %s79
    %s82 = sphi 0, %s81
    %s96 = sphi 0, %s82
    %s100 = sphi 0, %s100
    %s102 = sphi 0, %s100
    %s103 = sphi 0, %s102
    %s117 = sphi 0, %s103
    %s123 = sphi 0, %s125
    %s126 = sphi 0, %s123
    %s127 = sphi 0, %s126
    %s143 = sphi 0, %s127
  $region4: #{gcn_net_forward.4} parent=0 // loop_header_branch
    %13 = sbr.rel (%p11) target = $region8
  $region5: #{gcn_net_forward.4} parent=0 // loop_body
    %s15 = ssub.s32 %s10, 1
    %s16 = ssub.s32 %s10, 2
    %s23 = sadd.s32 1, %s18
    %p24 = scmp.ge.s32.totalorder %s23, 1
    %s25 = scalar_select %p24, 0, %s23
    %s26 = sadd.s32 1, %s17
    %s27 = scalar_select %p24, %s26, %s17
    %p28 = scmp.ge.s32.totalorder %s27, 2
    %s29 = scalar_select %p28, 0, %s27
    %s30 = ssub.s32 %s17, %s29
    %s31 = ssub.s32 %s18, %s25
    %s32 = sor.u32 %s30, %s31
    %p33 = scmp.eq.s32.totalorder %s32, 0
    %s35 = sadd.s32 %s34, 1
    %s36 = scalar_select %p33, %s34, %s35
    %p39 = pneg %p33
    %p40 = scmp.eq.s32.totalorder %s10, 1
    %p41 = por %p39, %p40
    %p42 = scmp.ne.s32.totalorder %s34, %s37
    %p43 = scmp.eq.s32.totalorder %s10, 0
    %p44 = por %p42, %p43
    %p45 = scmp.ne.s32.totalorder %s34, %s37
    %p46 = scmp.eq.s32.totalorder %s15, 1
    %p47 = por %p45, %p46
    %p48 = scmp.ne.s32.totalorder %s37, %s38
    %p49 = scmp.eq.s32.totalorder %s15, 0
    %p50 = por %p48, %p49
    %p51 = scmp.ne.s32.totalorder %s37, %s38
    %p52 = scmp.eq.s32.totalorder %s16, 1
    %p53 = por %p51, %p52
    %p55 = scmp.ne.s32.totalorder %s38, %s54
    %p56 = scmp.eq.s32.totalorder %s16, 0
    %p57 = por %p55, %p56
    %s59 = sadd.s32 %s58, 1
    %p62 = scmp.eq.s32.totalorder %s10, 1
    %p63 = scmp.ne.s32.totalorder %s58, %s60
    %p64 = scmp.eq.s32.totalorder %s10, 0
    %p65 = por %p63, %p64
    %p66 = scmp.ne.s32.totalorder %s58, %s60
    %p67 = scmp.eq.s32.totalorder %s15, 1
    %p68 = por %p66, %p67
    %p69 = scmp.ne.s32.totalorder %s60, %s61
    %p70 = scmp.eq.s32.totalorder %s15, 0
    %p71 = por %p69, %p70
    %p72 = scmp.ne.s32.totalorder %s60, %s61
    %p73 = scmp.eq.s32.totalorder %s16, 1
    %p74 = por %p72, %p73
    %p76 = scmp.ne.s32.totalorder %s61, %s75
    %p77 = scmp.eq.s32.totalorder %s16, 0
    %p78 = por %p76, %p77
    %s80 = sadd.s32 %s79, 1
    %p83 = scmp.eq.s32.totalorder %s10, 1
    %p84 = scmp.ne.s32.totalorder %s79, %s81
    %p85 = scmp.eq.s32.totalorder %s10, 0
    %p86 = por %p84, %p85
    %p87 = scmp.ne.s32.totalorder %s79, %s81
    %p88 = scmp.eq.s32.totalorder %s15, 1
    %p89 = por %p87, %p88
    %p90 = scmp.ne.s32.totalorder %s81, %s82
    %p91 = scmp.eq.s32.totalorder %s15, 0
    %p92 = por %p90, %p91
    %p93 = scmp.ne.s32.totalorder %s81, %s82
    %p94 = scmp.eq.s32.totalorder %s16, 1
    %p95 = por %p93, %p94
    %p97 = scmp.ne.s32.totalorder %s82, %s96
    %p98 = scmp.eq.s32.totalorder %s16, 0
    %p99 = por %p97, %p98
    %s101 = sadd.s32 %s100, 1
    %p104 = scmp.eq.s32.totalorder %s10, 1
    %p105 = scmp.ne.s32.totalorder %s100, %s102
    %p106 = scmp.eq.s32.totalorder %s10, 0
    %p107 = por %p105, %p106
    %p108 = scmp.ne.s32.totalorder %s100, %s102
    %p109 = scmp.eq.s32.totalorder %s15, 1
    %p110 = por %p108, %p109
    %p111 = scmp.ne.s32.totalorder %s102, %s103
    %p112 = scmp.eq.s32.totalorder %s15, 0
    %p113 = por %p111, %p112
    %p114 = scmp.ne.s32.totalorder %s102, %s103
    %p115 = scmp.eq.s32.totalorder %s16, 1
    %p116 = por %p114, %p115
    %p118 = scmp.ne.s32.totalorder %s103, %s117
    %p119 = scmp.eq.s32.totalorder %s16, 0
    %p120 = por %p118, %p119
    %s121 = ssub.s32 %s17, %s29
    %p122 = scmp.eq.s32.totalorder %s121, 0
    %s124 = sadd.s32 %s123, 1
    %s125 = scalar_select %p122, %s123, %s124
    %p128 = pneg %p122
    %p129 = scmp.eq.s32.totalorder %s10, 1
    %p130 = por %p128, %p129
    %p131 = scmp.ne.s32.totalorder %s123, %s126
    %p132 = scmp.eq.s32.totalorder %s10, 0
    %p133 = por %p131, %p132
    %p134 = scmp.ne.s32.totalorder %s123, %s126
    %p135 = scmp.eq.s32.totalorder %s15, 1
    %p136 = por %p134, %p135
    %p137 = scmp.ne.s32.totalorder %s126, %s127
    %p138 = scmp.eq.s32.totalorder %s15, 0
    %p139 = por %p137, %p138
    %p140 = scmp.ne.s32.totalorder %s126, %s127
    %p141 = scmp.eq.s32.totalorder %s16, 1
    %p142 = por %p140, %p141
    %p144 = scmp.ne.s32.totalorder %s127, %s143
    %p145 = scmp.eq.s32.totalorder %s16, 0
    %p146 = por %p144, %p145
    %p147 = scmp.le.s32.totalorder 1, %s10
    %p148 = scmp.lt.s32.totalorder %s10, 3
    %p149 = pnand %p147, %p148
    %p150 = pneg %p149
    // Predicated region
    $region9: #{gcn_net_forward.4} parent=5 // pred_check
      _
    $region10: #{gcn_net_forward.4} parent=5 // pred_check_branch
      %152 = sbr.rel (%p149) target = $region12
    $region11: #{gcn_net_forward.4} parent=5 // pred_region
      %s153 = ssub.s32 %s10, 1
      // Predicated region
      $region13: #{gcn_net_forward.4} parent=11 // pred_check
        %p154 = pneg %p71
      $region14: #{gcn_net_forward.4} parent=11 // pred_check_branch
        %156 = sbr.rel (%p154) target = $region16
      $region15: #{gcn_net_forward.4} parent=11 // pred_region
        _
      $region16: #{gcn_net_forward.4} parent=11 // pred_fallthru
        _
      // Predicated region
      $region17: #{gcn_net_forward.4} parent=11 // pred_check
        %p157 = pneg %p92
      $region18: #{gcn_net_forward.4} parent=11 // pred_check_branch
        %159 = sbr.rel (%p157) target = $region20
      $region19: #{gcn_net_forward.4} parent=11 // pred_region
        _
      $region20: #{gcn_net_forward.4} parent=11 // pred_fallthru
        _
      // Predicated region
      $region21: #{gcn_net_forward.4} parent=11 // pred_check
        %p160 = pneg %p113
      $region22: #{gcn_net_forward.4} parent=11 // pred_check_branch
        %162 = sbr.rel (%p160) target = $region24
      $region23: #{gcn_net_forward.4} parent=11 // pred_region
        _
      $region24: #{gcn_net_forward.4} parent=11 // pred_fallthru
        _
    $region12: #{gcn_net_forward.4} parent=5 // pred_fallthru
      _
    %p163 = scmp.lt.s32.totalorder %s10, 2
    // Predicated region
    $region25: #{gcn_net_forward.4} parent=5 // pred_check
      %p164 = pneg %p163
    $region26: #{gcn_net_forward.4} parent=5 // pred_check_branch
      %166 = sbr.rel (%p164) target = $region28
    $region27: #{gcn_net_forward.4} parent=5 // pred_region
      // Predicated region
      $region29: #{gcn_net_forward.4} parent=27 // pred_check
        %p167 = pneg %p44
      $region30: #{gcn_net_forward.4} parent=27 // pred_check_branch
        %169 = sbr.rel (%p167) target = $region32
      $region31: #{gcn_net_forward.4} parent=27 // pred_region
        %s170 = smul.u32 16, %s17
        %s171 = smul.u32 2, %s18
        %p172 = scmp.lt.s32.totalorder %s170, 31
        %s173 = scalar_select %p172, %s170, 31
        %p174 = scmp.lt.s32.totalorder %s171, 1
        %s175 = scalar_select %p174, %s171, 1
        %s176 = smul.addr %s173, 2
        %s177 = sadd.s32 %s175, %s176
        %s178 = smul.addr %s177, 4
        %s179 = scalar_lea.vmem %s0, %s178
        %s180 = smul.u32 16, %s17
        %s181 = smul.u32 2, %s18
      $region32: #{gcn_net_forward.4} parent=27 // pred_fallthru
        _
    $region28: #{gcn_net_forward.4} parent=5 // pred_fallthru
      _
    %p182 = scmp.le.s32.totalorder 1, %s10
    %p183 = scmp.lt.s32.totalorder %s10, 3
    %p184 = pnand %p182, %p183
    %p185 = pneg %p184
    // Predicated region
    $region33: #{gcn_net_forward.4} parent=5 // pred_check
      _
    $region34: #{gcn_net_forward.4} parent=5 // pred_check_branch
      %187 = sbr.rel (%p184) target = $region36
    $region35: #{gcn_net_forward.4} parent=5 // pred_region
      %s188 = ssub.s32 %s10, 1
      %s189 = smul.u32 16, %s19
      %s190 = smul.u32 2, %s20
      %p191 = scmp.lt.s32.totalorder %s189, 31
      %s192 = scalar_select %p191, %s189, 31
      %p193 = scmp.lt.s32.totalorder %s190, 1
      %s194 = scalar_select %p193, %s190, 1
      %s195 = smul.addr %s192, 2
      %s196 = sadd.s32 %s194, %s195
      %s197 = smul.addr %s196, 4
      %s198 = scalar_lea.vmem %s0, %s197
      %p199 = pneg %p50
      %p200 = pneg %p47
      %p201 = pneg %p71
      %p202 = pneg %p68
      %p203 = pneg %p92
      %p204 = pneg %p89
      %p205 = pneg %p113
      %p206 = pneg %p110
      %p207 = pneg %p139
      %p208 = pneg %p136
      %s209 = smul.u32 16, %s19
      %p210 = scmp.lt.s32.totalorder %s209, 31
      %s211 = scalar_select %p210, %s209, 31
      %s212 = smul.addr %s211, 2
      %s213 = smul.addr %s212, 4
      %s214 = scalar_lea.vmem %s4, %s213
      %s215 = smul.u32 16, %s19
      %s216 = smul.u32 2, %s20
      %p217 = scmp.lt.s32.totalorder %s215, 31
      %s218 = scalar_select %p217, %s215, 31
      %p219 = scmp.lt.s32.totalorder %s216, 1
      %s220 = scalar_select %p219, %s216, 1
      %s221 = smul.addr %s218, 2
      %s222 = sadd.s32 %s220, %s221
      %s223 = smul.addr %s222, 4
      %s224 = scalar_lea.vmem %s0, %s223
      %s225 = smul.u32 16, %s19
      %s226 = smul.u32 2, %s20
      %s227 = smul.u32 16, %s19
      %p228 = scmp.lt.s32.totalorder %s227, 31
      %s229 = scalar_select %p228, %s227, 31
      %s230 = smul.addr %s229, 2
      %s231 = smul.addr %s230, 4
      %s232 = scalar_lea.vmem %s4, %s231
      %s233 = smul.u32 16, %s19
      %p234 = scmp.eq.s32.totalorder %s20, 0
      // Predicated region
      $region37: #{gcn_net_forward.4} parent=35 // pred_check
        %p235 = pneg %p234
      $region38: #{gcn_net_forward.4} parent=35 // pred_check_branch
        %237 = sbr.rel (%p235) target = $region40
      $region39: #{gcn_net_forward.4} parent=35 // pred_region
        %238 = vst [vmem:[#allocation2] sm:$0xff] 0.0
        %239 = vst [vmem:[#allocation2 + $0x8] sm:$0xff] 0.0
        %240 = vst [vmem:[#allocation2 + $0x10] sm:$0xff] 0.0
        %241 = vst [vmem:[#allocation2 + $0x18] sm:$0xff] 0.0
        %242 = vst [vmem:[#allocation2 + $0x20] sm:$0xff] 0.0
        %243 = vst [vmem:[#allocation2 + $0x28] sm:$0xff] 0.0
        %244 = vst [vmem:[#allocation2 + $0x30] sm:$0xff] 0.0
        %245 = vst [vmem:[#allocation2 + $0x38] sm:$0xff] 0.0
        %246 = vst [vmem:[#allocation2 + $0x40] sm:$0xff] 0.0
        %247 = vst [vmem:[#allocation2 + $0x48] sm:$0xff] 0.0
        %248 = vst [vmem:[#allocation2 + $0x50] sm:$0xff] 0.0
        %249 = vst [vmem:[#allocation2 + $0x58] sm:$0xff] 0.0
        %250 = vst [vmem:[#allocation2 + $0x60] sm:$0xff] 0.0
        %251 = vst [vmem:[#allocation2 + $0x68] sm:$0xff] 0.0
        %252 = vst [vmem:[#allocation2 + $0x70] sm:$0xff] 0.0
        %253 = vst [vmem:[#allocation2 + $0x78] sm:$0xff] 0.0
        %254 = vst [vmem:[#allocation2 + $0x80] sm:$0xff] 0.0
        %255 = vst [vmem:[#allocation2 + $0x88] sm:$0xff] 0.0
        %256 = vst [vmem:[#allocation2 + $0x90] sm:$0xff] 0.0
        %257 = vst [vmem:[#allocation2 + $0x98] sm:$0xff] 0.0
        %258 = vst [vmem:[#allocation2 + $0xa0] sm:$0xff] 0.0
        %259 = vst [vmem:[#allocation2 + $0xa8] sm:$0xff] 0.0
        %260 = vst [vmem:[#allocation2 + $0xb0] sm:$0xff] 0.0
        %261 = vst [vmem:[#allocation2 + $0xb8] sm:$0xff] 0.0
        %262 = vst [vmem:[#allocation2 + $0xc0] sm:$0xff] 0.0
        %263 = vst [vmem:[#allocation2 + $0xc8] sm:$0xff] 0.0
        %264 = vst [vmem:[#allocation2 + $0xd0] sm:$0xff] 0.0
        %265 = vst [vmem:[#allocation2 + $0xd8] sm:$0xff] 0.0
        %266 = vst [vmem:[#allocation2 + $0xe0] sm:$0xff] 0.0
        %267 = vst [vmem:[#allocation2 + $0xe8] sm:$0xff] 0.0
        %268 = vst [vmem:[#allocation2 + $0xf0] sm:$0xff] 0.0
        %269 = vst [vmem:[#allocation2 + $0xf8] sm:$0xff] 0.0
      $region40: #{gcn_net_forward.4} parent=35 // pred_fallthru
        _
      %s270 = smul.u32 %s20, 256
      %s271 = sshra.s32 %s270, 3
      %s272 = sand.u32 %s270, 7
      %s273 = smul.u32 %s271, 2
      %s274 = smul.addr %s273, 4
      %s275 = scalar_lea.vmem %s1, %s274
      %v276 = vld [vmem:[%s275] sm:$0xff]
      %v277 = vld [vmem:[%s275 + $0x8] sm:$0xff]
      %v278 = vld [vmem:[%s275 + $0x10] sm:$0xff]
      %v279 = vld [vmem:[%s275 + $0x18] sm:$0xff]
      %v280 = vld [vmem:[%s275 + $0x20] sm:$0xff]
      %v281 = vld [vmem:[%s275 + $0x28] sm:$0xff]
      %v282 = vld [vmem:[%s275 + $0x30] sm:$0xff]
      %v283 = vld [vmem:[%s275 + $0x38] sm:$0xff]
      %v284 = vld [vmem:[%s275 + $0x40] sm:$0xff]
      %v285 = vld [vmem:[%s275 + $0x48] sm:$0xff]
      %v286 = vld [vmem:[%s275 + $0x50] sm:$0xff]
      %v287 = vld [vmem:[%s275 + $0x58] sm:$0xff]
      %v288 = vld [vmem:[%s275 + $0x60] sm:$0xff]
      %v289 = vld [vmem:[%s275 + $0x68] sm:$0xff]
      %v290 = vld [vmem:[%s275 + $0x70] sm:$0xff]
      %v291 = vld [vmem:[%s275 + $0x78] sm:$0xff]
      %v292 = vld [vmem:[%s275 + $0x80] sm:$0xff]
      %v293 = vld [vmem:[%s275 + $0x88] sm:$0xff]
      %v294 = vld [vmem:[%s275 + $0x90] sm:$0xff]
      %v295 = vld [vmem:[%s275 + $0x98] sm:$0xff]
      %v296 = vld [vmem:[%s275 + $0xa0] sm:$0xff]
      %v297 = vld [vmem:[%s275 + $0xa8] sm:$0xff]
      %v298 = vld [vmem:[%s275 + $0xb0] sm:$0xff]
      %v299 = vld [vmem:[%s275 + $0xb8] sm:$0xff]
      %v300 = vld [vmem:[%s275 + $0xc0] sm:$0xff]
      %v301 = vld [vmem:[%s275 + $0xc8] sm:$0xff]
      %v302 = vld [vmem:[%s275 + $0xd0] sm:$0xff]
      %v303 = vld [vmem:[%s275 + $0xd8] sm:$0xff]
      %v304 = vld [vmem:[%s275 + $0xe0] sm:$0xff]
      %v305 = vld [vmem:[%s275 + $0xe8] sm:$0xff]
      %v306 = vld [vmem:[%s275 + $0xf0] sm:$0xff]
      %v307 = vld [vmem:[%s275 + $0xf8] sm:$0xff]
      %v308 = vld [vmem:[#allocation2] sm:$0xff]
      %v309 = vld [vmem:[#allocation2 + $0x8] sm:$0xff]
      %v310 = vld [vmem:[#allocation2 + $0x10] sm:$0xff]
      %v311 = vld [vmem:[#allocation2 + $0x18] sm:$0xff]
      %v312 = vld [vmem:[#allocation2 + $0x20] sm:$0xff]
      %v313 = vld [vmem:[#allocation2 + $0x28] sm:$0xff]
      %v314 = vld [vmem:[#allocation2 + $0x30] sm:$0xff]
      %v315 = vld [vmem:[#allocation2 + $0x38] sm:$0xff]
      %v316 = vld [vmem:[#allocation2 + $0x40] sm:$0xff]
      %v317 = vld [vmem:[#allocation2 + $0x48] sm:$0xff]
      %v318 = vld [vmem:[#allocation2 + $0x50] sm:$0xff]
      %v319 = vld [vmem:[#allocation2 + $0x58] sm:$0xff]
      %v320 = vld [vmem:[#allocation2 + $0x60] sm:$0xff]
      %v321 = vld [vmem:[#allocation2 + $0x68] sm:$0xff]
      %v322 = vld [vmem:[#allocation2 + $0x70] sm:$0xff]
      %v323 = vld [vmem:[#allocation2 + $0x78] sm:$0xff]
      %v324 = vld [vmem:[#allocation2 + $0x80] sm:$0xff]
      %v325 = vld [vmem:[#allocation2 + $0x88] sm:$0xff]
      %v326 = vld [vmem:[#allocation2 + $0x90] sm:$0xff]
      %v327 = vld [vmem:[#allocation2 + $0x98] sm:$0xff]
      %v328 = vld [vmem:[#allocation2 + $0xa0] sm:$0xff]
      %v329 = vld [vmem:[#allocation2 + $0xa8] sm:$0xff]
      %v330 = vld [vmem:[#allocation2 + $0xb0] sm:$0xff]
      %v331 = vld [vmem:[#allocation2 + $0xb8] sm:$0xff]
      %v332 = vld [vmem:[#allocation2 + $0xc0] sm:$0xff]
      %v333 = vld [vmem:[#allocation2 + $0xc8] sm:$0xff]
      %v334 = vld [vmem:[#allocation2 + $0xd0] sm:$0xff]
      %v335 = vld [vmem:[#allocation2 + $0xd8] sm:$0xff]
      %v336 = vld [vmem:[#allocation2 + $0xe0] sm:$0xff]
      %v337 = vld [vmem:[#allocation2 + $0xe8] sm:$0xff]
      %v338 = vld [vmem:[#allocation2 + $0xf0] sm:$0xff]
      %v339 = vld [vmem:[#allocation2 + $0xf8] sm:$0xff]
      %v340 = vld [vmem:[%s224] sm:$0xff]
      %v341 = vld [vmem:[%s224 + $0x8] sm:$0xff]
      %v342 = vld [vmem:[%s224 + $0x10] sm:$0xff]
      %v343 = vld [vmem:[%s224 + $0x18] sm:$0xff]
      %v344 = vld [vmem:[%s224 + $0x20] sm:$0xff]
      %v345 = vld [vmem:[%s224 + $0x28] sm:$0xff]
      %v346 = vld [vmem:[%s224 + $0x30] sm:$0xff]
      %v347 = vld [vmem:[%s224 + $0x38] sm:$0xff]
      %v348 = vld [vmem:[%s224 + $0x40] sm:$0xff]
      %v349 = vld [vmem:[%s224 + $0x48] sm:$0xff]
      %v350 = vld [vmem:[%s224 + $0x50] sm:$0xff]
      %v351 = vld [vmem:[%s224 + $0x58] sm:$0xff]
      %v352 = vld [vmem:[%s224 + $0x60] sm:$0xff]
      %v353 = vld [vmem:[%s224 + $0x68] sm:$0xff]
      %v354 = vld [vmem:[%s224 + $0x70] sm:$0xff]
      %v355 = vld [vmem:[%s224 + $0x78] sm:$0xff]
      %v372 = vunpack.c.l.b16 %v340
      %v373 = vunpack.c.h.b16 %v340
      %v374 = vunpack.c.l.b16 %v341
      %v375 = vunpack.c.h.b16 %v341
      %v376 = vunpack.c.l.b16 %v342
      %v377 = vunpack.c.h.b16 %v342
      %v378 = vunpack.c.l.b16 %v343
      %v379 = vunpack.c.h.b16 %v343
      %v380 = vunpack.c.l.b16 %v344
      %v381 = vunpack.c.h.b16 %v344
      %v382 = vunpack.c.l.b16 %v345
      %v383 = vunpack.c.h.b16 %v345
      %v384 = vunpack.c.l.b16 %v346
      %v385 = vunpack.c.h.b16 %v346
      %v386 = vunpack.c.l.b16 %v347
      %v387 = vunpack.c.h.b16 %v347
      %v388 = vunpack.c.l.b16 %v348
      %v389 = vunpack.c.h.b16 %v348
      %v390 = vunpack.c.l.b16 %v349
      %v391 = vunpack.c.h.b16 %v349
      %v392 = vunpack.c.l.b16 %v350
      %v393 = vunpack.c.h.b16 %v350
      %v394 = vunpack.c.l.b16 %v351
      %v395 = vunpack.c.h.b16 %v351
      %v396 = vunpack.c.l.b16 %v352
      %v397 = vunpack.c.h.b16 %v352
      %v398 = vunpack.c.l.b16 %v353
      %v399 = vunpack.c.h.b16 %v353
      %v400 = vunpack.c.l.b16 %v354
      %v401 = vunpack.c.h.b16 %v354
      %v402 = vunpack.c.l.b16 %v355
      %v403 = vunpack.c.h.b16 %v355
      %v404 = vpack.c.b16 %v374, %v372
      %v405 = vpack.c.b16 %v375, %v373
      %v406 = vpack.c.b16 %v378, %v376
      %v407 = vpack.c.b16 %v379, %v377
      %v408 = vpack.c.b16 %v382, %v380
      %v409 = vpack.c.b16 %v383, %v381
      %v410 = vpack.c.b16 %v386, %v384
      %v411 = vpack.c.b16 %v387, %v385
      %v412 = vpack.c.b16 %v390, %v388
      %v413 = vpack.c.b16 %v391, %v389
      %v414 = vpack.c.b16 %v394, %v392
      %v415 = vpack.c.b16 %v395, %v393
      %v416 = vpack.c.b16 %v398, %v396
      %v417 = vpack.c.b16 %v399, %v397
      %v418 = vpack.c.b16 %v402, %v400
      %v419 = vpack.c.b16 %v403, %v401
      %v468 = vunpack.c.l.b16 %v276
      %v469 = vunpack.c.h.b16 %v276
      %v470 = vunpack.c.l.b16 %v277
      %v471 = vunpack.c.h.b16 %v277
      %v472 = vunpack.c.l.b16 %v278
      %v473 = vunpack.c.h.b16 %v278
      %v474 = vunpack.c.l.b16 %v279
      %v475 = vunpack.c.h.b16 %v279
      %v476 = vunpack.c.l.b16 %v280
      %v477 = vunpack.c.h.b16 %v280
      %v478 = vunpack.c.l.b16 %v281
      %v479 = vunpack.c.h.b16 %v281
      %v480 = vunpack.c.l.b16 %v282
      %v481 = vunpack.c.h.b16 %v282
      %v482 = vunpack.c.l.b16 %v283
      %v483 = vunpack.c.h.b16 %v283
      %v484 = vunpack.c.l.b16 %v284
      %v485 = vunpack.c.h.b16 %v284
      %v486 = vunpack.c.l.b16 %v285
      %v487 = vunpack.c.h.b16 %v285
      %v488 = vunpack.c.l.b16 %v286
      %v489 = vunpack.c.h.b16 %v286
      %v490 = vunpack.c.l.b16 %v287
      %v491 = vunpack.c.h.b16 %v287
      %v492 = vunpack.c.l.b16 %v288
      %v493 = vunpack.c.h.b16 %v288
      %v494 = vunpack.c.l.b16 %v289
      %v495 = vunpack.c.h.b16 %v289
      %v496 = vunpack.c.l.b16 %v290
      %v497 = vunpack.c.h.b16 %v290
      %v498 = vunpack.c.l.b16 %v291
      %v499 = vunpack.c.h.b16 %v291
      %v500 = vunpack.c.l.b16 %v292
      %v501 = vunpack.c.h.b16 %v292
      %v502 = vunpack.c.l.b16 %v293
      %v503 = vunpack.c.h.b16 %v293
      %v504 = vunpack.c.l.b16 %v294
      %v505 = vunpack.c.h.b16 %v294
      %v506 = vunpack.c.l.b16 %v295
      %v507 = vunpack.c.h.b16 %v295
      %v508 = vunpack.c.l.b16 %v296
      %v509 = vunpack.c.h.b16 %v296
      %v510 = vunpack.c.l.b16 %v297
      %v511 = vunpack.c.h.b16 %v297
      %v512 = vunpack.c.l.b16 %v298
      %v513 = vunpack.c.h.b16 %v298
      %v514 = vunpack.c.l.b16 %v299
      %v515 = vunpack.c.h.b16 %v299
      %v516 = vunpack.c.l.b16 %v300
      %v517 = vunpack.c.h.b16 %v300
      %v518 = vunpack.c.l.b16 %v301
      %v519 = vunpack.c.h.b16 %v301
      %v520 = vunpack.c.l.b16 %v302
      %v521 = vunpack.c.h.b16 %v302
      %v522 = vunpack.c.l.b16 %v303
      %v523 = vunpack.c.h.b16 %v303
      %v524 = vunpack.c.l.b16 %v304
      %v525 = vunpack.c.h.b16 %v304
      %v526 = vunpack.c.l.b16 %v305
      %v527 = vunpack.c.h.b16 %v305
      %v528 = vunpack.c.l.b16 %v306
      %v529 = vunpack.c.h.b16 %v306
      %v530 = vunpack.c.l.b16 %v307
      %v531 = vunpack.c.h.b16 %v307
      %v532 = vpack.c.b16 %v470, %v468
      %v533 = vpack.c.b16 %v471, %v469
      %v534 = vpack.c.b16 %v474, %v472
      %v535 = vpack.c.b16 %v475, %v473
      %v536 = vpack.c.b16 %v478, %v476
      %v537 = vpack.c.b16 %v479, %v477
      %v538 = vpack.c.b16 %v482, %v480
      %v539 = vpack.c.b16 %v483, %v481
      %v540 = vpack.c.b16 %v486, %v484
      %v541 = vpack.c.b16 %v487, %v485
      %v542 = vpack.c.b16 %v490, %v488
      %v543 = vpack.c.b16 %v491, %v489
      %v544 = vpack.c.b16 %v494, %v492
      %v545 = vpack.c.b16 %v495, %v493
      %v546 = vpack.c.b16 %v498, %v496
      %v547 = vpack.c.b16 %v499, %v497
      %v548 = vpack.c.b16 %v502, %v500
      %v549 = vpack.c.b16 %v503, %v501
      %v550 = vpack.c.b16 %v506, %v504
      %v551 = vpack.c.b16 %v507, %v505
      %v552 = vpack.c.b16 %v510, %v508
      %v553 = vpack.c.b16 %v511, %v509
      %v554 = vpack.c.b16 %v514, %v512
      %v555 = vpack.c.b16 %v515, %v513
      %v556 = vpack.c.b16 %v518, %v516
      %v557 = vpack.c.b16 %v519, %v517
      %v558 = vpack.c.b16 %v522, %v520
      %v559 = vpack.c.b16 %v523, %v521
      %v560 = vpack.c.b16 %v526, %v524
      %v561 = vpack.c.b16 %v527, %v525
      %v562 = vpack.c.b16 %v530, %v528
      %v563 = vpack.c.b16 %v531, %v529
      %596 = vmatprep.subr.bf16.mxu0 %v547
      %597 = vmatpush1.bf16.msra.mxu0 %v546
      %598 = vmatprep.subr.bf16.mxu0 %v545
      %599 = vmatpush1.bf16.msra.mxu0 %v544
      %600 = vmatprep.subr.bf16.mxu0 %v543
      %601 = vmatpush1.bf16.msra.mxu0 %v542
      %602 = vmatprep.subr.bf16.mxu0 %v541
      %603 = vmatpush1.bf16.msra.mxu0 %v540
      %604 = vmatprep.subr.bf16.mxu0 %v539
      %605 = vmatpush1.bf16.msra.mxu0 %v538
      %606 = vmatprep.subr.bf16.mxu0 %v537
      %607 = vmatpush1.bf16.msra.mxu0 %v536
      %608 = vmatprep.subr.bf16.mxu0 %v535
      %609 = vmatpush1.bf16.msra.mxu0 %v534
      %610 = vmatprep.subr.bf16.mxu0 %v533
      %611 = vmatpush1.bf16.msra.mxu0 %v532
      %612 = vmatprep.subr.bf16.mxu0 %v563
      %613 = vmatpush2.bf16.msra.mxu0 %v562
      %614 = vmatprep.subr.bf16.mxu0 %v561
      %615 = vmatpush2.bf16.msra.mxu0 %v560
      %616 = vmatprep.subr.bf16.mxu0 %v559
      %617 = vmatpush2.bf16.msra.mxu0 %v558
      %618 = vmatprep.subr.bf16.mxu0 %v557
      %619 = vmatpush2.bf16.msra.mxu0 %v556
      %620 = vmatprep.subr.bf16.mxu0 %v555
      %621 = vmatpush2.bf16.msra.mxu0 %v554
      %622 = vmatprep.subr.bf16.mxu0 %v553
      %623 = vmatpush2.bf16.msra.mxu0 %v552
      %624 = vmatprep.subr.bf16.mxu0 %v551
      %625 = vmatpush2.bf16.msra.mxu0 %v550
      %626 = vmatprep.subr.bf16.mxu0 %v549
      %627 = vmatpush2.bf16.msra.mxu0 %v548
      %628 = vmatprep.mubr.bf16.mxu0 %v405
      %629 = vmatmul.mubr.bf16.gmra.mxu0 %v404
      %v630 = vpop.f32.mrf.mxu0
      %v631 = vadd.f32 0.0, %v630
      %v632 = vpop.f32.mrf.mxu0
      %v633 = vadd.f32 0.0, %v632
      %v634 = vpop.f32.mrf.mxu0
      %v635 = vadd.f32 0.0, %v634
      %v636 = vpop.f32.mrf.mxu0
      %v637 = vadd.f32 0.0, %v636
      %638 = vmatprep.mubr.bf16.mxu0 %v407
      %639 = vmatmul.mubr.bf16.gmra.mxu0 %v406
      %v640 = vpop.f32.mrf.mxu0
      %v641 = vadd.f32 0.0, %v640
      %v642 = vpop.f32.mrf.mxu0
      %v643 = vadd.f32 0.0, %v642
      %v644 = vpop.f32.mrf.mxu0
      %v645 = vadd.f32 0.0, %v644
      %v646 = vpop.f32.mrf.mxu0
      %v647 = vadd.f32 0.0, %v646
      %648 = vmatprep.mubr.bf16.mxu0 %v409
      %649 = vmatmul.mubr.bf16.gmra.mxu0 %v408
      %v650 = vpop.f32.mrf.mxu0
      %v651 = vadd.f32 0.0, %v650
      %v652 = vpop.f32.mrf.mxu0
      %v653 = vadd.f32 0.0, %v652
      %v654 = vpop.f32.mrf.mxu0
      %v655 = vadd.f32 0.0, %v654
      %v656 = vpop.f32.mrf.mxu0
      %v657 = vadd.f32 0.0, %v656
      %658 = vmatprep.mubr.bf16.mxu0 %v411
      %659 = vmatmul.mubr.bf16.gmra.mxu0 %v410
      %v660 = vpop.f32.mrf.mxu0
      %v661 = vadd.f32 0.0, %v660
      %v662 = vpop.f32.mrf.mxu0
      %v663 = vadd.f32 0.0, %v662
      %v664 = vpop.f32.mrf.mxu0
      %v665 = vadd.f32 0.0, %v664
      %v666 = vpop.f32.mrf.mxu0
      %v667 = vadd.f32 0.0, %v666
      %668 = vmatprep.mubr.bf16.mxu0 %v413
      %669 = vmatmul.mubr.bf16.gmra.mxu0 %v412
      %v670 = vpop.f32.mrf.mxu0
      %v671 = vadd.f32 0.0, %v670
      %v672 = vpop.f32.mrf.mxu0
      %v673 = vadd.f32 0.0, %v672
      %v674 = vpop.f32.mrf.mxu0
      %v675 = vadd.f32 0.0, %v674
      %v676 = vpop.f32.mrf.mxu0
      %v677 = vadd.f32 0.0, %v676
      %678 = vmatprep.mubr.bf16.mxu0 %v415
      %679 = vmatmul.mubr.bf16.gmra.mxu0 %v414
      %v680 = vpop.f32.mrf.mxu0
      %v681 = vadd.f32 0.0, %v680
      %v682 = vpop.f32.mrf.mxu0
      %v683 = vadd.f32 0.0, %v682
      %v684 = vpop.f32.mrf.mxu0
      %v685 = vadd.f32 0.0, %v684
      %v686 = vpop.f32.mrf.mxu0
      %v687 = vadd.f32 0.0, %v686
      %688 = vmatprep.mubr.bf16.mxu0 %v417
      %689 = vmatmul.mubr.bf16.gmra.mxu0 %v416
      %v690 = vpop.f32.mrf.mxu0
      %v691 = vadd.f32 0.0, %v690
      %v692 = vpop.f32.mrf.mxu0
      %v693 = vadd.f32 0.0, %v692
      %v694 = vpop.f32.mrf.mxu0
      %v695 = vadd.f32 0.0, %v694
      %v696 = vpop.f32.mrf.mxu0
      %v697 = vadd.f32 0.0, %v696
      %698 = vmatprep.mubr.bf16.mxu0 %v419
      %699 = vmatmul.mubr.bf16.gmra.mxu0 %v418
      %v700 = vpop.f32.mrf.mxu0
      %v701 = vadd.f32 0.0, %v700
      %v702 = vpop.f32.mrf.mxu0
      %v703 = vadd.f32 0.0, %v702
      %v704 = vpop.f32.mrf.mxu0
      %v705 = vadd.f32 0.0, %v704
      %v706 = vpop.f32.mrf.mxu0
      %v707 = vadd.f32 0.0, %v706
      %708 = vdwg.mxu0
      %v709 = vadd.f32 %v308, %v631
      %v710 = vadd.f32 %v309, %v633
      %v711 = vadd.f32 %v310, %v635
      %v712 = vadd.f32 %v311, %v637
      %v713 = vadd.f32 %v312, %v641
      %v714 = vadd.f32 %v313, %v643
      %v715 = vadd.f32 %v314, %v645
      %v716 = vadd.f32 %v315, %v647
      %v717 = vadd.f32 %v316, %v651
      %v718 = vadd.f32 %v317, %v653
      %v719 = vadd.f32 %v318, %v655
      %v720 = vadd.f32 %v319, %v657
      %v721 = vadd.f32 %v320, %v661
      %v722 = vadd.f32 %v321, %v663
      %v723 = vadd.f32 %v322, %v665
      %v724 = vadd.f32 %v323, %v667
      %v725 = vadd.f32 %v324, %v671
      %v726 = vadd.f32 %v325, %v673
      %v727 = vadd.f32 %v326, %v675
      %v728 = vadd.f32 %v327, %v677
      %v729 = vadd.f32 %v328, %v681
      %v730 = vadd.f32 %v329, %v683
      %v731 = vadd.f32 %v330, %v685
      %v732 = vadd.f32 %v331, %v687
      %v733 = vadd.f32 %v332, %v691
      %v734 = vadd.f32 %v333, %v693
      %v735 = vadd.f32 %v334, %v695
      %v736 = vadd.f32 %v335, %v697
      %v737 = vadd.f32 %v336, %v701
      %v738 = vadd.f32 %v337, %v703
      %v739 = vadd.f32 %v338, %v705
      %v740 = vadd.f32 %v339, %v707
      %741 = vst [vmem:[#allocation2] sm:$0xff] %v709
      %742 = vst [vmem:[#allocation2 + $0x8] sm:$0xff] %v710
      %743 = vst [vmem:[#allocation2 + $0x10] sm:$0xff] %v711
      %744 = vst [vmem:[#allocation2 + $0x18] sm:$0xff] %v712
      %745 = vst [vmem:[#allocation2 + $0x20] sm:$0xff] %v713
      %746 = vst [vmem:[#allocation2 + $0x28] sm:$0xff] %v714
      %747 = vst [vmem:[#allocation2 + $0x30] sm:$0xff] %v715
      %748 = vst [vmem:[#allocation2 + $0x38] sm:$0xff] %v716
      %749 = vst [vmem:[#allocation2 + $0x40] sm:$0xff] %v717
      %750 = vst [vmem:[#allocation2 + $0x48] sm:$0xff] %v718
      %751 = vst [vmem:[#allocation2 + $0x50] sm:$0xff] %v719
      %752 = vst [vmem:[#allocation2 + $0x58] sm:$0xff] %v720
      %753 = vst [vmem:[#allocation2 + $0x60] sm:$0xff] %v721
      %754 = vst [vmem:[#allocation2 + $0x68] sm:$0xff] %v722
      %755 = vst [vmem:[#allocation2 + $0x70] sm:$0xff] %v723
      %756 = vst [vmem:[#allocation2 + $0x78] sm:$0xff] %v724
      %757 = vst [vmem:[#allocation2 + $0x80] sm:$0xff] %v725
      %758 = vst [vmem:[#allocation2 + $0x88] sm:$0xff] %v726
      %759 = vst [vmem:[#allocation2 + $0x90] sm:$0xff] %v727
      %760 = vst [vmem:[#allocation2 + $0x98] sm:$0xff] %v728
      %761 = vst [vmem:[#allocation2 + $0xa0] sm:$0xff] %v729
      %762 = vst [vmem:[#allocation2 + $0xa8] sm:$0xff] %v730
      %763 = vst [vmem:[#allocation2 + $0xb0] sm:$0xff] %v731
      %764 = vst [vmem:[#allocation2 + $0xb8] sm:$0xff] %v732
      %765 = vst [vmem:[#allocation2 + $0xc0] sm:$0xff] %v733
      %766 = vst [vmem:[#allocation2 + $0xc8] sm:$0xff] %v734
      %767 = vst [vmem:[#allocation2 + $0xd0] sm:$0xff] %v735
      %768 = vst [vmem:[#allocation2 + $0xd8] sm:$0xff] %v736
      %769 = vst [vmem:[#allocation2 + $0xe0] sm:$0xff] %v737
      %770 = vst [vmem:[#allocation2 + $0xe8] sm:$0xff] %v738
      %771 = vst [vmem:[#allocation2 + $0xf0] sm:$0xff] %v739
      %772 = vst [vmem:[#allocation2 + $0xf8] sm:$0xff] %v740
      // Predicated region
      $region41: #{gcn_net_forward.4} parent=35 // pred_check
        %p773 = pneg %p234
      $region42: #{gcn_net_forward.4} parent=35 // pred_check_branch
        %775 = sbr.rel (%p773) target = $region44
      $region43: #{gcn_net_forward.4} parent=35 // pred_region
        %v776 = vld [vmem:[#allocation2] sm:$0xff]
        %v777 = vld [vmem:[#allocation2 + $0x8] sm:$0xff]
        %v778 = vld [vmem:[#allocation2 + $0x10] sm:$0xff]
        %v779 = vld [vmem:[#allocation2 + $0x18] sm:$0xff]
        %v780 = vld [vmem:[#allocation2 + $0x20] sm:$0xff]
        %v781 = vld [vmem:[#allocation2 + $0x28] sm:$0xff]
        %v782 = vld [vmem:[#allocation2 + $0x30] sm:$0xff]
        %v783 = vld [vmem:[#allocation2 + $0x38] sm:$0xff]
        %v784 = vld [vmem:[#allocation2 + $0x40] sm:$0xff]
        %v785 = vld [vmem:[#allocation2 + $0x48] sm:$0xff]
        %v786 = vld [vmem:[#allocation2 + $0x50] sm:$0xff]
        %v787 = vld [vmem:[#allocation2 + $0x58] sm:$0xff]
        %v788 = vld [vmem:[#allocation2 + $0x60] sm:$0xff]
        %v789 = vld [vmem:[#allocation2 + $0x68] sm:$0xff]
        %v790 = vld [vmem:[#allocation2 + $0x70] sm:$0xff]
        %v791 = vld [vmem:[#allocation2 + $0x78] sm:$0xff]
        %v792 = vld [vmem:[#allocation2 + $0x80] sm:$0xff]
        %v793 = vld [vmem:[#allocation2 + $0x88] sm:$0xff]
        %v794 = vld [vmem:[#allocation2 + $0x90] sm:$0xff]
        %v795 = vld [vmem:[#allocation2 + $0x98] sm:$0xff]
        %v796 = vld [vmem:[#allocation2 + $0xa0] sm:$0xff]
        %v797 = vld [vmem:[#allocation2 + $0xa8] sm:$0xff]
        %v798 = vld [vmem:[#allocation2 + $0xb0] sm:$0xff]
        %v799 = vld [vmem:[#allocation2 + $0xb8] sm:$0xff]
        %v800 = vld [vmem:[#allocation2 + $0xc0] sm:$0xff]
        %v801 = vld [vmem:[#allocation2 + $0xc8] sm:$0xff]
        %v802 = vld [vmem:[#allocation2 + $0xd0] sm:$0xff]
        %v803 = vld [vmem:[#allocation2 + $0xd8] sm:$0xff]
        %v804 = vld [vmem:[#allocation2 + $0xe0] sm:$0xff]
        %v805 = vld [vmem:[#allocation2 + $0xe8] sm:$0xff]
        %v806 = vld [vmem:[#allocation2 + $0xf0] sm:$0xff]
        %v807 = vld [vmem:[#allocation2 + $0xf8] sm:$0xff]
        %v808 = vld [vmem:[%s2] sm:$0x3]
        %v810 = vlaneseq
        %v811 = vshrl.u32 %v810, 7
        %v812 = vsub.s32 0, %v811
        %v813 = vrot.slane %v808, %v812
        %v814 = vlaneseq
        %v815 = vshrl.u32 %v814, 7
        %v816 = vsub.s32 1, %v815
        %v817 = vrot.slane %v808, %v816
        %v820 = vadd.f32 %v776, %v813
        %v821 = vadd.f32 %v777, %v817
        %v822 = vadd.f32 %v778, %v813
        %v823 = vadd.f32 %v779, %v817
        %v824 = vadd.f32 %v780, %v813
        %v825 = vadd.f32 %v781, %v817
        %v826 = vadd.f32 %v782, %v813
        %v827 = vadd.f32 %v783, %v817
        %v828 = vadd.f32 %v784, %v813
        %v829 = vadd.f32 %v785, %v817
        %v830 = vadd.f32 %v786, %v813
        %v831 = vadd.f32 %v787, %v817
        %v832 = vadd.f32 %v788, %v813
        %v833 = vadd.f32 %v789, %v817
        %v834 = vadd.f32 %v790, %v813
        %v835 = vadd.f32 %v791, %v817
        %v836 = vadd.f32 %v792, %v813
        %v837 = vadd.f32 %v793, %v817
        %v838 = vadd.f32 %v794, %v813
        %v839 = vadd.f32 %v795, %v817
        %v840 = vadd.f32 %v796, %v813
        %v841 = vadd.f32 %v797, %v817
        %v842 = vadd.f32 %v798, %v813
        %v843 = vadd.f32 %v799, %v817
        %v844 = vadd.f32 %v800, %v813
        %v845 = vadd.f32 %v801, %v817
        %v846 = vadd.f32 %v802, %v813
        %v847 = vadd.f32 %v803, %v817
        %v848 = vadd.f32 %v804, %v813
        %v849 = vadd.f32 %v805, %v817
        %v850 = vadd.f32 %v806, %v813
        %v851 = vadd.f32 %v807, %v817
        %v852 = vmax.f32 %v820, 0.0
        %v853 = vmax.f32 %v821, 0.0
        %v854 = vmax.f32 %v822, 0.0
        %v855 = vmax.f32 %v823, 0.0
        %v856 = vmax.f32 %v824, 0.0
        %v857 = vmax.f32 %v825, 0.0
        %v858 = vmax.f32 %v826, 0.0
        %v859 = vmax.f32 %v827, 0.0
        %v860 = vmax.f32 %v828, 0.0
        %v861 = vmax.f32 %v829, 0.0
        %v862 = vmax.f32 %v830, 0.0
        %v863 = vmax.f32 %v831, 0.0
        %v864 = vmax.f32 %v832, 0.0
        %v865 = vmax.f32 %v833, 0.0
        %v866 = vmax.f32 %v834, 0.0
        %v867 = vmax.f32 %v835, 0.0
        %v868 = vmax.f32 %v836, 0.0
        %v869 = vmax.f32 %v837, 0.0
        %v870 = vmax.f32 %v838, 0.0
        %v871 = vmax.f32 %v839, 0.0
        %v872 = vmax.f32 %v840, 0.0
        %v873 = vmax.f32 %v841, 0.0
        %v874 = vmax.f32 %v842, 0.0
        %v875 = vmax.f32 %v843, 0.0
        %v876 = vmax.f32 %v844, 0.0
        %v877 = vmax.f32 %v845, 0.0
        %v878 = vmax.f32 %v846, 0.0
        %v879 = vmax.f32 %v847, 0.0
        %v880 = vmax.f32 %v848, 0.0
        %v881 = vmax.f32 %v849, 0.0
        %v882 = vmax.f32 %v850, 0.0
        %v883 = vmax.f32 %v851, 0.0
        %v884 = vpack.c.bf16 %v854, %v852
        %v885 = vpack.c.bf16 %v855, %v853
        %v886 = vpack.c.bf16 %v858, %v856
        %v887 = vpack.c.bf16 %v859, %v857
        %v888 = vpack.c.bf16 %v862, %v860
        %v889 = vpack.c.bf16 %v863, %v861
        %v890 = vpack.c.bf16 %v866, %v864
        %v891 = vpack.c.bf16 %v867, %v865
        %v892 = vpack.c.bf16 %v870, %v868
        %v893 = vpack.c.bf16 %v871, %v869
        %v894 = vpack.c.bf16 %v874, %v872
        %v895 = vpack.c.bf16 %v875, %v873
        %v896 = vpack.c.bf16 %v878, %v876
        %v897 = vpack.c.bf16 %v879, %v877
        %v898 = vpack.c.bf16 %v882, %v880
        %v899 = vpack.c.bf16 %v883, %v881
        %v900 = vld [vmem:[%s3] sm:$0xff]
        %v901 = vld [vmem:[%s3 + $0x8] sm:$0xff]
        %v902 = vld [vmem:[%s3 + $0x10] sm:$0xff]
        %v903 = vld [vmem:[%s3 + $0x18] sm:$0xff]
        %v904 = vld [vmem:[%s3 + $0x20] sm:$0xff]
        %v905 = vld [vmem:[%s3 + $0x28] sm:$0xff]
        %v906 = vld [vmem:[%s3 + $0x30] sm:$0xff]
        %v907 = vld [vmem:[%s3 + $0x38] sm:$0xff]
        %v908 = vld [vmem:[%s3 + $0x40] sm:$0xff]
        %v909 = vld [vmem:[%s3 + $0x48] sm:$0xff]
        %v910 = vld [vmem:[%s3 + $0x50] sm:$0xff]
        %v911 = vld [vmem:[%s3 + $0x58] sm:$0xff]
        %v912 = vld [vmem:[%s3 + $0x60] sm:$0xff]
        %v913 = vld [vmem:[%s3 + $0x68] sm:$0xff]
        %v914 = vld [vmem:[%s3 + $0x70] sm:$0xff]
        %v915 = vld [vmem:[%s3 + $0x78] sm:$0xff]
        %v916 = vld [vmem:[%s3 + $0x80] sm:$0xff]
        %v917 = vld [vmem:[%s3 + $0x88] sm:$0xff]
        %v918 = vld [vmem:[%s3 + $0x90] sm:$0xff]
        %v919 = vld [vmem:[%s3 + $0x98] sm:$0xff]
        %v920 = vld [vmem:[%s3 + $0xa0] sm:$0xff]
        %v921 = vld [vmem:[%s3 + $0xa8] sm:$0xff]
        %v922 = vld [vmem:[%s3 + $0xb0] sm:$0xff]
        %v923 = vld [vmem:[%s3 + $0xb8] sm:$0xff]
        %v924 = vld [vmem:[%s3 + $0xc0] sm:$0xff]
        %v925 = vld [vmem:[%s3 + $0xc8] sm:$0xff]
        %v926 = vld [vmem:[%s3 + $0xd0] sm:$0xff]
        %v927 = vld [vmem:[%s3 + $0xd8] sm:$0xff]
        %v928 = vld [vmem:[%s3 + $0xe0] sm:$0xff]
        %v929 = vld [vmem:[%s3 + $0xe8] sm:$0xff]
        %v930 = vld [vmem:[%s3 + $0xf0] sm:$0xff]
        %v931 = vld [vmem:[%s3 + $0xf8] sm:$0xff]
        %v964 = vunpack.c.l.b16 %v900
        %v965 = vunpack.c.h.b16 %v900
        %v966 = vunpack.c.l.b16 %v901
        %v967 = vunpack.c.h.b16 %v901
        %v968 = vunpack.c.l.b16 %v902
        %v969 = vunpack.c.h.b16 %v902
        %v970 = vunpack.c.l.b16 %v903
        %v971 = vunpack.c.h.b16 %v903
        %v972 = vunpack.c.l.b16 %v904
        %v973 = vunpack.c.h.b16 %v904
        %v974 = vunpack.c.l.b16 %v905
        %v975 = vunpack.c.h.b16 %v905
        %v976 = vunpack.c.l.b16 %v906
        %v977 = vunpack.c.h.b16 %v906
        %v978 = vunpack.c.l.b16 %v907
        %v979 = vunpack.c.h.b16 %v907
        %v980 = vunpack.c.l.b16 %v908
        %v981 = vunpack.c.h.b16 %v908
        %v982 = vunpack.c.l.b16 %v909
        %v983 = vunpack.c.h.b16 %v909
        %v984 = vunpack.c.l.b16 %v910
        %v985 = vunpack.c.h.b16 %v910
        %v986 = vunpack.c.l.b16 %v911
        %v987 = vunpack.c.h.b16 %v911
        %v988 = vunpack.c.l.b16 %v912
        %v989 = vunpack.c.h.b16 %v912
        %v990 = vunpack.c.l.b16 %v913
        %v991 = vunpack.c.h.b16 %v913
        %v992 = vunpack.c.l.b16 %v914
        %v993 = vunpack.c.h.b16 %v914
        %v994 = vunpack.c.l.b16 %v915
        %v995 = vunpack.c.h.b16 %v915
        %v996 = vunpack.c.l.b16 %v916
        %v997 = vunpack.c.h.b16 %v916
        %v998 = vunpack.c.l.b16 %v917
        %v999 = vunpack.c.h.b16 %v917
        %v1000 = vunpack.c.l.b16 %v918
        %v1001 = vunpack.c.h.b16 %v918
        %v1002 = vunpack.c.l.b16 %v919
        %v1003 = vunpack.c.h.b16 %v919
        %v1004 = vunpack.c.l.b16 %v920
        %v1005 = vunpack.c.h.b16 %v920
        %v1006 = vunpack.c.l.b16 %v921
        %v1007 = vunpack.c.h.b16 %v921
        %v1008 = vunpack.c.l.b16 %v922
        %v1009 = vunpack.c.h.b16 %v922
        %v1010 = vunpack.c.l.b16 %v923
        %v1011 = vunpack.c.h.b16 %v923
        %v1012 = vunpack.c.l.b16 %v924
        %v1013 = vunpack.c.h.b16 %v924
        %v1014 = vunpack.c.l.b16 %v925
        %v1015 = vunpack.c.h.b16 %v925
        %v1016 = vunpack.c.l.b16 %v926
        %v1017 = vunpack.c.h.b16 %v926
        %v1018 = vunpack.c.l.b16 %v927
        %v1019 = vunpack.c.h.b16 %v927
        %v1020 = vunpack.c.l.b16 %v928
        %v1021 = vunpack.c.h.b16 %v928
        %v1022 = vunpack.c.l.b16 %v929
        %v1023 = vunpack.c.h.b16 %v929
        %v1024 = vunpack.c.l.b16 %v930
        %v1025 = vunpack.c.h.b16 %v930
        %v1026 = vunpack.c.l.b16 %v931
        %v1027 = vunpack.c.h.b16 %v931
        %v1028 = vpack.c.b16 %v966, %v964
        %v1029 = vpack.c.b16 %v967, %v965
        %v1030 = vpack.c.b16 %v970, %v968
        %v1031 = vpack.c.b16 %v971, %v969
        %v1032 = vpack.c.b16 %v974, %v972
        %v1033 = vpack.c.b16 %v975, %v973
        %v1034 = vpack.c.b16 %v978, %v976
        %v1035 = vpack.c.b16 %v979, %v977
        %v1036 = vpack.c.b16 %v982, %v980
        %v1037 = vpack.c.b16 %v983, %v981
        %v1038 = vpack.c.b16 %v986, %v984
        %v1039 = vpack.c.b16 %v987, %v985
        %v1040 = vpack.c.b16 %v990, %v988
        %v1041 = vpack.c.b16 %v991, %v989
        %v1042 = vpack.c.b16 %v994, %v992
        %v1043 = vpack.c.b16 %v995, %v993
        %v1044 = vpack.c.b16 %v998, %v996
        %v1045 = vpack.c.b16 %v999, %v997
        %v1046 = vpack.c.b16 %v1002, %v1000
        %v1047 = vpack.c.b16 %v1003, %v1001
        %v1048 = vpack.c.b16 %v1006, %v1004
        %v1049 = vpack.c.b16 %v1007, %v1005
        %v1050 = vpack.c.b16 %v1010, %v1008
        %v1051 = vpack.c.b16 %v1011, %v1009
        %v1052 = vpack.c.b16 %v1014, %v1012
        %v1053 = vpack.c.b16 %v1015, %v1013
        %v1054 = vpack.c.b16 %v1018, %v1016
        %v1055 = vpack.c.b16 %v1019, %v1017
        %v1056 = vpack.c.b16 %v1022, %v1020
        %v1057 = vpack.c.b16 %v1023, %v1021
        %v1058 = vpack.c.b16 %v1026, %v1024
        %v1059 = vpack.c.b16 %v1027, %v1025
        %1092 = vmatprep.subr.bf16.mxu0 %v1043
        %1093 = vmatpush1.bf16.msra.mxu0 %v1042
        %1094 = vmatprep.subr.bf16.mxu0 %v1041
        %1095 = vmatpush1.bf16.msra.mxu0 %v1040
        %1096 = vmatprep.subr.bf16.mxu0 %v1039
        %1097 = vmatpush1.bf16.msra.mxu0 %v1038
        %1098 = vmatprep.subr.bf16.mxu0 %v1037
        %1099 = vmatpush1.bf16.msra.mxu0 %v1036
        %1100 = vmatprep.subr.bf16.mxu0 %v1035
        %1101 = vmatpush1.bf16.msra.mxu0 %v1034
        %1102 = vmatprep.subr.bf16.mxu0 %v1033
        %1103 = vmatpush1.bf16.msra.mxu0 %v1032
        %1104 = vmatprep.subr.bf16.mxu0 %v1031
        %1105 = vmatpush1.bf16.msra.mxu0 %v1030
        %1106 = vmatprep.subr.bf16.mxu0 %v1029
        %1107 = vmatpush1.bf16.msra.mxu0 %v1028
        %1108 = vmatprep.subr.bf16.mxu0 %v1059
        %1109 = vmatpush2.bf16.msra.mxu0 %v1058
        %1110 = vmatprep.subr.bf16.mxu0 %v1057
        %1111 = vmatpush2.bf16.msra.mxu0 %v1056
        %1112 = vmatprep.subr.bf16.mxu0 %v1055
        %1113 = vmatpush2.bf16.msra.mxu0 %v1054
        %1114 = vmatprep.subr.bf16.mxu0 %v1053
        %1115 = vmatpush2.bf16.msra.mxu0 %v1052
        %1116 = vmatprep.subr.bf16.mxu0 %v1051
        %1117 = vmatpush2.bf16.msra.mxu0 %v1050
        %1118 = vmatprep.subr.bf16.mxu0 %v1049
        %1119 = vmatpush2.bf16.msra.mxu0 %v1048
        %1120 = vmatprep.subr.bf16.mxu0 %v1047
        %1121 = vmatpush2.bf16.msra.mxu0 %v1046
        %1122 = vmatprep.subr.bf16.mxu0 %v1045
        %1123 = vmatpush2.bf16.msra.mxu0 %v1044
        %1124 = vmatprep.mubr.bf16.mxu0 %v885
        %1125 = vmatmul.mubr.bf16.gmra.mxu0 %v884
        %v1126 = vpop.f32.mrf.mxu0
        %v1127 = vadd.f32 0.0, %v1126
        %v1128 = vpop.f32.mrf.mxu0
        %v1129 = vadd.f32 0.0, %v1128
        %v1130 = vpop.f32.mrf.mxu0
        %v1131 = vadd.f32 0.0, %v1130
        %v1132 = vpop.f32.mrf.mxu0
        %v1133 = vadd.f32 0.0, %v1132
        %1134 = vmatprep.mubr.bf16.mxu0 %v887
        %1135 = vmatmul.mubr.bf16.gmra.mxu0 %v886
        %v1136 = vpop.f32.mrf.mxu0
        %v1137 = vadd.f32 0.0, %v1136
        %v1138 = vpop.f32.mrf.mxu0
        %v1139 = vadd.f32 0.0, %v1138
        %v1140 = vpop.f32.mrf.mxu0
        %v1141 = vadd.f32 0.0, %v1140
        %v1142 = vpop.f32.mrf.mxu0
        %v1143 = vadd.f32 0.0, %v1142
        %1144 = vmatprep.mubr.bf16.mxu0 %v889
        %1145 = vmatmul.mubr.bf16.gmra.mxu0 %v888
        %v1146 = vpop.f32.mrf.mxu0
        %v1147 = vadd.f32 0.0, %v1146
        %v1148 = vpop.f32.mrf.mxu0
        %v1149 = vadd.f32 0.0, %v1148
        %v1150 = vpop.f32.mrf.mxu0
        %v1151 = vadd.f32 0.0, %v1150
        %v1152 = vpop.f32.mrf.mxu0
        %v1153 = vadd.f32 0.0, %v1152
        %1154 = vmatprep.mubr.bf16.mxu0 %v891
        %1155 = vmatmul.mubr.bf16.gmra.mxu0 %v890
        %v1156 = vpop.f32.mrf.mxu0
        %v1157 = vadd.f32 0.0, %v1156
        %v1158 = vpop.f32.mrf.mxu0
        %v1159 = vadd.f32 0.0, %v1158
        %v1160 = vpop.f32.mrf.mxu0
        %v1161 = vadd.f32 0.0, %v1160
        %v1162 = vpop.f32.mrf.mxu0
        %v1163 = vadd.f32 0.0, %v1162
        %1164 = vmatprep.mubr.bf16.mxu0 %v893
        %1165 = vmatmul.mubr.bf16.gmra.mxu0 %v892
        %v1166 = vpop.f32.mrf.mxu0
        %v1167 = vadd.f32 0.0, %v1166
        %v1168 = vpop.f32.mrf.mxu0
        %v1169 = vadd.f32 0.0, %v1168
        %v1170 = vpop.f32.mrf.mxu0
        %v1171 = vadd.f32 0.0, %v1170
        %v1172 = vpop.f32.mrf.mxu0
        %v1173 = vadd.f32 0.0, %v1172
        %1174 = vmatprep.mubr.bf16.mxu0 %v895
        %1175 = vmatmul.mubr.bf16.gmra.mxu0 %v894
        %v1176 = vpop.f32.mrf.mxu0
        %v1177 = vadd.f32 0.0, %v1176
        %v1178 = vpop.f32.mrf.mxu0
        %v1179 = vadd.f32 0.0, %v1178
        %v1180 = vpop.f32.mrf.mxu0
        %v1181 = vadd.f32 0.0, %v1180
        %v1182 = vpop.f32.mrf.mxu0
        %v1183 = vadd.f32 0.0, %v1182
        %1184 = vmatprep.mubr.bf16.mxu0 %v897
        %1185 = vmatmul.mubr.bf16.gmra.mxu0 %v896
        %v1186 = vpop.f32.mrf.mxu0
        %v1187 = vadd.f32 0.0, %v1186
        %v1188 = vpop.f32.mrf.mxu0
        %v1189 = vadd.f32 0.0, %v1188
        %v1190 = vpop.f32.mrf.mxu0
        %v1191 = vadd.f32 0.0, %v1190
        %v1192 = vpop.f32.mrf.mxu0
        %v1193 = vadd.f32 0.0, %v1192
        %1194 = vmatprep.mubr.bf16.mxu0 %v899
        %1195 = vmatmul.mubr.bf16.gmra.mxu0 %v898
        %v1196 = vpop.f32.mrf.mxu0
        %v1197 = vadd.f32 0.0, %v1196
        %v1198 = vpop.f32.mrf.mxu0
        %v1199 = vadd.f32 0.0, %v1198
        %v1200 = vpop.f32.mrf.mxu0
        %v1201 = vadd.f32 0.0, %v1200
        %v1202 = vpop.f32.mrf.mxu0
        %v1203 = vadd.f32 0.0, %v1202
        %1204 = vdwg.mxu0
        %v1205 = vpack.c.bf16 %v1131, %v1127
        %v1206 = vpack.c.bf16 %v1133, %v1129
        %v1207 = vpack.c.bf16 %v1141, %v1137
        %v1208 = vpack.c.bf16 %v1143, %v1139
        %v1209 = vpack.c.bf16 %v1151, %v1147
        %v1210 = vpack.c.bf16 %v1153, %v1149
        %v1211 = vpack.c.bf16 %v1161, %v1157
        %v1212 = vpack.c.bf16 %v1163, %v1159
        %v1213 = vpack.c.bf16 %v1171, %v1167
        %v1214 = vpack.c.bf16 %v1173, %v1169
        %v1215 = vpack.c.bf16 %v1181, %v1177
        %v1216 = vpack.c.bf16 %v1183, %v1179
        %v1217 = vpack.c.bf16 %v1191, %v1187
        %v1218 = vpack.c.bf16 %v1193, %v1189
        %v1219 = vpack.c.bf16 %v1201, %v1197
        %v1220 = vpack.c.bf16 %v1203, %v1199
        %v1237 = vunpack.c.l.b16 %v1205
        %v1238 = vunpack.c.l.b16 %v1206
        %v1239 = vunpack.c.h.b16 %v1205
        %v1240 = vunpack.c.h.b16 %v1206
        %v1241 = vunpack.c.l.b16 %v1207
        %v1242 = vunpack.c.l.b16 %v1208
        %v1243 = vunpack.c.h.b16 %v1207
        %v1244 = vunpack.c.h.b16 %v1208
        %v1245 = vunpack.c.l.b16 %v1209
        %v1246 = vunpack.c.l.b16 %v1210
        %v1247 = vunpack.c.h.b16 %v1209
        %v1248 = vunpack.c.h.b16 %v1210
        %v1249 = vunpack.c.l.b16 %v1211
        %v1250 = vunpack.c.l.b16 %v1212
        %v1251 = vunpack.c.h.b16 %v1211
        %v1252 = vunpack.c.h.b16 %v1212
        %v1253 = vunpack.c.l.b16 %v1213
        %v1254 = vunpack.c.l.b16 %v1214
        %v1255 = vunpack.c.h.b16 %v1213
        %v1256 = vunpack.c.h.b16 %v1214
        %v1257 = vunpack.c.l.b16 %v1215
        %v1258 = vunpack.c.l.b16 %v1216
        %v1259 = vunpack.c.h.b16 %v1215
        %v1260 = vunpack.c.h.b16 %v1216
        %v1261 = vunpack.c.l.b16 %v1217
        %v1262 = vunpack.c.l.b16 %v1218
        %v1263 = vunpack.c.h.b16 %v1217
        %v1264 = vunpack.c.h.b16 %v1218
        %v1265 = vunpack.c.l.b16 %v1219
        %v1266 = vunpack.c.l.b16 %v1220
        %v1267 = vunpack.c.h.b16 %v1219
        %v1268 = vunpack.c.h.b16 %v1220
        %v1269 = vpack.c.b16 %v1238, %v1237
        %v1270 = vpack.c.b16 %v1240, %v1239
        %v1271 = vpack.c.b16 %v1242, %v1241
        %v1272 = vpack.c.b16 %v1244, %v1243
        %v1273 = vpack.c.b16 %v1246, %v1245
        %v1274 = vpack.c.b16 %v1248, %v1247
        %v1275 = vpack.c.b16 %v1250, %v1249
        %v1276 = vpack.c.b16 %v1252, %v1251
        %v1277 = vpack.c.b16 %v1254, %v1253
        %v1278 = vpack.c.b16 %v1256, %v1255
        %v1279 = vpack.c.b16 %v1258, %v1257
        %v1280 = vpack.c.b16 %v1260, %v1259
        %v1281 = vpack.c.b16 %v1262, %v1261
        %v1282 = vpack.c.b16 %v1264, %v1263
        %v1283 = vpack.c.b16 %v1266, %v1265
        %v1284 = vpack.c.b16 %v1268, %v1267
        %1301 = vst [vmem:[%s232] sm:$0xff] %v1269
        %1302 = vst [vmem:[%s232 + $0x8] sm:$0xff] %v1270
        %1303 = vst [vmem:[%s232 + $0x10] sm:$0xff] %v1271
        %1304 = vst [vmem:[%s232 + $0x18] sm:$0xff] %v1272
        %1305 = vst [vmem:[%s232 + $0x20] sm:$0xff] %v1273
        %1306 = vst [vmem:[%s232 + $0x28] sm:$0xff] %v1274
        %1307 = vst [vmem:[%s232 + $0x30] sm:$0xff] %v1275
        %1308 = vst [vmem:[%s232 + $0x38] sm:$0xff] %v1276
        %1309 = vst [vmem:[%s232 + $0x40] sm:$0xff] %v1277
        %1310 = vst [vmem:[%s232 + $0x48] sm:$0xff] %v1278
        %1311 = vst [vmem:[%s232 + $0x50] sm:$0xff] %v1279
        %1312 = vst [vmem:[%s232 + $0x58] sm:$0xff] %v1280
        %1313 = vst [vmem:[%s232 + $0x60] sm:$0xff] %v1281
        %1314 = vst [vmem:[%s232 + $0x68] sm:$0xff] %v1282
        %1315 = vst [vmem:[%s232 + $0x70] sm:$0xff] %v1283
        %1316 = vst [vmem:[%s232 + $0x78] sm:$0xff] %v1284
      $region44: #{gcn_net_forward.4} parent=35 // pred_fallthru
        _
      %s1317 = smul.u32 16, %s19
      %p1318 = scmp.lt.s32.totalorder %s1317, 31
      %s1319 = scalar_select %p1318, %s1317, 31
      %s1320 = smul.addr %s1319, 2
      %s1321 = smul.addr %s1320, 4
      %s1322 = scalar_lea.vmem %s4, %s1321
      // Predicated region
      $region45: #{gcn_net_forward.4} parent=35 // pred_check
        %p1323 = pneg %p136
      $region46: #{gcn_net_forward.4} parent=35 // pred_check_branch
        %1325 = sbr.rel (%p1323) target = $region48
      $region47: #{gcn_net_forward.4} parent=35 // pred_region
        %s1326 = smul.u32 16, %s19
      $region48: #{gcn_net_forward.4} parent=35 // pred_fallthru
        _
    $region36: #{gcn_net_forward.4} parent=5 // pred_fallthru
      _
    %p1327 = scmp.le.s32.totalorder 2, %s10
    // Predicated region
    $region49: #{gcn_net_forward.4} parent=5 // pred_check
      %p1328 = pneg %p1327
    $region50: #{gcn_net_forward.4} parent=5 // pred_check_branch
      %1330 = sbr.rel (%p1328) target = $region52
    $region51: #{gcn_net_forward.4} parent=5 // pred_region
      %s1331 = ssub.s32 %s10, 2
      // Predicated region
      $region53: #{gcn_net_forward.4} parent=51 // pred_check
        %p1332 = pneg %p142
      $region54: #{gcn_net_forward.4} parent=51 // pred_check_branch
        %1334 = sbr.rel (%p1332) target = $region56
      $region55: #{gcn_net_forward.4} parent=51 // pred_region
        %s1335 = smul.u32 16, %s21
        %p1336 = scmp.lt.s32.totalorder %s1335, 31
        %s1337 = scalar_select %p1336, %s1335, 31
        %s1338 = smul.addr %s1337, 2
        %s1339 = smul.addr %s1338, 4
        %s1340 = scalar_lea.vmem %s4, %s1339
      $region56: #{gcn_net_forward.4} parent=51 // pred_fallthru
        _
    $region52: #{gcn_net_forward.4} parent=5 // pred_fallthru
      _
  $region6: #{gcn_net_forward.4} parent=0 // loop_footer
    %s14 = sadd.s32 1, %s10
  $region7: #{gcn_net_forward.4} parent=0 // loop_footer_branch
    %9 = sbr.rel target = $region3
  $region8: #{gcn_net_forward.4} parent=0 // loop_exit
    _

</llo_original>
